<compile_context>
chip_gen: v7x
topology: tpu7x:2x2x1
jax: 0.10.0
libtpu: 0.0.40
codegen_flags: <defaults>
</compile_context>

<pallas_src>
import functools

import jax
import jax.numpy as jnp
from jax import lax
from jax.experimental import pallas as pl
from jax.experimental.pallas import tpu as pltpu


def _round_up(x, m):
    return (x + m - 1) // m * m


# ----------------------------- fused RNN2 kernel ------------------------------
def rnn2_fused_kernel(x_ref, wih0_ref, whh0_ref, b0_ref, bn0_ref,
                      wih1_ref, whh1_ref, b1_ref, bn1_ref,
                      decw0_ref, decw1_ref, decb_ref,
                      out_ref,
                      gi_scr,
                      *, T, Bp, Hp, unroll):
    """Fused forward: GRU layer 0 + GRU layer 1 (wavefront) -> Linear head.

    x_ref    : (T*Bp, Ep)   bf16  time-major, batch-padded embedded input
    wih0_ref : (Ep, 3Hp)    bf16  layer-0 input->gate weights (gate blocks Hp-padded)
    whh*_ref : (Hp, 3Hp)    bf16  hidden->gate weights
    b*_ref   : (1, 3Hp)     f32   folded bias (r,z: b_ih+b_hh ; n: b_ih)
    bn*_ref  : (1, 3Hp)     f32   b_hh for the n gate only (zeros elsewhere)
    wih1_ref : (Hp, 3Hp)    bf16  layer-1 input->gate weights
    decw0/1  : (Hp, Op)     bf16  decoder weight rows for [h_layer0] / [h_layer1]
    decb_ref : (1, Op)      f32
    out_ref  : (Bp, Op)     f32   padded logits
    gi_scr   : (T*Bp, 3Hp)  f32   hoisted layer-0 input-projection buffer
    """
    Hp2, Hp3 = 2 * Hp, 3 * Hp

    # Hoisted layer-0 input projection: one big (T*Bp, Ep) x (Ep, 3Hp) MXU matmul.
    gi_scr[...] = jnp.dot(x_ref[...], wih0_ref[...],
                          preferred_element_type=jnp.float32) + b0_ref[...]

    # Weights resident across the loop (all small: a few vregs each).
    whh0 = whh0_ref[...]
    whh1 = whh1_ref[...]
    wih1 = wih1_ref[...]
    bn0 = bn0_ref[...]
    bn1 = bn1_ref[...]
    b1 = b1_ref[...]

    def gru_gates(gi, gh, h_prev):
        r = jax.nn.sigmoid(gi[:, 0:Hp] + gh[:, 0:Hp])
        z = jax.nn.sigmoid(gi[:, Hp:Hp2] + gh[:, Hp:Hp2])
        n = jnp.tanh(gi[:, Hp2:Hp3] + r * gh[:, Hp2:Hp3])
        return (1.0 - z) * n + z * h_prev           # padded lanes stay exactly 0

    def step_l0(t, h0_prev):
        row = t * Bp
        if not isinstance(row, int):
            row = pl.multiple_of(row, Bp)
        gi = gi_scr[pl.ds(row, Bp), :]               # (Bp, 3Hp) f32, lane-aligned
        gh = jnp.dot(h0_prev.astype(jnp.bfloat16), whh0,
                     preferred_element_type=jnp.float32) + bn0
        return gru_gates(gi, gh, h0_prev)

    def step_l1(y0, h1_prev):
        y0b = y0.astype(jnp.bfloat16)
        gi = jnp.dot(y0b, wih1, preferred_element_type=jnp.float32) + b1
        gh = jnp.dot(h1_prev.astype(jnp.bfloat16), whh1,
                     preferred_element_type=jnp.float32) + bn1
        return gru_gates(gi, gh, h1_prev)

    # Wavefront over (layer, time):
    #   prologue : layer-0 step 0
    #   loop t   : layer-1 step t-1 (consumes y0_{t-1} = h0_{t-1}) || layer-0 step t
    #   epilogue : layer-1 step T-1
    # The two steps inside the loop are data-independent, so the LLO scheduler can
    # interleave their MXU/EUP/VPU work and fill each chain's latency bubbles.
    h_init = jnp.zeros((Bp, Hp), jnp.float32)
    h0 = step_l0(0, h_init)
    h1 = h_init

    def body(t, carry):
        h0_prev, h1_prev = carry
        h1_new = step_l1(h0_prev, h1_prev)           # layer-1 step t-1
        h0_new = step_l0(t, h0_prev)                 # layer-0 step t
        return (h0_new, h1_new)

    h0, h1 = lax.fori_loop(1, T, body, (h0, h1), unroll=unroll)
    h1 = step_l1(h0, h1)                             # layer-1 step T-1

    # Decoder: Linear([h_layer0 | h_layer1]) without materializing the concat.
    out_ref[...] = (jnp.dot(h0.astype(jnp.bfloat16), decw0_ref[...],
                            preferred_element_type=jnp.float32)
                    + jnp.dot(h1.astype(jnp.bfloat16), decw1_ref[...],
                              preferred_element_type=jnp.float32)
                    + decb_ref[...])


def rnn2_pallas(x2d, wih0, whh0, b0, bn0, wih1, whh1, b1, bn1,
                decw0, decw1, decb, *, T, Bp, Hp, Op):
    # Full unroll only while T is small; bounded unroll keeps LLO visibility
    # without blowing up instruction memory / live ranges for long sequences.
    unroll = True if T <= 32 else 8
    kernel = functools.partial(rnn2_fused_kernel, T=T, Bp=Bp, Hp=Hp, unroll=unroll)
    return pl.pallas_call(
        kernel,
        out_shape=jax.ShapeDtypeStruct((Bp, Op), jnp.float32),
        scratch_shapes=[
            pltpu.VMEM((T * Bp, 3 * Hp), jnp.float32),   # hoisted layer-0 gate projections
        ],
    )(x2d, wih0, whh0, b0, bn0, wih1, whh1, b1, bn1, decw0, decw1, decb)


# --------------------- one-time weight layout / padding -----------------------
def _prep_gru(w_ih, w_hh, b_ih, b_hh, Ein, Ein_p, H, Hp):
    """PyTorch GRU weights (gate order r,z,n) -> lane-padded, bias-folded layout."""
    def pad_gate_cols(w_t, rows, rows_p):
        # w_t: (rows, 3H) -> (rows_p, 3Hp): each gate block padded to Hp lanes.
        gates = [jnp.pad(w_t[:, g * H:(g + 1) * H],
                         ((0, rows_p - rows), (0, Hp - H))) for g in range(3)]
        return jnp.concatenate(gates, axis=1)

    wih_p = pad_gate_cols(w_ih.T, Ein, Ein_p)        # (Ein_p, 3Hp)
    whh_p = pad_gate_cols(w_hh.T, H, Hp)             # (Hp, 3Hp)

    def pad_gate_bias(b):
        return jnp.concatenate(
            [jnp.pad(b[g * H:(g + 1) * H], (0, Hp - H)) for g in range(3)])

    # r,z: fold b_ih + b_hh into the input projection; n: only b_ih there,
    # b_hh(n) applied with the recurrent projection (it gets multiplied by r).
    b_main = pad_gate_bias(
        jnp.concatenate([b_ih[:2 * H] + b_hh[:2 * H], b_ih[2 * H:]]))
    b_n = pad_gate_bias(
        jnp.concatenate([jnp.zeros((2 * H,), b_hh.dtype), b_hh[2 * H:]]))

    return (wih_p.astype(jnp.bfloat16), whh_p.astype(jnp.bfloat16),
            b_main.reshape(1, 3 * Hp).astype(jnp.float32),
            b_n.reshape(1, 3 * Hp).astype(jnp.float32))


def _prep_dec(dec_w, dec_b, H, Hp, O, Op):
    """PyTorch Linear (O, 2H) -> two (Hp, Op) blocks matching [h_l0 | h_l1]."""
    w_t = dec_w.T                                            # (2H, O)
    w0 = jnp.pad(w_t[:H], ((0, Hp - H), (0, Op - O)))        # layer-0 hidden rows
    w1 = jnp.pad(w_t[H:], ((0, Hp - H), (0, Op - O)))        # layer-1 hidden rows
    b_p = jnp.pad(dec_b, (0, Op - O)).reshape(1, Op).astype(jnp.float32)
    return w0.astype(jnp.bfloat16), w1.astype(jnp.bfloat16), b_p


def prepare_params(params):
    """One-time parameter preparation (padding / bias folding / bf16 casts).

    Call once; pass the result into the jitted forward so no per-call pad /
    transpose / cast ops sit on the forward path.
    """
    E = params["embed"].shape[1]
    H = params["w_hh_l0"].shape[1]
    O = params["dec_w"].shape[0]
    Ep = _round_up(E, 128)
    Hp = _round_up(H, 128)
    Op = _round_up(O, 128)

    embed_p = jnp.pad(params["embed"], ((0, 0), (0, Ep - E))).astype(jnp.bfloat16)

    wih0, whh0, b0, bn0 = _prep_gru(params["w_ih_l0"], params["w_hh_l0"],
                                    params["b_ih_l0"], params["b_hh_l0"],
                                    E, Ep, H, Hp)
    wih1, whh1, b1, bn1 = _prep_gru(params["w_ih_l1"], params["w_hh_l1"],
                                    params["b_ih_l1"], params["b_hh_l1"],
                                    H, Hp, H, Hp)
    decw0, decw1, decb = _prep_dec(params["dec_w"], params["dec_b"], H, Hp, O, Op)

    return {
        "embed": embed_p,
        "wih0": wih0, "whh0": whh0, "b0": b0, "bn0": bn0,
        "wih1": wih1, "whh1": whh1, "b1": b1, "bn1": bn1,
        "decw0": decw0, "decw1": decw1, "decb": decb,
    }


# ------------------------------- RNN2 forward ---------------------------------
@functools.partial(jax.jit, static_argnames=("n_out",))
def rnn2_forward(prepped, x_ids, n_out):
    """x_ids: (B, T) int32 token ids. Returns (B, n_out) logits."""
    B, T = x_ids.shape
    Bp = _round_up(B, 8)
    Ep = prepped["embed"].shape[1]
    Hp = prepped["whh0"].shape[0]
    Op = prepped["decb"].shape[1]

    # Gather directly into time-major (T, B, Ep) order, pad batch to a sublane
    # multiple, flatten to the (T*Bp, Ep) layout the kernel expects.
    x = jnp.take(prepped["embed"], x_ids.T, axis=0)          # (T, B, Ep) bf16
    x = jnp.pad(x, ((0, 0), (0, Bp - B), (0, 0)))            # (T, Bp, Ep)
    x2d = x.reshape(T * Bp, Ep)

    logits_p = rnn2_pallas(
        x2d,
        prepped["wih0"], prepped["whh0"], prepped["b0"], prepped["bn0"],
        prepped["wih1"], prepped["whh1"], prepped["b1"], prepped["bn1"],
        prepped["decw0"], prepped["decw1"], prepped["decb"],
        T=T, Bp=Bp, Hp=Hp, Op=Op)
    return logits_p[:B, :n_out]


# ------------------------------ Parameter setup -------------------------------
def init_params(key, vocab_size, embed_size, hidden_size, n_hashtags):
    keys = jax.random.split(key, 16)
    k = 1.0 / jnp.sqrt(hidden_size)

    def u(kk, shape):
        return jax.random.uniform(kk, shape, jnp.float32, minval=-k, maxval=k)

    params = {
        "embed": jax.random.normal(keys[0], (vocab_size, embed_size), jnp.float32),
        # layer 0: input size = embed_size
        "w_ih_l0": u(keys[1], (3 * hidden_size, embed_size)),
        "w_hh_l0": u(keys[2], (3 * hidden_size, hidden_size)),
        "b_ih_l0": u(keys[3], (3 * hidden_size,)),
        "b_hh_l0": u(keys[4], (3 * hidden_size,)),
        # layer 1: input size = hidden_size
        "w_ih_l1": u(keys[5], (3 * hidden_size, hidden_size)),
        "w_hh_l1": u(keys[6], (3 * hidden_size, hidden_size)),
        "b_ih_l1": u(keys[7], (3 * hidden_size,)),
        "b_hh_l1": u(keys[8], (3 * hidden_size,)),
        # decision: Linear(hidden_size * 2, n_hashtags)
        "dec_w": u(keys[9], (n_hashtags, 2 * hidden_size)),
        "dec_b": u(keys[10], (n_hashtags,)),
    }
    return params


if __name__ == "__main__":
    # Small, module-consistent sizes
    VOCAB = 50          # len(vocab_to_int)
    EMBED = 32          # embed_size
    HIDDEN = 32         # hidden_size
    N_TAGS = 12         # len(hashtags_vocab_to_int)
    B, T = 2, 8

    key = jax.random.PRNGKey(0)
    k_param, k_x = jax.random.split(key)
    params = init_params(k_param, VOCAB, EMBED, HIDDEN, N_TAGS)
    x_ids = jax.random.randint(k_x, (B, T), 0, VOCAB, dtype=jnp.int32)

    # One-time weight preparation hoisted out of the forward path.
    prepped = prepare_params(params)
    prepped = jax.tree_util.tree_map(jax.block_until_ready, prepped)

    out = rnn2_forward(prepped, x_ids, n_out=N_TAGS)
    out = jax.block_until_ready(out)
    assert out.shape == (B, N_TAGS), out.shape
    print("KERNEL_OK")
</pallas_src>

<mosaic_0001>
module attributes {stable_mosaic.version = 11 : i64} {
  func.func @rnn2_fused_kernel(%arg0: memref<64x128xbf16, #tpu.memory_space<vmem>>, %arg1: memref<128x384xbf16, #tpu.memory_space<vmem>>, %arg2: memref<128x384xbf16, #tpu.memory_space<vmem>>, %arg3: memref<1x384xf32, #tpu.memory_space<vmem>>, %arg4: memref<1x384xf32, #tpu.memory_space<vmem>>, %arg5: memref<128x384xbf16, #tpu.memory_space<vmem>>, %arg6: memref<128x384xbf16, #tpu.memory_space<vmem>>, %arg7: memref<1x384xf32, #tpu.memory_space<vmem>>, %arg8: memref<1x384xf32, #tpu.memory_space<vmem>>, %arg9: memref<128x128xbf16, #tpu.memory_space<vmem>>, %arg10: memref<128x128xbf16, #tpu.memory_space<vmem>>, %arg11: memref<1x128xf32, #tpu.memory_space<vmem>>, %arg12: memref<8x128xf32, #tpu.memory_space<vmem>>, %arg13: memref<64x384xf32, #tpu.memory_space<vmem>>) attributes {dimension_semantics = [], scalar_prefetch = 0 : i64, scratch_operands = 1 : i64, tpu.core_type = #tpu.core_type<tc>} {
    %c0 = arith.constant 0 : index
    %c0_0 = arith.constant 0 : index
    %0 = vector.load %arg0[%c0, %c0_0] : memref<64x128xbf16, #tpu.memory_space<vmem>>, vector<64x128xbf16>
    %c0_1 = arith.constant 0 : index
    %c0_2 = arith.constant 0 : index
    %1 = vector.load %arg1[%c0_1, %c0_2] : memref<128x384xbf16, #tpu.memory_space<vmem>>, vector<128x384xbf16>
    %cst = arith.constant dense<0.000000e+00> : vector<64x384xf32>
    %2 = tpu.matmul %0, %1, %cst {dimension_numbers = #tpu.dot_dimension_numbers<[1], [0], [0], [1], [0, 0, 1, 1], [], []>} : vector<64x128xbf16>, vector<128x384xbf16>, vector<64x384xf32> -> vector<64x384xf32>
    %c0_3 = arith.constant 0 : index
    %c0_4 = arith.constant 0 : index
    %3 = vector.load %arg3[%c0_3, %c0_4] : memref<1x384xf32, #tpu.memory_space<vmem>>, vector<1x384xf32>
    %4 = vector.broadcast %3 : vector<1x384xf32> to vector<64x384xf32>
    %5 = arith.addf %2, %4 : vector<64x384xf32>
    %c0_5 = arith.constant 0 : index
    %c0_6 = arith.constant 0 : index
    %6 = vector.load %arg13[%c0_5, %c0_6] : memref<64x384xf32, #tpu.memory_space<vmem>>, vector<64x384xf32>
    tpu.vector_store %arg13[%c0_5, %c0_6], %5 {strides = array<i32>} : memref<64x384xf32, #tpu.memory_space<vmem>>, vector<64x384xf32>,
    %c0_7 = arith.constant 0 : index
    %c0_8 = arith.constant 0 : index
    %7 = vector.load %arg2[%c0_7, %c0_8] : memref<128x384xbf16, #tpu.memory_space<vmem>>, vector<128x384xbf16>
    %c0_9 = arith.constant 0 : index
    %c0_10 = arith.constant 0 : index
    %8 = vector.load %arg6[%c0_9, %c0_10] : memref<128x384xbf16, #tpu.memory_space<vmem>>, vector<128x384xbf16>
    %c0_11 = arith.constant 0 : index
    %c0_12 = arith.constant 0 : index
    %9 = vector.load %arg5[%c0_11, %c0_12] : memref<128x384xbf16, #tpu.memory_space<vmem>>, vector<128x384xbf16>
    %c0_13 = arith.constant 0 : index
    %c0_14 = arith.constant 0 : index
    %10 = vector.load %arg4[%c0_13, %c0_14] : memref<1x384xf32, #tpu.memory_space<vmem>>, vector<1x384xf32>
    %c0_15 = arith.constant 0 : index
    %c0_16 = arith.constant 0 : index
    %11 = vector.load %arg8[%c0_15, %c0_16] : memref<1x384xf32, #tpu.memory_space<vmem>>, vector<1x384xf32>
    %c0_17 = arith.constant 0 : index
    %c0_18 = arith.constant 0 : index
    %12 = vector.load %arg7[%c0_17, %c0_18] : memref<1x384xf32, #tpu.memory_space<vmem>>, vector<1x384xf32>
    %cst_19 = arith.constant 0.000000e+00 : f32
    %13 = vector.broadcast %cst_19 : f32 to vector<8x128xf32>
    %c0_20 = arith.constant 0 : index
    %c0_21 = arith.constant 0 : index
    %14 = vector.load %arg13[%c0_20, %c0_21] : memref<64x384xf32, #tpu.memory_space<vmem>>, vector<8x384xf32>
    %15 = arith.truncf %13 : vector<8x128xf32> to vector<8x128xbf16>
    %cst_22 = arith.constant dense<0.000000e+00> : vector<8x384xf32>
    %16 = tpu.matmul %15, %7, %cst_22 {dimension_numbers = #tpu.dot_dimension_numbers<[1], [0], [0], [1], [0, 0, 1, 1], [], []>} : vector<8x128xbf16>, vector<128x384xbf16>, vector<8x384xf32> -> vector<8x384xf32>
    %17 = vector.broadcast %10 : vector<1x384xf32> to vector<8x384xf32>
    %18 = arith.addf %16, %17 : vector<8x384xf32>
    %19 = vector.extract_strided_slice %14 {offsets = [0, 0], sizes = [8, 128], strides = [1, 1]} : vector<8x384xf32> to vector<8x128xf32>
    %20 = vector.extract_strided_slice %18 {offsets = [0, 0], sizes = [8, 128], strides = [1, 1]} : vector<8x384xf32> to vector<8x128xf32>
    %21 = arith.addf %19, %20 : vector<8x128xf32>
    %22 = arith.negf %21 : vector<8x128xf32>
    %23 = math.exp %22 : vector<8x128xf32>
    %cst_23 = arith.constant 1.000000e+00 : f32
    %24 = vector.broadcast %cst_23 : f32 to vector<8x128xf32>
    %25 = arith.addf %24, %23 : vector<8x128xf32>
    %26 = arith.divf %24, %25 : vector<8x128xf32>
    %27 = vector.extract_strided_slice %14 {offsets = [0, 128], sizes = [8, 128], strides = [1, 1]} : vector<8x384xf32> to vector<8x128xf32>
    %28 = vector.extract_strided_slice %18 {offsets = [0, 128], sizes = [8, 128], strides = [1, 1]} : vector<8x384xf32> to vector<8x128xf32>
    %29 = arith.addf %27, %28 : vector<8x128xf32>
    %30 = arith.negf %29 : vector<8x128xf32>
    %31 = math.exp %30 : vector<8x128xf32>
    %cst_24 = arith.constant 1.000000e+00 : f32
    %32 = vector.broadcast %cst_24 : f32 to vector<8x128xf32>
    %33 = arith.addf %32, %31 : vector<8x128xf32>
    %34 = arith.divf %32, %33 : vector<8x128xf32>
    %35 = vector.extract_strided_slice %14 {offsets = [0, 256], sizes = [8, 128], strides = [1, 1]} : vector<8x384xf32> to vector<8x128xf32>
    %36 = vector.extract_strided_slice %18 {offsets = [0, 256], sizes = [8, 128], strides = [1, 1]} : vector<8x384xf32> to vector<8x128xf32>
    %37 = arith.mulf %26, %36 : vector<8x128xf32>
    %38 = arith.addf %35, %37 : vector<8x128xf32>
    %39 = math.tanh %38 : vector<8x128xf32>
    %cst_25 = arith.constant 1.000000e+00 : f32
    %40 = vector.broadcast %cst_25 : f32 to vector<8x128xf32>
    %41 = arith.subf %40, %34 : vector<8x128xf32>
    %42 = arith.mulf %41, %39 : vector<8x128xf32>
    %43 = arith.mulf %34, %13 : vector<8x128xf32>
    %44 = arith.addf %42, %43 : vector<8x128xf32>
    %c1_i32 = arith.constant 1 : i32
    %45 = arith.truncf %44 : vector<8x128xf32> to vector<8x128xbf16>
    %cst_26 = arith.constant dense<0.000000e+00> : vector<8x384xf32>
    %46 = tpu.matmul %45, %9, %cst_26 {dimension_numbers = #tpu.dot_dimension_numbers<[1], [0], [0], [1], [0, 0, 1, 1], [], []>} : vector<8x128xbf16>, vector<128x384xbf16>, vector<8x384xf32> -> vector<8x384xf32>
    %47 = vector.broadcast %12 : vector<1x384xf32> to vector<8x384xf32>
    %48 = arith.addf %46, %47 : vector<8x384xf32>
    %49 = arith.truncf %13 : vector<8x128xf32> to vector<8x128xbf16>
    %cst_27 = arith.constant dense<0.000000e+00> : vector<8x384xf32>
    %50 = tpu.matmul %49, %8, %cst_27 {dimension_numbers = #tpu.dot_dimension_numbers<[1], [0], [0], [1], [0, 0, 1, 1], [], []>} : vector<8x128xbf16>, vector<128x384xbf16>, vector<8x384xf32> -> vector<8x384xf32>
    %51 = vector.broadcast %11 : vector<1x384xf32> to vector<8x384xf32>
    %52 = arith.addf %50, %51 : vector<8x384xf32>
    %53 = vector.extract_strided_slice %48 {offsets = [0, 0], sizes = [8, 128], strides = [1, 1]} : vector<8x384xf32> to vector<8x128xf32>
    %54 = vector.extract_strided_slice %52 {offsets = [0, 0], sizes = [8, 128], strides = [1, 1]} : vector<8x384xf32> to vector<8x128xf32>
    %55 = arith.addf %53, %54 : vector<8x128xf32>
    %56 = arith.negf %55 : vector<8x128xf32>
    %57 = math.exp %56 : vector<8x128xf32>
    %cst_28 = arith.constant 1.000000e+00 : f32
    %58 = vector.broadcast %cst_28 : f32 to vector<8x128xf32>
    %59 = arith.addf %58, %57 : vector<8x128xf32>
    %60 = arith.divf %58, %59 : vector<8x128xf32>
    %61 = vector.extract_strided_slice %48 {offsets = [0, 128], sizes = [8, 128], strides = [1, 1]} : vector<8x384xf32> to vector<8x128xf32>
    %62 = vector.extract_strided_slice %52 {offsets = [0, 128], sizes = [8, 128], strides = [1, 1]} : vector<8x384xf32> to vector<8x128xf32>
    %63 = arith.addf %61, %62 : vector<8x128xf32>
    %64 = arith.negf %63 : vector<8x128xf32>
    %65 = math.exp %64 : vector<8x128xf32>
    %cst_29 = arith.constant 1.000000e+00 : f32
    %66 = vector.broadcast %cst_29 : f32 to vector<8x128xf32>
    %67 = arith.addf %66, %65 : vector<8x128xf32>
    %68 = arith.divf %66, %67 : vector<8x128xf32>
    %69 = vector.extract_strided_slice %48 {offsets = [0, 256], sizes = [8, 128], strides = [1, 1]} : vector<8x384xf32> to vector<8x128xf32>
    %70 = vector.extract_strided_slice %52 {offsets = [0, 256], sizes = [8, 128], strides = [1, 1]} : vector<8x384xf32> to vector<8x128xf32>
    %71 = arith.mulf %60, %70 : vector<8x128xf32>
    %72 = arith.addf %69, %71 : vector<8x128xf32>
    %73 = math.tanh %72 : vector<8x128xf32>
    %cst_30 = arith.constant 1.000000e+00 : f32
    %74 = vector.broadcast %cst_30 : f32 to vector<8x128xf32>
    %75 = arith.subf %74, %68 : vector<8x128xf32>
    %76 = arith.mulf %75, %73 : vector<8x128xf32>
    %77 = arith.mulf %68, %13 : vector<8x128xf32>
    %78 = arith.addf %76, %77 : vector<8x128xf32>
    %c8_i32 = arith.constant 8 : i32
    %79 = arith.muli %c1_i32, %c8_i32 : i32
    %80 = tpu.assume_multiple %79, 8 : i32
    %81 = arith.index_cast %80 : i32 to index
    %c0_31 = arith.constant 0 : index
    %82 = vector.load %arg13[%81, %c0_31] : memref<64x384xf32, #tpu.memory_space<vmem>>, vector<8x384xf32>
    %83 = arith.truncf %44 : vector<8x128xf32> to vector<8x128xbf16>
    %cst_32 = arith.constant dense<0.000000e+00> : vector<8x384xf32>
    %84 = tpu.matmul %83, %7, %cst_32 {dimension_numbers = #tpu.dot_dimension_numbers<[1], [0], [0], [1], [0, 0, 1, 1], [], []>} : vector<8x128xbf16>, vector<128x384xbf16>, vector<8x384xf32> -> vector<8x384xf32>
    %85 = vector.broadcast %10 : vector<1x384xf32> to vector<8x384xf32>
    %86 = arith.addf %84, %85 : vector<8x384xf32>
    %87 = vector.extract_strided_slice %82 {offsets = [0, 0], sizes = [8, 128], strides = [1, 1]} : vector<8x384xf32> to vector<8x128xf32>
    %88 = vector.extract_strided_slice %86 {offsets = [0, 0], sizes = [8, 128], strides = [1, 1]} : vector<8x384xf32> to vector<8x128xf32>
    %89 = arith.addf %87, %88 : vector<8x128xf32>
    %90 = arith.negf %89 : vector<8x128xf32>
    %91 = math.exp %90 : vector<8x128xf32>
    %cst_33 = arith.constant 1.000000e+00 : f32
    %92 = vector.broadcast %cst_33 : f32 to vector<8x128xf32>
    %93 = arith.addf %92, %91 : vector<8x128xf32>
    %94 = arith.divf %92, %93 : vector<8x128xf32>
    %95 = vector.extract_strided_slice %82 {offsets = [0, 128], sizes = [8, 128], strides = [1, 1]} : vector<8x384xf32> to vector<8x128xf32>
    %96 = vector.extract_strided_slice %86 {offsets = [0, 128], sizes = [8, 128], strides = [1, 1]} : vector<8x384xf32> to vector<8x128xf32>
    %97 = arith.addf %95, %96 : vector<8x128xf32>
    %98 = arith.negf %97 : vector<8x128xf32>
    %99 = math.exp %98 : vector<8x128xf32>
    %cst_34 = arith.constant 1.000000e+00 : f32
    %100 = vector.broadcast %cst_34 : f32 to vector<8x128xf32>
    %101 = arith.addf %100, %99 : vector<8x128xf32>
    %102 = arith.divf %100, %101 : vector<8x128xf32>
    %103 = vector.extract_strided_slice %82 {offsets = [0, 256], sizes = [8, 128], strides = [1, 1]} : vector<8x384xf32> to vector<8x128xf32>
    %104 = vector.extract_strided_slice %86 {offsets = [0, 256], sizes = [8, 128], strides = [1, 1]} : vector<8x384xf32> to vector<8x128xf32>
    %105 = arith.mulf %94, %104 : vector<8x128xf32>
    %106 = arith.addf %103, %105 : vector<8x128xf32>
    %107 = math.tanh %106 : vector<8x128xf32>
    %cst_35 = arith.constant 1.000000e+00 : f32
    %108 = vector.broadcast %cst_35 : f32 to vector<8x128xf32>
    %109 = arith.subf %108, %102 : vector<8x128xf32>
    %110 = arith.mulf %109, %107 : vector<8x128xf32>
    %111 = arith.mulf %102, %44 : vector<8x128xf32>
    %112 = arith.addf %110, %111 : vector<8x128xf32>
    %c2_i32 = arith.constant 2 : i32
    %113 = arith.truncf %112 : vector<8x128xf32> to vector<8x128xbf16>
    %cst_36 = arith.constant dense<0.000000e+00> : vector<8x384xf32>
    %114 = tpu.matmul %113, %9, %cst_36 {dimension_numbers = #tpu.dot_dimension_numbers<[1], [0], [0], [1], [0, 0, 1, 1], [], []>} : vector<8x128xbf16>, vector<128x384xbf16>, vector<8x384xf32> -> vector<8x384xf32>
    %115 = vector.broadcast %12 : vector<1x384xf32> to vector<8x384xf32>
    %116 = arith.addf %114, %115 : vector<8x384xf32>
    %117 = arith.truncf %78 : vector<8x128xf32> to vector<8x128xbf16>
    %cst_37 = arith.constant dense<0.000000e+00> : vector<8x384xf32>
    %118 = tpu.matmul %117, %8, %cst_37 {dimension_numbers = #tpu.dot_dimension_numbers<[1], [0], [0], [1], [0, 0, 1, 1], [], []>} : vector<8x128xbf16>, vector<128x384xbf16>, vector<8x384xf32> -> vector<8x384xf32>
    %119 = vector.broadcast %11 : vector<1x384xf32> to vector<8x384xf32>
    %120 = arith.addf %118, %119 : vector<8x384xf32>
    %121 = vector.extract_strided_slice %116 {offsets = [0, 0], sizes = [8, 128], strides = [1, 1]} : vector<8x384xf32> to vector<8x128xf32>
    %122 = vector.extract_strided_slice %120 {offsets = [0, 0], sizes = [8, 128], strides = [1, 1]} : vector<8x384xf32> to vector<8x128xf32>
    %123 = arith.addf %121, %122 : vector<8x128xf32>
    %124 = arith.negf %123 : vector<8x128xf32>
    %125 = math.exp %124 : vector<8x128xf32>
    %cst_38 = arith.constant 1.000000e+00 : f32
    %126 = vector.broadcast %cst_38 : f32 to vector<8x128xf32>
    %127 = arith.addf %126, %125 : vector<8x128xf32>
    %128 = arith.divf %126, %127 : vector<8x128xf32>
    %129 = vector.extract_strided_slice %116 {offsets = [0, 128], sizes = [8, 128], strides = [1, 1]} : vector<8x384xf32> to vector<8x128xf32>
    %130 = vector.extract_strided_slice %120 {offsets = [0, 128], sizes = [8, 128], strides = [1, 1]} : vector<8x384xf32> to vector<8x128xf32>
    %131 = arith.addf %129, %130 : vector<8x128xf32>
    %132 = arith.negf %131 : vector<8x128xf32>
    %133 = math.exp %132 : vector<8x128xf32>
    %cst_39 = arith.constant 1.000000e+00 : f32
    %134 = vector.broadcast %cst_39 : f32 to vector<8x128xf32>
    %135 = arith.addf %134, %133 : vector<8x128xf32>
    %136 = arith.divf %134, %135 : vector<8x128xf32>
    %137 = vector.extract_strided_slice %116 {offsets = [0, 256], sizes = [8, 128], strides = [1, 1]} : vector<8x384xf32> to vector<8x128xf32>
    %138 = vector.extract_strided_slice %120 {offsets = [0, 256], sizes = [8, 128], strides = [1, 1]} : vector<8x384xf32> to vector<8x128xf32>
    %139 = arith.mulf %128, %138 : vector<8x128xf32>
    %140 = arith.addf %137, %139 : vector<8x128xf32>
    %141 = math.tanh %140 : vector<8x128xf32>
    %cst_40 = arith.constant 1.000000e+00 : f32
    %142 = vector.broadcast %cst_40 : f32 to vector<8x128xf32>
    %143 = arith.subf %142, %136 : vector<8x128xf32>
    %144 = arith.mulf %143, %141 : vector<8x128xf32>
    %145 = arith.mulf %136, %78 : vector<8x128xf32>
    %146 = arith.addf %144, %145 : vector<8x128xf32>
    %c8_i32_41 = arith.constant 8 : i32
    %147 = arith.muli %c2_i32, %c8_i32_41 : i32
    %148 = tpu.assume_multiple %147, 8 : i32
    %149 = arith.index_cast %148 : i32 to index
    %c0_42 = arith.constant 0 : index
    %150 = vector.load %arg13[%149, %c0_42] : memref<64x384xf32, #tpu.memory_space<vmem>>, vector<8x384xf32>
    %151 = arith.truncf %112 : vector<8x128xf32> to vector<8x128xbf16>
    %cst_43 = arith.constant dense<0.000000e+00> : vector<8x384xf32>
    %152 = tpu.matmul %151, %7, %cst_43 {dimension_numbers = #tpu.dot_dimension_numbers<[1], [0], [0], [1], [0, 0, 1, 1], [], []>} : vector<8x128xbf16>, vector<128x384xbf16>, vector<8x384xf32> -> vector<8x384xf32>
    %153 = vector.broadcast %10 : vector<1x384xf32> to vector<8x384xf32>
    %154 = arith.addf %152, %153 : vector<8x384xf32>
    %155 = vector.extract_strided_slice %150 {offsets = [0, 0], sizes = [8, 128], strides = [1, 1]} : vector<8x384xf32> to vector<8x128xf32>
    %156 = vector.extract_strided_slice %154 {offsets = [0, 0], sizes = [8, 128], strides = [1, 1]} : vector<8x384xf32> to vector<8x128xf32>
    %157 = arith.addf %155, %156 : vector<8x128xf32>
    %158 = arith.negf %157 : vector<8x128xf32>
    %159 = math.exp %158 : vector<8x128xf32>
    %cst_44 = arith.constant 1.000000e+00 : f32
    %160 = vector.broadcast %cst_44 : f32 to vector<8x128xf32>
    %161 = arith.addf %160, %159 : vector<8x128xf32>
    %162 = arith.divf %160, %161 : vector<8x128xf32>
    %163 = vector.extract_strided_slice %150 {offsets = [0, 128], sizes = [8, 128], strides = [1, 1]} : vector<8x384xf32> to vector<8x128xf32>
    %164 = vector.extract_strided_slice %154 {offsets = [0, 128], sizes = [8, 128], strides = [1, 1]} : vector<8x384xf32> to vector<8x128xf32>
    %165 = arith.addf %163, %164 : vector<8x128xf32>
    %166 = arith.negf %165 : vector<8x128xf32>
    %167 = math.exp %166 : vector<8x128xf32>
    %cst_45 = arith.constant 1.000000e+00 : f32
    %168 = vector.broadcast %cst_45 : f32 to vector<8x128xf32>
    %169 = arith.addf %168, %167 : vector<8x128xf32>
    %170 = arith.divf %168, %169 : vector<8x128xf32>
    %171 = vector.extract_strided_slice %150 {offsets = [0, 256], sizes = [8, 128], strides = [1, 1]} : vector<8x384xf32> to vector<8x128xf32>
    %172 = vector.extract_strided_slice %154 {offsets = [0, 256], sizes = [8, 128], strides = [1, 1]} : vector<8x384xf32> to vector<8x128xf32>
    %173 = arith.mulf %162, %172 : vector<8x128xf32>
    %174 = arith.addf %171, %173 : vector<8x128xf32>
    %175 = math.tanh %174 : vector<8x128xf32>
    %cst_46 = arith.constant 1.000000e+00 : f32
    %176 = vector.broadcast %cst_46 : f32 to vector<8x128xf32>
    %177 = arith.subf %176, %170 : vector<8x128xf32>
    %178 = arith.mulf %177, %175 : vector<8x128xf32>
    %179 = arith.mulf %170, %112 : vector<8x128xf32>
    %180 = arith.addf %178, %179 : vector<8x128xf32>
    %c3_i32 = arith.constant 3 : i32
    %181 = arith.truncf %180 : vector<8x128xf32> to vector<8x128xbf16>
    %cst_47 = arith.constant dense<0.000000e+00> : vector<8x384xf32>
    %182 = tpu.matmul %181, %9, %cst_47 {dimension_numbers = #tpu.dot_dimension_numbers<[1], [0], [0], [1], [0, 0, 1, 1], [], []>} : vector<8x128xbf16>, vector<128x384xbf16>, vector<8x384xf32> -> vector<8x384xf32>
    %183 = vector.broadcast %12 : vector<1x384xf32> to vector<8x384xf32>
    %184 = arith.addf %182, %183 : vector<8x384xf32>
    %185 = arith.truncf %146 : vector<8x128xf32> to vector<8x128xbf16>
    %cst_48 = arith.constant dense<0.000000e+00> : vector<8x384xf32>
    %186 = tpu.matmul %185, %8, %cst_48 {dimension_numbers = #tpu.dot_dimension_numbers<[1], [0], [0], [1], [0, 0, 1, 1], [], []>} : vector<8x128xbf16>, vector<128x384xbf16>, vector<8x384xf32> -> vector<8x384xf32>
    %187 = vector.broadcast %11 : vector<1x384xf32> to vector<8x384xf32>
    %188 = arith.addf %186, %187 : vector<8x384xf32>
    %189 = vector.extract_strided_slice %184 {offsets = [0, 0], sizes = [8, 128], strides = [1, 1]} : vector<8x384xf32> to vector<8x128xf32>
    %190 = vector.extract_strided_slice %188 {offsets = [0, 0], sizes = [8, 128], strides = [1, 1]} : vector<8x384xf32> to vector<8x128xf32>
    %191 = arith.addf %189, %190 : vector<8x128xf32>
    %192 = arith.negf %191 : vector<8x128xf32>
    %193 = math.exp %192 : vector<8x128xf32>
    %cst_49 = arith.constant 1.000000e+00 : f32
    %194 = vector.broadcast %cst_49 : f32 to vector<8x128xf32>
    %195 = arith.addf %194, %193 : vector<8x128xf32>
    %196 = arith.divf %194, %195 : vector<8x128xf32>
    %197 = vector.extract_strided_slice %184 {offsets = [0, 128], sizes = [8, 128], strides = [1, 1]} : vector<8x384xf32> to vector<8x128xf32>
    %198 = vector.extract_strided_slice %188 {offsets = [0, 128], sizes = [8, 128], strides = [1, 1]} : vector<8x384xf32> to vector<8x128xf32>
    %199 = arith.addf %197, %198 : vector<8x128xf32>
    %200 = arith.negf %199 : vector<8x128xf32>
    %201 = math.exp %200 : vector<8x128xf32>
    %cst_50 = arith.constant 1.000000e+00 : f32
    %202 = vector.broadcast %cst_50 : f32 to vector<8x128xf32>
    %203 = arith.addf %202, %201 : vector<8x128xf32>
    %204 = arith.divf %202, %203 : vector<8x128xf32>
    %205 = vector.extract_strided_slice %184 {offsets = [0, 256], sizes = [8, 128], strides = [1, 1]} : vector<8x384xf32> to vector<8x128xf32>
    %206 = vector.extract_strided_slice %188 {offsets = [0, 256], sizes = [8, 128], strides = [1, 1]} : vector<8x384xf32> to vector<8x128xf32>
    %207 = arith.mulf %196, %206 : vector<8x128xf32>
    %208 = arith.addf %205, %207 : vector<8x128xf32>
    %209 = math.tanh %208 : vector<8x128xf32>
    %cst_51 = arith.constant 1.000000e+00 : f32
    %210 = vector.broadcast %cst_51 : f32 to vector<8x128xf32>
    %211 = arith.subf %210, %204 : vector<8x128xf32>
    %212 = arith.mulf %211, %209 : vector<8x128xf32>
    %213 = arith.mulf %204, %146 : vector<8x128xf32>
    %214 = arith.addf %212, %213 : vector<8x128xf32>
    %c8_i32_52 = arith.constant 8 : i32
    %215 = arith.muli %c3_i32, %c8_i32_52 : i32
    %216 = tpu.assume_multiple %215, 8 : i32
    %217 = arith.index_cast %216 : i32 to index
    %c0_53 = arith.constant 0 : index
    %218 = vector.load %arg13[%217, %c0_53] : memref<64x384xf32, #tpu.memory_space<vmem>>, vector<8x384xf32>
    %219 = arith.truncf %180 : vector<8x128xf32> to vector<8x128xbf16>
    %cst_54 = arith.constant dense<0.000000e+00> : vector<8x384xf32>
    %220 = tpu.matmul %219, %7, %cst_54 {dimension_numbers = #tpu.dot_dimension_numbers<[1], [0], [0], [1], [0, 0, 1, 1], [], []>} : vector<8x128xbf16>, vector<128x384xbf16>, vector<8x384xf32> -> vector<8x384xf32>
    %221 = vector.broadcast %10 : vector<1x384xf32> to vector<8x384xf32>
    %222 = arith.addf %220, %221 : vector<8x384xf32>
    %223 = vector.extract_strided_slice %218 {offsets = [0, 0], sizes = [8, 128], strides = [1, 1]} : vector<8x384xf32> to vector<8x128xf32>
    %224 = vector.extract_strided_slice %222 {offsets = [0, 0], sizes = [8, 128], strides = [1, 1]} : vector<8x384xf32> to vector<8x128xf32>
    %225 = arith.addf %223, %224 : vector<8x128xf32>
    %226 = arith.negf %225 : vector<8x128xf32>
    %227 = math.exp %226 : vector<8x128xf32>
    %cst_55 = arith.constant 1.000000e+00 : f32
    %228 = vector.broadcast %cst_55 : f32 to vector<8x128xf32>
    %229 = arith.addf %228, %227 : vector<8x128xf32>
    %230 = arith.divf %228, %229 : vector<8x128xf32>
    %231 = vector.extract_strided_slice %218 {offsets = [0, 128], sizes = [8, 128], strides = [1, 1]} : vector<8x384xf32> to vector<8x128xf32>
    %232 = vector.extract_strided_slice %222 {offsets = [0, 128], sizes = [8, 128], strides = [1, 1]} : vector<8x384xf32> to vector<8x128xf32>
    %233 = arith.addf %231, %232 : vector<8x128xf32>
    %234 = arith.negf %233 : vector<8x128xf32>
    %235 = math.exp %234 : vector<8x128xf32>
    %cst_56 = arith.constant 1.000000e+00 : f32
    %236 = vector.broadcast %cst_56 : f32 to vector<8x128xf32>
    %237 = arith.addf %236, %235 : vector<8x128xf32>
    %238 = arith.divf %236, %237 : vector<8x128xf32>
    %239 = vector.extract_strided_slice %218 {offsets = [0, 256], sizes = [8, 128], strides = [1, 1]} : vector<8x384xf32> to vector<8x128xf32>
    %240 = vector.extract_strided_slice %222 {offsets = [0, 256], sizes = [8, 128], strides = [1, 1]} : vector<8x384xf32> to vector<8x128xf32>
    %241 = arith.mulf %230, %240 : vector<8x128xf32>
    %242 = arith.addf %239, %241 : vector<8x128xf32>
    %243 = math.tanh %242 : vector<8x128xf32>
    %cst_57 = arith.constant 1.000000e+00 : f32
    %244 = vector.broadcast %cst_57 : f32 to vector<8x128xf32>
    %245 = arith.subf %244, %238 : vector<8x128xf32>
    %246 = arith.mulf %245, %243 : vector<8x128xf32>
    %247 = arith.mulf %238, %180 : vector<8x128xf32>
    %248 = arith.addf %246, %247 : vector<8x128xf32>
    %c4_i32 = arith.constant 4 : i32
    %249 = arith.truncf %248 : vector<8x128xf32> to vector<8x128xbf16>
    %cst_58 = arith.constant dense<0.000000e+00> : vector<8x384xf32>
    %250 = tpu.matmul %249, %9, %cst_58 {dimension_numbers = #tpu.dot_dimension_numbers<[1], [0], [0], [1], [0, 0, 1, 1], [], []>} : vector<8x128xbf16>, vector<128x384xbf16>, vector<8x384xf32> -> vector<8x384xf32>
    %251 = vector.broadcast %12 : vector<1x384xf32> to vector<8x384xf32>
    %252 = arith.addf %250, %251 : vector<8x384xf32>
    %253 = arith.truncf %214 : vector<8x128xf32> to vector<8x128xbf16>
    %cst_59 = arith.constant dense<0.000000e+00> : vector<8x384xf32>
    %254 = tpu.matmul %253, %8, %cst_59 {dimension_numbers = #tpu.dot_dimension_numbers<[1], [0], [0], [1], [0, 0, 1, 1], [], []>} : vector<8x128xbf16>, vector<128x384xbf16>, vector<8x384xf32> -> vector<8x384xf32>
    %255 = vector.broadcast %11 : vector<1x384xf32> to vector<8x384xf32>
    %256 = arith.addf %254, %255 : vector<8x384xf32>
    %257 = vector.extract_strided_slice %252 {offsets = [0, 0], sizes = [8, 128], strides = [1, 1]} : vector<8x384xf32> to vector<8x128xf32>
    %258 = vector.extract_strided_slice %256 {offsets = [0, 0], sizes = [8, 128], strides = [1, 1]} : vector<8x384xf32> to vector<8x128xf32>
    %259 = arith.addf %257, %258 : vector<8x128xf32>
    %260 = arith.negf %259 : vector<8x128xf32>
    %261 = math.exp %260 : vector<8x128xf32>
    %cst_60 = arith.constant 1.000000e+00 : f32
    %262 = vector.broadcast %cst_60 : f32 to vector<8x128xf32>
    %263 = arith.addf %262, %261 : vector<8x128xf32>
    %264 = arith.divf %262, %263 : vector<8x128xf32>
    %265 = vector.extract_strided_slice %252 {offsets = [0, 128], sizes = [8, 128], strides = [1, 1]} : vector<8x384xf32> to vector<8x128xf32>
    %266 = vector.extract_strided_slice %256 {offsets = [0, 128], sizes = [8, 128], strides = [1, 1]} : vector<8x384xf32> to vector<8x128xf32>
    %267 = arith.addf %265, %266 : vector<8x128xf32>
    %268 = arith.negf %267 : vector<8x128xf32>
    %269 = math.exp %268 : vector<8x128xf32>
    %cst_61 = arith.constant 1.000000e+00 : f32
    %270 = vector.broadcast %cst_61 : f32 to vector<8x128xf32>
    %271 = arith.addf %270, %269 : vector<8x128xf32>
    %272 = arith.divf %270, %271 : vector<8x128xf32>
    %273 = vector.extract_strided_slice %252 {offsets = [0, 256], sizes = [8, 128], strides = [1, 1]} : vector<8x384xf32> to vector<8x128xf32>
    %274 = vector.extract_strided_slice %256 {offsets = [0, 256], sizes = [8, 128], strides = [1, 1]} : vector<8x384xf32> to vector<8x128xf32>
    %275 = arith.mulf %264, %274 : vector<8x128xf32>
    %276 = arith.addf %273, %275 : vector<8x128xf32>
    %277 = math.tanh %276 : vector<8x128xf32>
    %cst_62 = arith.constant 1.000000e+00 : f32
    %278 = vector.broadcast %cst_62 : f32 to vector<8x128xf32>
    %279 = arith.subf %278, %272 : vector<8x128xf32>
    %280 = arith.mulf %279, %277 : vector<8x128xf32>
    %281 = arith.mulf %272, %214 : vector<8x128xf32>
    %282 = arith.addf %280, %281 : vector<8x128xf32>
    %c8_i32_63 = arith.constant 8 : i32
    %283 = arith.muli %c4_i32, %c8_i32_63 : i32
    %284 = tpu.assume_multiple %283, 8 : i32
    %285 = arith.index_cast %284 : i32 to index
    %c0_64 = arith.constant 0 : index
    %286 = vector.load %arg13[%285, %c0_64] : memref<64x384xf32, #tpu.memory_space<vmem>>, vector<8x384xf32>
    %287 = arith.truncf %248 : vector<8x128xf32> to vector<8x128xbf16>
    %cst_65 = arith.constant dense<0.000000e+00> : vector<8x384xf32>
    %288 = tpu.matmul %287, %7, %cst_65 {dimension_numbers = #tpu.dot_dimension_numbers<[1], [0], [0], [1], [0, 0, 1, 1], [], []>} : vector<8x128xbf16>, vector<128x384xbf16>, vector<8x384xf32> -> vector<8x384xf32>
    %289 = vector.broadcast %10 : vector<1x384xf32> to vector<8x384xf32>
    %290 = arith.addf %288, %289 : vector<8x384xf32>
    %291 = vector.extract_strided_slice %286 {offsets = [0, 0], sizes = [8, 128], strides = [1, 1]} : vector<8x384xf32> to vector<8x128xf32>
    %292 = vector.extract_strided_slice %290 {offsets = [0, 0], sizes = [8, 128], strides = [1, 1]} : vector<8x384xf32> to vector<8x128xf32>
    %293 = arith.addf %291, %292 : vector<8x128xf32>
    %294 = arith.negf %293 : vector<8x128xf32>
    %295 = math.exp %294 : vector<8x128xf32>
    %cst_66 = arith.constant 1.000000e+00 : f32
    %296 = vector.broadcast %cst_66 : f32 to vector<8x128xf32>
    %297 = arith.addf %296, %295 : vector<8x128xf32>
    %298 = arith.divf %296, %297 : vector<8x128xf32>
    %299 = vector.extract_strided_slice %286 {offsets = [0, 128], sizes = [8, 128], strides = [1, 1]} : vector<8x384xf32> to vector<8x128xf32>
    %300 = vector.extract_strided_slice %290 {offsets = [0, 128], sizes = [8, 128], strides = [1, 1]} : vector<8x384xf32> to vector<8x128xf32>
    %301 = arith.addf %299, %300 : vector<8x128xf32>
    %302 = arith.negf %301 : vector<8x128xf32>
    %303 = math.exp %302 : vector<8x128xf32>
    %cst_67 = arith.constant 1.000000e+00 : f32
    %304 = vector.broadcast %cst_67 : f32 to vector<8x128xf32>
    %305 = arith.addf %304, %303 : vector<8x128xf32>
    %306 = arith.divf %304, %305 : vector<8x128xf32>
    %307 = vector.extract_strided_slice %286 {offsets = [0, 256], sizes = [8, 128], strides = [1, 1]} : vector<8x384xf32> to vector<8x128xf32>
    %308 = vector.extract_strided_slice %290 {offsets = [0, 256], sizes = [8, 128], strides = [1, 1]} : vector<8x384xf32> to vector<8x128xf32>
    %309 = arith.mulf %298, %308 : vector<8x128xf32>
    %310 = arith.addf %307, %309 : vector<8x128xf32>
    %311 = math.tanh %310 : vector<8x128xf32>
    %cst_68 = arith.constant 1.000000e+00 : f32
    %312 = vector.broadcast %cst_68 : f32 to vector<8x128xf32>
    %313 = arith.subf %312, %306 : vector<8x128xf32>
    %314 = arith.mulf %313, %311 : vector<8x128xf32>
    %315 = arith.mulf %306, %248 : vector<8x128xf32>
    %316 = arith.addf %314, %315 : vector<8x128xf32>
    %c5_i32 = arith.constant 5 : i32
    %317 = arith.truncf %316 : vector<8x128xf32> to vector<8x128xbf16>
    %cst_69 = arith.constant dense<0.000000e+00> : vector<8x384xf32>
    %318 = tpu.matmul %317, %9, %cst_69 {dimension_numbers = #tpu.dot_dimension_numbers<[1], [0], [0], [1], [0, 0, 1, 1], [], []>} : vector<8x128xbf16>, vector<128x384xbf16>, vector<8x384xf32> -> vector<8x384xf32>
    %319 = vector.broadcast %12 : vector<1x384xf32> to vector<8x384xf32>
    %320 = arith.addf %318, %319 : vector<8x384xf32>
    %321 = arith.truncf %282 : vector<8x128xf32> to vector<8x128xbf16>
    %cst_70 = arith.constant dense<0.000000e+00> : vector<8x384xf32>
    %322 = tpu.matmul %321, %8, %cst_70 {dimension_numbers = #tpu.dot_dimension_numbers<[1], [0], [0], [1], [0, 0, 1, 1], [], []>} : vector<8x128xbf16>, vector<128x384xbf16>, vector<8x384xf32> -> vector<8x384xf32>
    %323 = vector.broadcast %11 : vector<1x384xf32> to vector<8x384xf32>
    %324 = arith.addf %322, %323 : vector<8x384xf32>
    %325 = vector.extract_strided_slice %320 {offsets = [0, 0], sizes = [8, 128], strides = [1, 1]} : vector<8x384xf32> to vector<8x128xf32>
    %326 = vector.extract_strided_slice %324 {offsets = [0, 0], sizes = [8, 128], strides = [1, 1]} : vector<8x384xf32> to vector<8x128xf32>
    %327 = arith.addf %325, %326 : vector<8x128xf32>
    %328 = arith.negf %327 : vector<8x128xf32>
    %329 = math.exp %328 : vector<8x128xf32>
    %cst_71 = arith.constant 1.000000e+00 : f32
    %330 = vector.broadcast %cst_71 : f32 to vector<8x128xf32>
    %331 = arith.addf %330, %329 : vector<8x128xf32>
    %332 = arith.divf %330, %331 : vector<8x128xf32>
    %333 = vector.extract_strided_slice %320 {offsets = [0, 128], sizes = [8, 128], strides = [1, 1]} : vector<8x384xf32> to vector<8x128xf32>
    %334 = vector.extract_strided_slice %324 {offsets = [0, 128], sizes = [8, 128], strides = [1, 1]} : vector<8x384xf32> to vector<8x128xf32>
    %335 = arith.addf %333, %334 : vector<8x128xf32>
    %336 = arith.negf %335 : vector<8x128xf32>
    %337 = math.exp %336 : vector<8x128xf32>
    %cst_72 = arith.constant 1.000000e+00 : f32
    %338 = vector.broadcast %cst_72 : f32 to vector<8x128xf32>
    %339 = arith.addf %338, %337 : vector<8x128xf32>
    %340 = arith.divf %338, %339 : vector<8x128xf32>
    %341 = vector.extract_strided_slice %320 {offsets = [0, 256], sizes = [8, 128], strides = [1, 1]} : vector<8x384xf32> to vector<8x128xf32>
    %342 = vector.extract_strided_slice %324 {offsets = [0, 256], sizes = [8, 128], strides = [1, 1]} : vector<8x384xf32> to vector<8x128xf32>
    %343 = arith.mulf %332, %342 : vector<8x128xf32>
    %344 = arith.addf %341, %343 : vector<8x128xf32>
    %345 = math.tanh %344 : vector<8x128xf32>
    %cst_73 = arith.constant 1.000000e+00 : f32
    %346 = vector.broadcast %cst_73 : f32 to vector<8x128xf32>
    %347 = arith.subf %346, %340 : vector<8x128xf32>
    %348 = arith.mulf %347, %345 : vector<8x128xf32>
    %349 = arith.mulf %340, %282 : vector<8x128xf32>
    %350 = arith.addf %348, %349 : vector<8x128xf32>
    %c8_i32_74 = arith.constant 8 : i32
    %351 = arith.muli %c5_i32, %c8_i32_74 : i32
    %352 = tpu.assume_multiple %351, 8 : i32
    %353 = arith.index_cast %352 : i32 to index
    %c0_75 = arith.constant 0 : index
    %354 = vector.load %arg13[%353, %c0_75] : memref<64x384xf32, #tpu.memory_space<vmem>>, vector<8x384xf32>
    %355 = arith.truncf %316 : vector<8x128xf32> to vector<8x128xbf16>
    %cst_76 = arith.constant dense<0.000000e+00> : vector<8x384xf32>
    %356 = tpu.matmul %355, %7, %cst_76 {dimension_numbers = #tpu.dot_dimension_numbers<[1], [0], [0], [1], [0, 0, 1, 1], [], []>} : vector<8x128xbf16>, vector<128x384xbf16>, vector<8x384xf32> -> vector<8x384xf32>
    %357 = vector.broadcast %10 : vector<1x384xf32> to vector<8x384xf32>
    %358 = arith.addf %356, %357 : vector<8x384xf32>
    %359 = vector.extract_strided_slice %354 {offsets = [0, 0], sizes = [8, 128], strides = [1, 1]} : vector<8x384xf32> to vector<8x128xf32>
    %360 = vector.extract_strided_slice %358 {offsets = [0, 0], sizes = [8, 128], strides = [1, 1]} : vector<8x384xf32> to vector<8x128xf32>
    %361 = arith.addf %359, %360 : vector<8x128xf32>
    %362 = arith.negf %361 : vector<8x128xf32>
    %363 = math.exp %362 : vector<8x128xf32>
    %cst_77 = arith.constant 1.000000e+00 : f32
    %364 = vector.broadcast %cst_77 : f32 to vector<8x128xf32>
    %365 = arith.addf %364, %363 : vector<8x128xf32>
    %366 = arith.divf %364, %365 : vector<8x128xf32>
    %367 = vector.extract_strided_slice %354 {offsets = [0, 128], sizes = [8, 128], strides = [1, 1]} : vector<8x384xf32> to vector<8x128xf32>
    %368 = vector.extract_strided_slice %358 {offsets = [0, 128], sizes = [8, 128], strides = [1, 1]} : vector<8x384xf32> to vector<8x128xf32>
    %369 = arith.addf %367, %368 : vector<8x128xf32>
    %370 = arith.negf %369 : vector<8x128xf32>
    %371 = math.exp %370 : vector<8x128xf32>
    %cst_78 = arith.constant 1.000000e+00 : f32
    %372 = vector.broadcast %cst_78 : f32 to vector<8x128xf32>
    %373 = arith.addf %372, %371 : vector<8x128xf32>
    %374 = arith.divf %372, %373 : vector<8x128xf32>
    %375 = vector.extract_strided_slice %354 {offsets = [0, 256], sizes = [8, 128], strides = [1, 1]} : vector<8x384xf32> to vector<8x128xf32>
    %376 = vector.extract_strided_slice %358 {offsets = [0, 256], sizes = [8, 128], strides = [1, 1]} : vector<8x384xf32> to vector<8x128xf32>
    %377 = arith.mulf %366, %376 : vector<8x128xf32>
    %378 = arith.addf %375, %377 : vector<8x128xf32>
    %379 = math.tanh %378 : vector<8x128xf32>
    %cst_79 = arith.constant 1.000000e+00 : f32
    %380 = vector.broadcast %cst_79 : f32 to vector<8x128xf32>
    %381 = arith.subf %380, %374 : vector<8x128xf32>
    %382 = arith.mulf %381, %379 : vector<8x128xf32>
    %383 = arith.mulf %374, %316 : vector<8x128xf32>
    %384 = arith.addf %382, %383 : vector<8x128xf32>
    %c6_i32 = arith.constant 6 : i32
    %385 = arith.truncf %384 : vector<8x128xf32> to vector<8x128xbf16>
    %cst_80 = arith.constant dense<0.000000e+00> : vector<8x384xf32>
    %386 = tpu.matmul %385, %9, %cst_80 {dimension_numbers = #tpu.dot_dimension_numbers<[1], [0], [0], [1], [0, 0, 1, 1], [], []>} : vector<8x128xbf16>, vector<128x384xbf16>, vector<8x384xf32> -> vector<8x384xf32>
    %387 = vector.broadcast %12 : vector<1x384xf32> to vector<8x384xf32>
    %388 = arith.addf %386, %387 : vector<8x384xf32>
    %389 = arith.truncf %350 : vector<8x128xf32> to vector<8x128xbf16>
    %cst_81 = arith.constant dense<0.000000e+00> : vector<8x384xf32>
    %390 = tpu.matmul %389, %8, %cst_81 {dimension_numbers = #tpu.dot_dimension_numbers<[1], [0], [0], [1], [0, 0, 1, 1], [], []>} : vector<8x128xbf16>, vector<128x384xbf16>, vector<8x384xf32> -> vector<8x384xf32>
    %391 = vector.broadcast %11 : vector<1x384xf32> to vector<8x384xf32>
    %392 = arith.addf %390, %391 : vector<8x384xf32>
    %393 = vector.extract_strided_slice %388 {offsets = [0, 0], sizes = [8, 128], strides = [1, 1]} : vector<8x384xf32> to vector<8x128xf32>
    %394 = vector.extract_strided_slice %392 {offsets = [0, 0], sizes = [8, 128], strides = [1, 1]} : vector<8x384xf32> to vector<8x128xf32>
    %395 = arith.addf %393, %394 : vector<8x128xf32>
    %396 = arith.negf %395 : vector<8x128xf32>
    %397 = math.exp %396 : vector<8x128xf32>
    %cst_82 = arith.constant 1.000000e+00 : f32
    %398 = vector.broadcast %cst_82 : f32 to vector<8x128xf32>
    %399 = arith.addf %398, %397 : vector<8x128xf32>
    %400 = arith.divf %398, %399 : vector<8x128xf32>
    %401 = vector.extract_strided_slice %388 {offsets = [0, 128], sizes = [8, 128], strides = [1, 1]} : vector<8x384xf32> to vector<8x128xf32>
    %402 = vector.extract_strided_slice %392 {offsets = [0, 128], sizes = [8, 128], strides = [1, 1]} : vector<8x384xf32> to vector<8x128xf32>
    %403 = arith.addf %401, %402 : vector<8x128xf32>
    %404 = arith.negf %403 : vector<8x128xf32>
    %405 = math.exp %404 : vector<8x128xf32>
    %cst_83 = arith.constant 1.000000e+00 : f32
    %406 = vector.broadcast %cst_83 : f32 to vector<8x128xf32>
    %407 = arith.addf %406, %405 : vector<8x128xf32>
    %408 = arith.divf %406, %407 : vector<8x128xf32>
    %409 = vector.extract_strided_slice %388 {offsets = [0, 256], sizes = [8, 128], strides = [1, 1]} : vector<8x384xf32> to vector<8x128xf32>
    %410 = vector.extract_strided_slice %392 {offsets = [0, 256], sizes = [8, 128], strides = [1, 1]} : vector<8x384xf32> to vector<8x128xf32>
    %411 = arith.mulf %400, %410 : vector<8x128xf32>
    %412 = arith.addf %409, %411 : vector<8x128xf32>
    %413 = math.tanh %412 : vector<8x128xf32>
    %cst_84 = arith.constant 1.000000e+00 : f32
    %414 = vector.broadcast %cst_84 : f32 to vector<8x128xf32>
    %415 = arith.subf %414, %408 : vector<8x128xf32>
    %416 = arith.mulf %415, %413 : vector<8x128xf32>
    %417 = arith.mulf %408, %350 : vector<8x128xf32>
    %418 = arith.addf %416, %417 : vector<8x128xf32>
    %c8_i32_85 = arith.constant 8 : i32
    %419 = arith.muli %c6_i32, %c8_i32_85 : i32
    %420 = tpu.assume_multiple %419, 8 : i32
    %421 = arith.index_cast %420 : i32 to index
    %c0_86 = arith.constant 0 : index
    %422 = vector.load %arg13[%421, %c0_86] : memref<64x384xf32, #tpu.memory_space<vmem>>, vector<8x384xf32>
    %423 = arith.truncf %384 : vector<8x128xf32> to vector<8x128xbf16>
    %cst_87 = arith.constant dense<0.000000e+00> : vector<8x384xf32>
    %424 = tpu.matmul %423, %7, %cst_87 {dimension_numbers = #tpu.dot_dimension_numbers<[1], [0], [0], [1], [0, 0, 1, 1], [], []>} : vector<8x128xbf16>, vector<128x384xbf16>, vector<8x384xf32> -> vector<8x384xf32>
    %425 = vector.broadcast %10 : vector<1x384xf32> to vector<8x384xf32>
    %426 = arith.addf %424, %425 : vector<8x384xf32>
    %427 = vector.extract_strided_slice %422 {offsets = [0, 0], sizes = [8, 128], strides = [1, 1]} : vector<8x384xf32> to vector<8x128xf32>
    %428 = vector.extract_strided_slice %426 {offsets = [0, 0], sizes = [8, 128], strides = [1, 1]} : vector<8x384xf32> to vector<8x128xf32>
    %429 = arith.addf %427, %428 : vector<8x128xf32>
    %430 = arith.negf %429 : vector<8x128xf32>
    %431 = math.exp %430 : vector<8x128xf32>
    %cst_88 = arith.constant 1.000000e+00 : f32
    %432 = vector.broadcast %cst_88 : f32 to vector<8x128xf32>
    %433 = arith.addf %432, %431 : vector<8x128xf32>
    %434 = arith.divf %432, %433 : vector<8x128xf32>
    %435 = vector.extract_strided_slice %422 {offsets = [0, 128], sizes = [8, 128], strides = [1, 1]} : vector<8x384xf32> to vector<8x128xf32>
    %436 = vector.extract_strided_slice %426 {offsets = [0, 128], sizes = [8, 128], strides = [1, 1]} : vector<8x384xf32> to vector<8x128xf32>
    %437 = arith.addf %435, %436 : vector<8x128xf32>
    %438 = arith.negf %437 : vector<8x128xf32>
    %439 = math.exp %438 : vector<8x128xf32>
    %cst_89 = arith.constant 1.000000e+00 : f32
    %440 = vector.broadcast %cst_89 : f32 to vector<8x128xf32>
    %441 = arith.addf %440, %439 : vector<8x128xf32>
    %442 = arith.divf %440, %441 : vector<8x128xf32>
    %443 = vector.extract_strided_slice %422 {offsets = [0, 256], sizes = [8, 128], strides = [1, 1]} : vector<8x384xf32> to vector<8x128xf32>
    %444 = vector.extract_strided_slice %426 {offsets = [0, 256], sizes = [8, 128], strides = [1, 1]} : vector<8x384xf32> to vector<8x128xf32>
    %445 = arith.mulf %434, %444 : vector<8x128xf32>
    %446 = arith.addf %443, %445 : vector<8x128xf32>
    %447 = math.tanh %446 : vector<8x128xf32>
    %cst_90 = arith.constant 1.000000e+00 : f32
    %448 = vector.broadcast %cst_90 : f32 to vector<8x128xf32>
    %449 = arith.subf %448, %442 : vector<8x128xf32>
    %450 = arith.mulf %449, %447 : vector<8x128xf32>
    %451 = arith.mulf %442, %384 : vector<8x128xf32>
    %452 = arith.addf %450, %451 : vector<8x128xf32>
    %c7_i32 = arith.constant 7 : i32
    %453 = arith.truncf %452 : vector<8x128xf32> to vector<8x128xbf16>
    %cst_91 = arith.constant dense<0.000000e+00> : vector<8x384xf32>
    %454 = tpu.matmul %453, %9, %cst_91 {dimension_numbers = #tpu.dot_dimension_numbers<[1], [0], [0], [1], [0, 0, 1, 1], [], []>} : vector<8x128xbf16>, vector<128x384xbf16>, vector<8x384xf32> -> vector<8x384xf32>
    %455 = vector.broadcast %12 : vector<1x384xf32> to vector<8x384xf32>
    %456 = arith.addf %454, %455 : vector<8x384xf32>
    %457 = arith.truncf %418 : vector<8x128xf32> to vector<8x128xbf16>
    %cst_92 = arith.constant dense<0.000000e+00> : vector<8x384xf32>
    %458 = tpu.matmul %457, %8, %cst_92 {dimension_numbers = #tpu.dot_dimension_numbers<[1], [0], [0], [1], [0, 0, 1, 1], [], []>} : vector<8x128xbf16>, vector<128x384xbf16>, vector<8x384xf32> -> vector<8x384xf32>
    %459 = vector.broadcast %11 : vector<1x384xf32> to vector<8x384xf32>
    %460 = arith.addf %458, %459 : vector<8x384xf32>
    %461 = vector.extract_strided_slice %456 {offsets = [0, 0], sizes = [8, 128], strides = [1, 1]} : vector<8x384xf32> to vector<8x128xf32>
    %462 = vector.extract_strided_slice %460 {offsets = [0, 0], sizes = [8, 128], strides = [1, 1]} : vector<8x384xf32> to vector<8x128xf32>
    %463 = arith.addf %461, %462 : vector<8x128xf32>
    %464 = arith.negf %463 : vector<8x128xf32>
    %465 = math.exp %464 : vector<8x128xf32>
    %cst_93 = arith.constant 1.000000e+00 : f32
    %466 = vector.broadcast %cst_93 : f32 to vector<8x128xf32>
    %467 = arith.addf %466, %465 : vector<8x128xf32>
    %468 = arith.divf %466, %467 : vector<8x128xf32>
    %469 = vector.extract_strided_slice %456 {offsets = [0, 128], sizes = [8, 128], strides = [1, 1]} : vector<8x384xf32> to vector<8x128xf32>
    %470 = vector.extract_strided_slice %460 {offsets = [0, 128], sizes = [8, 128], strides = [1, 1]} : vector<8x384xf32> to vector<8x128xf32>
    %471 = arith.addf %469, %470 : vector<8x128xf32>
    %472 = arith.negf %471 : vector<8x128xf32>
    %473 = math.exp %472 : vector<8x128xf32>
    %cst_94 = arith.constant 1.000000e+00 : f32
    %474 = vector.broadcast %cst_94 : f32 to vector<8x128xf32>
    %475 = arith.addf %474, %473 : vector<8x128xf32>
    %476 = arith.divf %474, %475 : vector<8x128xf32>
    %477 = vector.extract_strided_slice %456 {offsets = [0, 256], sizes = [8, 128], strides = [1, 1]} : vector<8x384xf32> to vector<8x128xf32>
    %478 = vector.extract_strided_slice %460 {offsets = [0, 256], sizes = [8, 128], strides = [1, 1]} : vector<8x384xf32> to vector<8x128xf32>
    %479 = arith.mulf %468, %478 : vector<8x128xf32>
    %480 = arith.addf %477, %479 : vector<8x128xf32>
    %481 = math.tanh %480 : vector<8x128xf32>
    %cst_95 = arith.constant 1.000000e+00 : f32
    %482 = vector.broadcast %cst_95 : f32 to vector<8x128xf32>
    %483 = arith.subf %482, %476 : vector<8x128xf32>
    %484 = arith.mulf %483, %481 : vector<8x128xf32>
    %485 = arith.mulf %476, %418 : vector<8x128xf32>
    %486 = arith.addf %484, %485 : vector<8x128xf32>
    %c8_i32_96 = arith.constant 8 : i32
    %487 = arith.muli %c7_i32, %c8_i32_96 : i32
    %488 = tpu.assume_multiple %487, 8 : i32
    %489 = arith.index_cast %488 : i32 to index
    %c0_97 = arith.constant 0 : index
    %490 = vector.load %arg13[%489, %c0_97] : memref<64x384xf32, #tpu.memory_space<vmem>>, vector<8x384xf32>
    %491 = arith.truncf %452 : vector<8x128xf32> to vector<8x128xbf16>
    %cst_98 = arith.constant dense<0.000000e+00> : vector<8x384xf32>
    %492 = tpu.matmul %491, %7, %cst_98 {dimension_numbers = #tpu.dot_dimension_numbers<[1], [0], [0], [1], [0, 0, 1, 1], [], []>} : vector<8x128xbf16>, vector<128x384xbf16>, vector<8x384xf32> -> vector<8x384xf32>
    %493 = vector.broadcast %10 : vector<1x384xf32> to vector<8x384xf32>
    %494 = arith.addf %492, %493 : vector<8x384xf32>
    %495 = vector.extract_strided_slice %490 {offsets = [0, 0], sizes = [8, 128], strides = [1, 1]} : vector<8x384xf32> to vector<8x128xf32>
    %496 = vector.extract_strided_slice %494 {offsets = [0, 0], sizes = [8, 128], strides = [1, 1]} : vector<8x384xf32> to vector<8x128xf32>
    %497 = arith.addf %495, %496 : vector<8x128xf32>
    %498 = arith.negf %497 : vector<8x128xf32>
    %499 = math.exp %498 : vector<8x128xf32>
    %cst_99 = arith.constant 1.000000e+00 : f32
    %500 = vector.broadcast %cst_99 : f32 to vector<8x128xf32>
    %501 = arith.addf %500, %499 : vector<8x128xf32>
    %502 = arith.divf %500, %501 : vector<8x128xf32>
    %503 = vector.extract_strided_slice %490 {offsets = [0, 128], sizes = [8, 128], strides = [1, 1]} : vector<8x384xf32> to vector<8x128xf32>
    %504 = vector.extract_strided_slice %494 {offsets = [0, 128], sizes = [8, 128], strides = [1, 1]} : vector<8x384xf32> to vector<8x128xf32>
    %505 = arith.addf %503, %504 : vector<8x128xf32>
    %506 = arith.negf %505 : vector<8x128xf32>
    %507 = math.exp %506 : vector<8x128xf32>
    %cst_100 = arith.constant 1.000000e+00 : f32
    %508 = vector.broadcast %cst_100 : f32 to vector<8x128xf32>
    %509 = arith.addf %508, %507 : vector<8x128xf32>
    %510 = arith.divf %508, %509 : vector<8x128xf32>
    %511 = vector.extract_strided_slice %490 {offsets = [0, 256], sizes = [8, 128], strides = [1, 1]} : vector<8x384xf32> to vector<8x128xf32>
    %512 = vector.extract_strided_slice %494 {offsets = [0, 256], sizes = [8, 128], strides = [1, 1]} : vector<8x384xf32> to vector<8x128xf32>
    %513 = arith.mulf %502, %512 : vector<8x128xf32>
    %514 = arith.addf %511, %513 : vector<8x128xf32>
    %515 = math.tanh %514 : vector<8x128xf32>
    %cst_101 = arith.constant 1.000000e+00 : f32
    %516 = vector.broadcast %cst_101 : f32 to vector<8x128xf32>
    %517 = arith.subf %516, %510 : vector<8x128xf32>
    %518 = arith.mulf %517, %515 : vector<8x128xf32>
    %519 = arith.mulf %510, %452 : vector<8x128xf32>
    %520 = arith.addf %518, %519 : vector<8x128xf32>
    %c7_i32_102 = arith.constant 7 : i32
    %521 = arith.truncf %520 : vector<8x128xf32> to vector<8x128xbf16>
    %cst_103 = arith.constant dense<0.000000e+00> : vector<8x384xf32>
    %522 = tpu.matmul %521, %9, %cst_103 {dimension_numbers = #tpu.dot_dimension_numbers<[1], [0], [0], [1], [0, 0, 1, 1], [], []>} : vector<8x128xbf16>, vector<128x384xbf16>, vector<8x384xf32> -> vector<8x384xf32>
    %523 = vector.broadcast %12 : vector<1x384xf32> to vector<8x384xf32>
    %524 = arith.addf %522, %523 : vector<8x384xf32>
    %525 = arith.truncf %486 : vector<8x128xf32> to vector<8x128xbf16>
    %cst_104 = arith.constant dense<0.000000e+00> : vector<8x384xf32>
    %526 = tpu.matmul %525, %8, %cst_104 {dimension_numbers = #tpu.dot_dimension_numbers<[1], [0], [0], [1], [0, 0, 1, 1], [], []>} : vector<8x128xbf16>, vector<128x384xbf16>, vector<8x384xf32> -> vector<8x384xf32>
    %527 = vector.broadcast %11 : vector<1x384xf32> to vector<8x384xf32>
    %528 = arith.addf %526, %527 : vector<8x384xf32>
    %529 = vector.extract_strided_slice %524 {offsets = [0, 0], sizes = [8, 128], strides = [1, 1]} : vector<8x384xf32> to vector<8x128xf32>
    %530 = vector.extract_strided_slice %528 {offsets = [0, 0], sizes = [8, 128], strides = [1, 1]} : vector<8x384xf32> to vector<8x128xf32>
    %531 = arith.addf %529, %530 : vector<8x128xf32>
    %532 = arith.negf %531 : vector<8x128xf32>
    %533 = math.exp %532 : vector<8x128xf32>
    %cst_105 = arith.constant 1.000000e+00 : f32
    %534 = vector.broadcast %cst_105 : f32 to vector<8x128xf32>
    %535 = arith.addf %534, %533 : vector<8x128xf32>
    %536 = arith.divf %534, %535 : vector<8x128xf32>
    %537 = vector.extract_strided_slice %524 {offsets = [0, 128], sizes = [8, 128], strides = [1, 1]} : vector<8x384xf32> to vector<8x128xf32>
    %538 = vector.extract_strided_slice %528 {offsets = [0, 128], sizes = [8, 128], strides = [1, 1]} : vector<8x384xf32> to vector<8x128xf32>
    %539 = arith.addf %537, %538 : vector<8x128xf32>
    %540 = arith.negf %539 : vector<8x128xf32>
    %541 = math.exp %540 : vector<8x128xf32>
    %cst_106 = arith.constant 1.000000e+00 : f32
    %542 = vector.broadcast %cst_106 : f32 to vector<8x128xf32>
    %543 = arith.addf %542, %541 : vector<8x128xf32>
    %544 = arith.divf %542, %543 : vector<8x128xf32>
    %545 = vector.extract_strided_slice %524 {offsets = [0, 256], sizes = [8, 128], strides = [1, 1]} : vector<8x384xf32> to vector<8x128xf32>
    %546 = vector.extract_strided_slice %528 {offsets = [0, 256], sizes = [8, 128], strides = [1, 1]} : vector<8x384xf32> to vector<8x128xf32>
    %547 = arith.mulf %536, %546 : vector<8x128xf32>
    %548 = arith.addf %545, %547 : vector<8x128xf32>
    %549 = math.tanh %548 : vector<8x128xf32>
    %cst_107 = arith.constant 1.000000e+00 : f32
    %550 = vector.broadcast %cst_107 : f32 to vector<8x128xf32>
    %551 = arith.subf %550, %544 : vector<8x128xf32>
    %552 = arith.mulf %551, %549 : vector<8x128xf32>
    %553 = arith.mulf %544, %486 : vector<8x128xf32>
    %554 = arith.addf %552, %553 : vector<8x128xf32>
    %555 = arith.truncf %520 : vector<8x128xf32> to vector<8x128xbf16>
    %c0_108 = arith.constant 0 : index
    %c0_109 = arith.constant 0 : index
    %556 = vector.load %arg9[%c0_108, %c0_109] : memref<128x128xbf16, #tpu.memory_space<vmem>>, vector<128x128xbf16>
    %cst_110 = arith.constant dense<0.000000e+00> : vector<8x128xf32>
    %557 = tpu.matmul %555, %556, %cst_110 {dimension_numbers = #tpu.dot_dimension_numbers<[1], [0], [0], [1], [0, 0, 1, 1], [], []>} : vector<8x128xbf16>, vector<128x128xbf16>, vector<8x128xf32> -> vector<8x128xf32>
    %558 = arith.truncf %554 : vector<8x128xf32> to vector<8x128xbf16>
    %c0_111 = arith.constant 0 : index
    %c0_112 = arith.constant 0 : index
    %559 = vector.load %arg10[%c0_111, %c0_112] : memref<128x128xbf16, #tpu.memory_space<vmem>>, vector<128x128xbf16>
    %cst_113 = arith.constant dense<0.000000e+00> : vector<8x128xf32>
    %560 = tpu.matmul %558, %559, %cst_113 {dimension_numbers = #tpu.dot_dimension_numbers<[1], [0], [0], [1], [0, 0, 1, 1], [], []>} : vector<8x128xbf16>, vector<128x128xbf16>, vector<8x128xf32> -> vector<8x128xf32>
    %561 = arith.addf %557, %560 : vector<8x128xf32>
    %c0_114 = arith.constant 0 : index
    %c0_115 = arith.constant 0 : index
    %562 = vector.load %arg11[%c0_114, %c0_115] : memref<1x128xf32, #tpu.memory_space<vmem>>, vector<1x128xf32>
    %563 = vector.broadcast %562 : vector<1x128xf32> to vector<8x128xf32>
    %564 = arith.addf %561, %563 : vector<8x128xf32>
    %c0_116 = arith.constant 0 : index
    %c0_117 = arith.constant 0 : index
    %565 = vector.load %arg12[%c0_116, %c0_117] : memref<8x128xf32, #tpu.memory_space<vmem>>, vector<8x128xf32>
    tpu.vector_store %arg12[%c0_116, %c0_117], %564 {strides = array<i32>} : memref<8x128xf32, #tpu.memory_space<vmem>>, vector<8x128xf32>,
    return
  }
}

</mosaic_0001>

<llo_original>
// kernel: rnn2_forward.1
$region0: #{rnn2_forward.1}
  #allocation0 [shape = 'u32[]', space=smem, size = 0x4, offset = 0x4, fixed_abs, tag = 'smem constant byte address 0x4 - core index']
  #allocation1 [shape = 'u32[144,128]{1,0:T(1,128)}', space=vmem, size = 0x12000, scoped, tag = 'internal scratch']
  #allocation2 [shape = 'f32[64,384]{1,0:T(8,128)}', space=vmem, size = 0x18000, scoped, tag = 'scratch operand']
  %s0 = inlined_call_operand.vmem [shape: bf16[64,128], index: 0, kind: input, shape index: {}]
  %s1 = inlined_call_operand.vmem [shape: bf16[128,384], index: 1, kind: input, shape index: {}]
  %s2 = inlined_call_operand.hbm [shape: bf16[128,384], index: 2, kind: input, shape index: {}]
  %s3 = inlined_call_operand.vmem [shape: f32[1,384], index: 3, kind: input, shape index: {}]
  %s4 = inlined_call_operand.vmem [shape: f32[1,384], index: 4, kind: input, shape index: {}]
  %s5 = inlined_call_operand.hbm [shape: bf16[128,384], index: 5, kind: input, shape index: {}]
  %s6 = inlined_call_operand.hbm [shape: bf16[128,384], index: 6, kind: input, shape index: {}]
  %s7 = inlined_call_operand.vmem [shape: f32[1,384], index: 7, kind: input, shape index: {}]
  %s8 = inlined_call_operand.vmem [shape: f32[1,384], index: 8, kind: input, shape index: {}]
  %s9 = inlined_call_operand.hbm [shape: bf16[128,128], index: 9, kind: input, shape index: {}]
  %s10 = inlined_call_operand.hbm [shape: bf16[128,128], index: 10, kind: input, shape index: {}]
  %s11 = inlined_call_operand.vmem [shape: f32[1,128], index: 11, kind: input, shape index: {}]
  %s12 = inlined_call_operand.vmem [shape: f32[8,128], index: 12, kind: output, shape index: {}]
  %s13 = sld [smem:[#allocation0]]
  $region78: #{rnn2_forward.1} parent=0
    _
  %s15 = ssub.s32 1, %s13
  %s16 = scalar_select 0, %s15, %s13
  $region1: #{rnn2_forward.1} parent=0
    #allocation3 [shape = 'u8[98304]{0}', space=vmem, size = 0x18000, scoped, tag = 'input window, operand 2, single buffered']
    #allocation4 [shape = 's32[1]{0}', space=sflag, size = 0x4, scoped, tag = 'scoped memory for rnn2_forward.1']
    #allocation5 [shape = 'u8[98304]{0}', space=vmem, size = 0x18000, scoped, tag = 'input window, operand 5, single buffered']
    #allocation6 [shape = 's32[1]{0}', space=sflag, size = 0x4, scoped, tag = 'scoped memory for rnn2_forward.1']
    #allocation7 [shape = 'u8[98304]{0}', space=vmem, size = 0x18000, scoped, tag = 'input window, operand 6, single buffered']
    #allocation8 [shape = 'u8[32768]{0}', space=vmem, size = 0x8000, scoped, tag = 'input window, operand 9, single buffered']
    #allocation9 [shape = 's32[1]{0}', space=sflag, size = 0x4, scoped, tag = 'scoped memory for rnn2_forward.1']
    #allocation10 [shape = 'u8[32768]{0}', space=vmem, size = 0x8000, scoped, tag = 'input window, operand 10, single buffered']
    %17 = vsyncpa [#allocation4], 0
    %18 = vsyncpa [#allocation6], 0
    %19 = vsyncpa [#allocation9], 0
    // Predicated region
    $region2: #{rnn2_forward.1} parent=1 // pred_check
      _
    $region3: #{rnn2_forward.1} parent=1 // pred_check_branch
      %21 = sbr.rel (0) target = $region5
    $region4: #{rnn2_forward.1} parent=1 // pred_region
      _
    $region5: #{rnn2_forward.1} parent=1 // pred_fallthru
      _
    // Predicated region
    $region6: #{rnn2_forward.1} parent=1 // pred_check
      _
    $region7: #{rnn2_forward.1} parent=1 // pred_check_branch
      %23 = sbr.rel (0) target = $region9
    $region8: #{rnn2_forward.1} parent=1 // pred_region
      _
    $region9: #{rnn2_forward.1} parent=1 // pred_fallthru
      _
    // Predicated region
    $region10: #{rnn2_forward.1} parent=1 // pred_check
      _
    $region11: #{rnn2_forward.1} parent=1 // pred_check_branch
      %25 = sbr.rel (0) target = $region13
    $region12: #{rnn2_forward.1} parent=1 // pred_region
      %s27 = ssub.s32 3072, 3072
      %28 = vsyncadd [#allocation4], %s27
      %s29 = sshll.u32 [#allocation3], 4
      %s30 = int_to_ptr.vmem [resolvable:$true] %s29
      %35 = dma.hbm_to_vmem [thread:$0]  %s2, 3072, %s30, [#allocation4], 192, 192, 12
    $region13: #{rnn2_forward.1} parent=1 // pred_fallthru
      _
    // Predicated region
    $region14: #{rnn2_forward.1} parent=1 // pred_check
      _
    $region15: #{rnn2_forward.1} parent=1 // pred_check_branch
      %37 = sbr.rel (0) target = $region17
    $region16: #{rnn2_forward.1} parent=1 // pred_region
      _
    $region17: #{rnn2_forward.1} parent=1 // pred_fallthru
      _
    // Predicated region
    $region18: #{rnn2_forward.1} parent=1 // pred_check
      _
    $region19: #{rnn2_forward.1} parent=1 // pred_check_branch
      %39 = sbr.rel (0) target = $region21
    $region20: #{rnn2_forward.1} parent=1 // pred_region
      _
    $region21: #{rnn2_forward.1} parent=1 // pred_fallthru
      _
    // Predicated region
    $region22: #{rnn2_forward.1} parent=1 // pred_check
      _
    $region23: #{rnn2_forward.1} parent=1 // pred_check_branch
      %41 = sbr.rel (0) target = $region25
    $region24: #{rnn2_forward.1} parent=1 // pred_region
      %s43 = ssub.s32 3072, 3072
      %44 = vsyncadd [#allocation6], %s43
      %s45 = sshll.u32 [#allocation5], 4
      %s46 = int_to_ptr.vmem [resolvable:$true] %s45
      %51 = dma.hbm_to_vmem [thread:$0]  %s5, 3072, %s46, [#allocation6], 192, 192, 12
    $region25: #{rnn2_forward.1} parent=1 // pred_fallthru
      _
    // Predicated region
    $region26: #{rnn2_forward.1} parent=1 // pred_check
      _
    $region27: #{rnn2_forward.1} parent=1 // pred_check_branch
      %53 = sbr.rel (0) target = $region29
    $region28: #{rnn2_forward.1} parent=1 // pred_region
      %s55 = ssub.s32 3072, 3072
      %56 = vsyncadd [#allocation6], %s55
      %s57 = sshll.u32 [#allocation7], 4
      %s58 = int_to_ptr.vmem [resolvable:$true] %s57
      %63 = dma.hbm_to_vmem [thread:$0]  %s6, 3072, %s58, [#allocation6], 192, 192, 12
    $region29: #{rnn2_forward.1} parent=1 // pred_fallthru
      _
    // Predicated region
    $region30: #{rnn2_forward.1} parent=1 // pred_check
      _
    $region31: #{rnn2_forward.1} parent=1 // pred_check_branch
      %65 = sbr.rel (0) target = $region33
    $region32: #{rnn2_forward.1} parent=1 // pred_region
      _
    $region33: #{rnn2_forward.1} parent=1 // pred_fallthru
      _
    // Predicated region
    $region34: #{rnn2_forward.1} parent=1 // pred_check
      _
    $region35: #{rnn2_forward.1} parent=1 // pred_check_branch
      %67 = sbr.rel (0) target = $region37
    $region36: #{rnn2_forward.1} parent=1 // pred_region
      _
    $region37: #{rnn2_forward.1} parent=1 // pred_fallthru
      _
    // Predicated region
    $region38: #{rnn2_forward.1} parent=1 // pred_check
      _
    $region39: #{rnn2_forward.1} parent=1 // pred_check_branch
      %69 = sbr.rel (0) target = $region41
    $region40: #{rnn2_forward.1} parent=1 // pred_region
      %s71 = ssub.s32 1024, 1024
      %72 = vsyncadd [#allocation9], %s71
      %s73 = sshll.u32 [#allocation8], 4
      %s74 = int_to_ptr.vmem [resolvable:$true] %s73
      %79 = dma.hbm_to_vmem [thread:$0]  %s9, 1024, %s74, [#allocation9], 64, 64, 4
    $region41: #{rnn2_forward.1} parent=1 // pred_fallthru
      _
    // Predicated region
    $region42: #{rnn2_forward.1} parent=1 // pred_check
      _
    $region43: #{rnn2_forward.1} parent=1 // pred_check_branch
      %81 = sbr.rel (0) target = $region45
    $region44: #{rnn2_forward.1} parent=1 // pred_region
      %s83 = ssub.s32 1024, 1024
      %84 = vsyncadd [#allocation9], %s83
      %s85 = sshll.u32 [#allocation10], 4
      %s86 = int_to_ptr.vmem [resolvable:$true] %s85
      %91 = dma.hbm_to_vmem [thread:$0]  %s10, 1024, %s86, [#allocation9], 64, 64, 4
    $region45: #{rnn2_forward.1} parent=1 // pred_fallthru
      _
    // Predicated region
    $region46: #{rnn2_forward.1} parent=1 // pred_check
      _
    $region47: #{rnn2_forward.1} parent=1 // pred_check_branch
      %93 = sbr.rel (0) target = $region49
    $region48: #{rnn2_forward.1} parent=1 // pred_region
      _
    $region49: #{rnn2_forward.1} parent=1 // pred_fallthru
      _
    // Predicated region
    $region50: #{rnn2_forward.1} parent=1 // pred_check
      _
    $region51: #{rnn2_forward.1} parent=1 // pred_check_branch
      %95 = sbr.rel (0) target = $region53
    $region52: #{rnn2_forward.1} parent=1 // pred_region
      %96 = dma.done [#allocation4], 3072
    $region53: #{rnn2_forward.1} parent=1 // pred_fallthru
      _
    // Predicated region
    $region54: #{rnn2_forward.1} parent=1 // pred_check
      _
    $region55: #{rnn2_forward.1} parent=1 // pred_check_branch
      %98 = sbr.rel (0) target = $region57
    $region56: #{rnn2_forward.1} parent=1 // pred_region
      %99 = dma.done [#allocation6], 3072
    $region57: #{rnn2_forward.1} parent=1 // pred_fallthru
      _
    // Predicated region
    $region58: #{rnn2_forward.1} parent=1 // pred_check
      _
    $region59: #{rnn2_forward.1} parent=1 // pred_check_branch
      %101 = sbr.rel (0) target = $region61
    $region60: #{rnn2_forward.1} parent=1 // pred_region
      %102 = dma.done [#allocation6], 3072
    $region61: #{rnn2_forward.1} parent=1 // pred_fallthru
      _
    // Predicated region
    $region62: #{rnn2_forward.1} parent=1 // pred_check
      _
    $region63: #{rnn2_forward.1} parent=1 // pred_check_branch
      %104 = sbr.rel (0) target = $region65
    $region64: #{rnn2_forward.1} parent=1 // pred_region
      %105 = dma.done [#allocation9], 1024
    $region65: #{rnn2_forward.1} parent=1 // pred_fallthru
      _
    // Predicated region
    $region66: #{rnn2_forward.1} parent=1 // pred_check
      _
    $region67: #{rnn2_forward.1} parent=1 // pred_check_branch
      %107 = sbr.rel (0) target = $region69
    $region68: #{rnn2_forward.1} parent=1 // pred_region
      %108 = dma.done [#allocation9], 1024
    $region69: #{rnn2_forward.1} parent=1 // pred_fallthru
      _
    %v110 = vld [vmem:[%s0] sm:$0xf]
    %v111 = vld [vmem:[%s0 + $0x4] sm:$0xf]
    %v112 = vld [vmem:[%s0 + $0x8] sm:$0xf]
    %v113 = vld [vmem:[%s0 + $0xc] sm:$0xf]
    %v114 = vld [vmem:[%s0 + $0x10] sm:$0xf]
    %v115 = vld [vmem:[%s0 + $0x14] sm:$0xf]
    %v116 = vld [vmem:[%s0 + $0x18] sm:$0xf]
    %v117 = vld [vmem:[%s0 + $0x1c] sm:$0xf]
    %v118 = vld [vmem:[%s1] sm:$0xff]
    %v119 = vld [vmem:[%s1 + $0x8] sm:$0xf]
    %v120 = vld [vmem:[%s1 + $0xc] sm:$0xff]
    %v121 = vld [vmem:[%s1 + $0x14] sm:$0xf]
    %v122 = vld [vmem:[%s1 + $0x18] sm:$0xff]
    %v123 = vld [vmem:[%s1 + $0x20] sm:$0xf]
    %v124 = vld [vmem:[%s1 + $0x24] sm:$0xff]
    %v125 = vld [vmem:[%s1 + $0x2c] sm:$0xf]
    %v126 = vld [vmem:[%s1 + $0x30] sm:$0xff]
    %v127 = vld [vmem:[%s1 + $0x38] sm:$0xf]
    %v128 = vld [vmem:[%s1 + $0x3c] sm:$0xff]
    %v129 = vld [vmem:[%s1 + $0x44] sm:$0xf]
    %v130 = vld [vmem:[%s1 + $0x48] sm:$0xff]
    %v131 = vld [vmem:[%s1 + $0x50] sm:$0xf]
    %v132 = vld [vmem:[%s1 + $0x54] sm:$0xff]
    %v133 = vld [vmem:[%s1 + $0x5c] sm:$0xf]
    %v134 = vld [vmem:[%s1 + $0x60] sm:$0xff]
    %v135 = vld [vmem:[%s1 + $0x68] sm:$0xf]
    %v136 = vld [vmem:[%s1 + $0x6c] sm:$0xff]
    %v137 = vld [vmem:[%s1 + $0x74] sm:$0xf]
    %v138 = vld [vmem:[%s1 + $0x78] sm:$0xff]
    %v139 = vld [vmem:[%s1 + $0x80] sm:$0xf]
    %v140 = vld [vmem:[%s1 + $0x84] sm:$0xff]
    %v141 = vld [vmem:[%s1 + $0x8c] sm:$0xf]
    %v142 = vld [vmem:[%s1 + $0x90] sm:$0xff]
    %v143 = vld [vmem:[%s1 + $0x98] sm:$0xf]
    %v144 = vld [vmem:[%s1 + $0x9c] sm:$0xff]
    %v145 = vld [vmem:[%s1 + $0xa4] sm:$0xf]
    %v146 = vld [vmem:[%s1 + $0xa8] sm:$0xff]
    %v147 = vld [vmem:[%s1 + $0xb0] sm:$0xf]
    %v148 = vld [vmem:[%s1 + $0xb4] sm:$0xff]
    %v149 = vld [vmem:[%s1 + $0xbc] sm:$0xf]
    %v150 = vld [vmem:[%s3] sm:$0x7]
    %v152 = vlaneseq
    %v153 = vshrl.u32 %v152, 7
    %v154 = vsub.s32 0, %v153
    %v155 = vrot.slane %v150, %v154
    %v156 = vlaneseq
    %v157 = vshrl.u32 %v156, 7
    %v158 = vsub.s32 1, %v157
    %v159 = vrot.slane %v150, %v158
    %v160 = vlaneseq
    %v161 = vshrl.u32 %v160, 7
    %v162 = vsub.s32 2, %v161
    %v163 = vrot.slane %v150, %v162
    %v175 = vunpack.c.l.b16 %v110
    %v176 = vunpack.c.l.b16 %v111
    %v177 = vunpack.c.l.b16 %v112
    %v178 = vunpack.c.l.b16 %v113
    %v179 = vunpack.c.l.b16 %v114
    %v180 = vunpack.c.l.b16 %v115
    %v181 = vunpack.c.l.b16 %v116
    %v182 = vunpack.c.l.b16 %v117
    %v183 = vpack.c.b16 %v176, %v175
    %v184 = vpack.c.b16 %v178, %v177
    %v185 = vpack.c.b16 %v180, %v179
    %v186 = vpack.c.b16 %v182, %v181
    %v223 = vunpack.c.l.b16 %v118
    %v224 = vunpack.c.h.b16 %v118
    %v225 = vunpack.c.l.b16 %v119
    %v226 = vunpack.c.l.b16 %v120
    %v227 = vunpack.c.h.b16 %v120
    %v228 = vunpack.c.l.b16 %v121
    %v229 = vunpack.c.l.b16 %v122
    %v230 = vunpack.c.h.b16 %v122
    %v231 = vunpack.c.l.b16 %v123
    %v232 = vunpack.c.l.b16 %v124
    %v233 = vunpack.c.h.b16 %v124
    %v234 = vunpack.c.l.b16 %v125
    %v235 = vunpack.c.l.b16 %v126
    %v236 = vunpack.c.h.b16 %v126
    %v237 = vunpack.c.l.b16 %v127
    %v238 = vunpack.c.l.b16 %v128
    %v239 = vunpack.c.h.b16 %v128
    %v240 = vunpack.c.l.b16 %v129
    %v241 = vunpack.c.l.b16 %v130
    %v242 = vunpack.c.h.b16 %v130
    %v243 = vunpack.c.l.b16 %v131
    %v244 = vunpack.c.l.b16 %v132
    %v245 = vunpack.c.h.b16 %v132
    %v246 = vunpack.c.l.b16 %v133
    %v247 = vunpack.c.l.b16 %v134
    %v248 = vunpack.c.h.b16 %v134
    %v249 = vunpack.c.l.b16 %v135
    %v250 = vunpack.c.l.b16 %v136
    %v251 = vunpack.c.h.b16 %v136
    %v252 = vunpack.c.l.b16 %v137
    %v253 = vunpack.c.l.b16 %v138
    %v254 = vunpack.c.h.b16 %v138
    %v255 = vunpack.c.l.b16 %v139
    %v256 = vunpack.c.l.b16 %v140
    %v257 = vunpack.c.h.b16 %v140
    %v258 = vunpack.c.l.b16 %v141
    %v259 = vunpack.c.l.b16 %v142
    %v260 = vunpack.c.h.b16 %v142
    %v261 = vunpack.c.l.b16 %v143
    %v262 = vunpack.c.l.b16 %v144
    %v263 = vunpack.c.h.b16 %v144
    %v264 = vunpack.c.l.b16 %v145
    %v265 = vunpack.c.l.b16 %v146
    %v266 = vunpack.c.h.b16 %v146
    %v267 = vunpack.c.l.b16 %v147
    %v268 = vunpack.c.l.b16 %v148
    %v269 = vunpack.c.h.b16 %v148
    %v270 = vunpack.c.l.b16 %v149
    %v271 = vpack.c.b16 %v226, %v223
    %v272 = vpack.c.b16 %v227, %v224
    %v273 = vpack.c.b16 %v228, %v225
    %v274 = vpack.c.b16 %v232, %v229
    %v275 = vpack.c.b16 %v233, %v230
    %v276 = vpack.c.b16 %v234, %v231
    %v277 = vpack.c.b16 %v238, %v235
    %v278 = vpack.c.b16 %v239, %v236
    %v279 = vpack.c.b16 %v240, %v237
    %v280 = vpack.c.b16 %v244, %v241
    %v281 = vpack.c.b16 %v245, %v242
    %v282 = vpack.c.b16 %v246, %v243
    %v283 = vpack.c.b16 %v250, %v247
    %v284 = vpack.c.b16 %v251, %v248
    %v285 = vpack.c.b16 %v252, %v249
    %v286 = vpack.c.b16 %v256, %v253
    %v287 = vpack.c.b16 %v257, %v254
    %v288 = vpack.c.b16 %v258, %v255
    %v289 = vpack.c.b16 %v262, %v259
    %v290 = vpack.c.b16 %v263, %v260
    %v291 = vpack.c.b16 %v264, %v261
    %v292 = vpack.c.b16 %v268, %v265
    %v293 = vpack.c.b16 %v269, %v266
    %v294 = vpack.c.b16 %v270, %v267
    %319 = vmatprep.subr.bf16.mxu0 %v272
    %320 = vmatpush1.bf16.msra.mxu0 %v271
    %321 = vmatprep.subr.bf16.mxu0 %v275
    %322 = vmatpush1.bf16.msra.mxu0 %v274
    %323 = vmatprep.subr.bf16.mxu0 %v278
    %324 = vmatpush1.bf16.msra.mxu0 %v277
    %325 = vmatprep.subr.bf16.mxu0 %v281
    %326 = vmatpush1.bf16.msra.mxu0 %v280
    %327 = vmatprep.subr.bf16.mxu0 %v284
    %328 = vmatpush1.bf16.msra.mxu0 %v283
    %329 = vmatprep.subr.bf16.mxu0 %v287
    %330 = vmatpush1.bf16.msra.mxu0 %v286
    %331 = vmatprep.subr.bf16.mxu0 %v290
    %332 = vmatpush1.bf16.msra.mxu0 %v289
    %333 = vmatprep.subr.bf16.mxu0 %v293
    %334 = vmatpush1.bf16.msra.mxu0 %v292
    %335 = vmatprep.subr.bf16.mxu0 0
    %336 = vmatpush1.bf16.msra.mxu0 0
    %337 = vmatprep.subr.bf16.mxu0 0
    %338 = vmatpush1.bf16.msra.mxu0 0
    %339 = vmatprep.subr.bf16.mxu0 0
    %340 = vmatpush1.bf16.msra.mxu0 0
    %341 = vmatprep.subr.bf16.mxu0 0
    %342 = vmatpush1.bf16.msra.mxu0 0
    %343 = vmatprep.subr.bf16.mxu0 0
    %344 = vmatpush1.bf16.msra.mxu0 0
    %345 = vmatprep.subr.bf16.mxu0 0
    %346 = vmatpush1.bf16.msra.mxu0 0
    %347 = vmatprep.subr.bf16.mxu0 0
    %348 = vmatpush1.bf16.msra.mxu0 0
    %349 = vmatprep.subr.bf16.mxu0 0
    %350 = vmatpush1.bf16.msra.mxu0 0
    %351 = vmatprep.mubr.bf16.mxu0 0
    %352 = vmatmul.mubr.bf16.gmra.mrb[0].mxu0 %v183
    %v353 = vpop.f32.mrb[0].mxu0
    %v354 = vadd.f32 %v155, %v353
    %v355 = vpop.f32.mrb[0].mxu0
    %v356 = vadd.f32 %v159, %v355
    %v357 = vpop.f32.mrb[0].mxu0
    %v358 = vadd.f32 %v155, %v357
    %v359 = vpop.f32.mrb[0].mxu0
    %v360 = vadd.f32 %v159, %v359
    %361 = vmatprep.mubr.bf16.mxu0 0
    %362 = vmatmul.mubr.bf16.gmra.mrb[0].mxu0 %v184
    %v363 = vpop.f32.mrb[0].mxu0
    %v364 = vadd.f32 %v155, %v363
    %v365 = vpop.f32.mrb[0].mxu0
    %v366 = vadd.f32 %v159, %v365
    %v367 = vpop.f32.mrb[0].mxu0
    %v368 = vadd.f32 %v155, %v367
    %v369 = vpop.f32.mrb[0].mxu0
    %v370 = vadd.f32 %v159, %v369
    %371 = vmatprep.mubr.bf16.mxu0 0
    %372 = vmatmul.mubr.bf16.gmra.mrb[0].mxu0 %v185
    %v373 = vpop.f32.mrb[0].mxu0
    %v374 = vadd.f32 %v155, %v373
    %v375 = vpop.f32.mrb[0].mxu0
    %v376 = vadd.f32 %v159, %v375
    %v377 = vpop.f32.mrb[0].mxu0
    %v378 = vadd.f32 %v155, %v377
    %v379 = vpop.f32.mrb[0].mxu0
    %v380 = vadd.f32 %v159, %v379
    %381 = vmatprep.mubr.bf16.mxu0 0
    %382 = vmatmul.mubr.bf16.gmra.mrb[0].mxu0 %v186
    %v383 = vpop.f32.mrb[0].mxu0
    %v384 = vadd.f32 %v155, %v383
    %v385 = vpop.f32.mrb[0].mxu0
    %v386 = vadd.f32 %v159, %v385
    %v387 = vpop.f32.mrb[0].mxu0
    %v388 = vadd.f32 %v155, %v387
    %v389 = vpop.f32.mrb[0].mxu0
    %v390 = vadd.f32 %v159, %v389
    %391 = vdwg.mxu0
    %392 = vmatprep.subr.bf16.mxu0 0
    %393 = vmatpush1.bf16.msra.mxu0 %v273
    %394 = vmatprep.subr.bf16.mxu0 0
    %395 = vmatpush1.bf16.msra.mxu0 %v276
    %396 = vmatprep.subr.bf16.mxu0 0
    %397 = vmatpush1.bf16.msra.mxu0 %v279
    %398 = vmatprep.subr.bf16.mxu0 0
    %399 = vmatpush1.bf16.msra.mxu0 %v282
    %400 = vmatprep.subr.bf16.mxu0 0
    %401 = vmatpush1.bf16.msra.mxu0 %v285
    %402 = vmatprep.subr.bf16.mxu0 0
    %403 = vmatpush1.bf16.msra.mxu0 %v288
    %404 = vmatprep.subr.bf16.mxu0 0
    %405 = vmatpush1.bf16.msra.mxu0 %v291
    %406 = vmatprep.subr.bf16.mxu0 0
    %407 = vmatpush1.bf16.msra.mxu0 %v294
    %408 = vmatprep.subr.bf16.mxu0 0
    %409 = vmatpush1.bf16.msra.mxu0 0
    %410 = vmatprep.subr.bf16.mxu0 0
    %411 = vmatpush1.bf16.msra.mxu0 0
    %412 = vmatprep.subr.bf16.mxu0 0
    %413 = vmatpush1.bf16.msra.mxu0 0
    %414 = vmatprep.subr.bf16.mxu0 0
    %415 = vmatpush1.bf16.msra.mxu0 0
    %416 = vmatprep.subr.bf16.mxu0 0
    %417 = vmatpush1.bf16.msra.mxu0 0
    %418 = vmatprep.subr.bf16.mxu0 0
    %419 = vmatpush1.bf16.msra.mxu0 0
    %420 = vmatprep.subr.bf16.mxu0 0
    %421 = vmatpush1.bf16.msra.mxu0 0
    %422 = vmatprep.subr.bf16.mxu0 0
    %423 = vmatpush1.bf16.msra.mxu0 0
    %424 = vmatprep.mubr.bf16.mxu0 0
    %425 = vmatmul.mubr.bf16.gmra.mrb[0].mxu0 %v183
    %v426 = vpop.f32.mrb[0].mxu0
    %v427 = vadd.f32 %v163, %v426
    %v428 = vpop.f32.mrb[0].mxu0
    %v429 = vpop.f32.mrb[0].mxu0
    %v430 = vadd.f32 %v163, %v429
    %v431 = vpop.f32.mrb[0].mxu0
    %432 = vmatprep.mubr.bf16.mxu0 0
    %433 = vmatmul.mubr.bf16.gmra.mrb[0].mxu0 %v184
    %v434 = vpop.f32.mrb[0].mxu0
    %v435 = vadd.f32 %v163, %v434
    %v436 = vpop.f32.mrb[0].mxu0
    %v437 = vpop.f32.mrb[0].mxu0
    %v438 = vadd.f32 %v163, %v437
    %v439 = vpop.f32.mrb[0].mxu0
    %440 = vmatprep.mubr.bf16.mxu0 0
    %441 = vmatmul.mubr.bf16.gmra.mrb[0].mxu0 %v185
    %v442 = vpop.f32.mrb[0].mxu0
    %v443 = vadd.f32 %v163, %v442
    %v444 = vpop.f32.mrb[0].mxu0
    %v445 = vpop.f32.mrb[0].mxu0
    %v446 = vadd.f32 %v163, %v445
    %v447 = vpop.f32.mrb[0].mxu0
    %448 = vmatprep.mubr.bf16.mxu0 0
    %449 = vmatmul.mubr.bf16.gmra.mrb[0].mxu0 %v186
    %v450 = vpop.f32.mrb[0].mxu0
    %v451 = vadd.f32 %v163, %v450
    %v452 = vpop.f32.mrb[0].mxu0
    %v453 = vpop.f32.mrb[0].mxu0
    %v454 = vadd.f32 %v163, %v453
    %v455 = vpop.f32.mrb[0].mxu0
    %456 = vdwg.mxu0
    %457 = vst [vmem:[#allocation2] sm:$0xff] %v354
    %458 = vst [vmem:[#allocation2 + $0x8] sm:$0xff] %v356
    %459 = vst [vmem:[#allocation2 + $0x10] sm:$0xff] %v427
    %460 = vst [vmem:[#allocation2 + $0x18] sm:$0xff] %v358
    %461 = vst [vmem:[#allocation2 + $0x20] sm:$0xff] %v360
    %462 = vst [vmem:[#allocation2 + $0x28] sm:$0xff] %v430
    %463 = vst [vmem:[#allocation2 + $0x30] sm:$0xff] %v364
    %464 = vst [vmem:[#allocation2 + $0x38] sm:$0xff] %v366
    %465 = vst [vmem:[#allocation2 + $0x40] sm:$0xff] %v435
    %466 = vst [vmem:[#allocation2 + $0x48] sm:$0xff] %v368
    %467 = vst [vmem:[#allocation2 + $0x50] sm:$0xff] %v370
    %468 = vst [vmem:[#allocation2 + $0x58] sm:$0xff] %v438
    %469 = vst [vmem:[#allocation2 + $0x60] sm:$0xff] %v374
    %470 = vst [vmem:[#allocation2 + $0x68] sm:$0xff] %v376
    %471 = vst [vmem:[#allocation2 + $0x70] sm:$0xff] %v443
    %472 = vst [vmem:[#allocation2 + $0x78] sm:$0xff] %v378
    %473 = vst [vmem:[#allocation2 + $0x80] sm:$0xff] %v380
    %474 = vst [vmem:[#allocation2 + $0x88] sm:$0xff] %v446
    %475 = vst [vmem:[#allocation2 + $0x90] sm:$0xff] %v384
    %476 = vst [vmem:[#allocation2 + $0x98] sm:$0xff] %v386
    %477 = vst [vmem:[#allocation2 + $0xa0] sm:$0xff] %v451
    %478 = vst [vmem:[#allocation2 + $0xa8] sm:$0xff] %v388
    %479 = vst [vmem:[#allocation2 + $0xb0] sm:$0xff] %v390
    %480 = vst [vmem:[#allocation2 + $0xb8] sm:$0xff] %v454
    %v481 = vld [vmem:[#allocation3] sm:$0xff]
    %v482 = vld [vmem:[#allocation3 + $0x8] sm:$0xf]
    %v483 = vld [vmem:[#allocation3 + $0xc] sm:$0xff]
    %v484 = vld [vmem:[#allocation3 + $0x14] sm:$0xf]
    %v485 = vld [vmem:[#allocation3 + $0x18] sm:$0xff]
    %v486 = vld [vmem:[#allocation3 + $0x20] sm:$0xf]
    %v487 = vld [vmem:[#allocation3 + $0x24] sm:$0xff]
    %v488 = vld [vmem:[#allocation3 + $0x2c] sm:$0xf]
    %v489 = vld [vmem:[#allocation3 + $0x30] sm:$0xff]
    %v490 = vld [vmem:[#allocation3 + $0x38] sm:$0xf]
    %v491 = vld [vmem:[#allocation3 + $0x3c] sm:$0xff]
    %v492 = vld [vmem:[#allocation3 + $0x44] sm:$0xf]
    %v493 = vld [vmem:[#allocation3 + $0x48] sm:$0xff]
    %v494 = vld [vmem:[#allocation3 + $0x50] sm:$0xf]
    %v495 = vld [vmem:[#allocation3 + $0x54] sm:$0xff]
    %v496 = vld [vmem:[#allocation3 + $0x5c] sm:$0xf]
    %v497 = vld [vmem:[#allocation3 + $0x60] sm:$0xff]
    %v498 = vld [vmem:[#allocation3 + $0x68] sm:$0xf]
    %v499 = vld [vmem:[#allocation3 + $0x6c] sm:$0xff]
    %v500 = vld [vmem:[#allocation3 + $0x74] sm:$0xf]
    %v501 = vld [vmem:[#allocation3 + $0x78] sm:$0xff]
    %v502 = vld [vmem:[#allocation3 + $0x80] sm:$0xf]
    %v503 = vld [vmem:[#allocation3 + $0x84] sm:$0xff]
    %v504 = vld [vmem:[#allocation3 + $0x8c] sm:$0xf]
    %v505 = vld [vmem:[#allocation3 + $0x90] sm:$0xff]
    %v506 = vld [vmem:[#allocation3 + $0x98] sm:$0xf]
    %v507 = vld [vmem:[#allocation3 + $0x9c] sm:$0xff]
    %v508 = vld [vmem:[#allocation3 + $0xa4] sm:$0xf]
    %v509 = vld [vmem:[#allocation3 + $0xa8] sm:$0xff]
    %v510 = vld [vmem:[#allocation3 + $0xb0] sm:$0xf]
    %v511 = vld [vmem:[#allocation3 + $0xb4] sm:$0xff]
    %v512 = vld [vmem:[#allocation3 + $0xbc] sm:$0xf]
    %v513 = vld [vmem:[#allocation7] sm:$0xff]
    %v514 = vld [vmem:[#allocation7 + $0x8] sm:$0xf]
    %v515 = vld [vmem:[#allocation7 + $0xc] sm:$0xff]
    %v516 = vld [vmem:[#allocation7 + $0x14] sm:$0xf]
    %v517 = vld [vmem:[#allocation7 + $0x18] sm:$0xff]
    %v518 = vld [vmem:[#allocation7 + $0x20] sm:$0xf]
    %v519 = vld [vmem:[#allocation7 + $0x24] sm:$0xff]
    %v520 = vld [vmem:[#allocation7 + $0x2c] sm:$0xf]
    %v521 = vld [vmem:[#allocation7 + $0x30] sm:$0xff]
    %v522 = vld [vmem:[#allocation7 + $0x38] sm:$0xf]
    %v523 = vld [vmem:[#allocation7 + $0x3c] sm:$0xff]
    %v524 = vld [vmem:[#allocation7 + $0x44] sm:$0xf]
    %v525 = vld [vmem:[#allocation7 + $0x48] sm:$0xff]
    %v526 = vld [vmem:[#allocation7 + $0x50] sm:$0xf]
    %v527 = vld [vmem:[#allocation7 + $0x54] sm:$0xff]
    %v528 = vld [vmem:[#allocation7 + $0x5c] sm:$0xf]
    %v529 = vld [vmem:[#allocation7 + $0x60] sm:$0xff]
    %v530 = vld [vmem:[#allocation7 + $0x68] sm:$0xf]
    %v531 = vld [vmem:[#allocation7 + $0x6c] sm:$0xff]
    %v532 = vld [vmem:[#allocation7 + $0x74] sm:$0xf]
    %v533 = vld [vmem:[#allocation7 + $0x78] sm:$0xff]
    %v534 = vld [vmem:[#allocation7 + $0x80] sm:$0xf]
    %v535 = vld [vmem:[#allocation7 + $0x84] sm:$0xff]
    %v536 = vld [vmem:[#allocation7 + $0x8c] sm:$0xf]
    %v537 = vld [vmem:[#allocation7 + $0x90] sm:$0xff]
    %v538 = vld [vmem:[#allocation7 + $0x98] sm:$0xf]
    %v539 = vld [vmem:[#allocation7 + $0x9c] sm:$0xff]
    %v540 = vld [vmem:[#allocation7 + $0xa4] sm:$0xf]
    %v541 = vld [vmem:[#allocation7 + $0xa8] sm:$0xff]
    %v542 = vld [vmem:[#allocation7 + $0xb0] sm:$0xf]
    %v543 = vld [vmem:[#allocation7 + $0xb4] sm:$0xff]
    %v544 = vld [vmem:[#allocation7 + $0xbc] sm:$0xf]
    %v545 = vld [vmem:[#allocation5] sm:$0xff]
    %v546 = vld [vmem:[#allocation5 + $0x8] sm:$0xf]
    %v547 = vld [vmem:[#allocation5 + $0xc] sm:$0xff]
    %v548 = vld [vmem:[#allocation5 + $0x14] sm:$0xf]
    %v549 = vld [vmem:[#allocation5 + $0x18] sm:$0xff]
    %v550 = vld [vmem:[#allocation5 + $0x20] sm:$0xf]
    %v551 = vld [vmem:[#allocation5 + $0x24] sm:$0xff]
    %v552 = vld [vmem:[#allocation5 + $0x2c] sm:$0xf]
    %v553 = vld [vmem:[#allocation5 + $0x30] sm:$0xff]
    %v554 = vld [vmem:[#allocation5 + $0x38] sm:$0xf]
    %v555 = vld [vmem:[#allocation5 + $0x3c] sm:$0xff]
    %v556 = vld [vmem:[#allocation5 + $0x44] sm:$0xf]
    %v557 = vld [vmem:[#allocation5 + $0x48] sm:$0xff]
    %v558 = vld [vmem:[#allocation5 + $0x50] sm:$0xf]
    %v559 = vld [vmem:[#allocation5 + $0x54] sm:$0xff]
    %v560 = vld [vmem:[#allocation5 + $0x5c] sm:$0xf]
    %v561 = vld [vmem:[#allocation5 + $0x60] sm:$0xff]
    %v562 = vld [vmem:[#allocation5 + $0x68] sm:$0xf]
    %v563 = vld [vmem:[#allocation5 + $0x6c] sm:$0xff]
    %v564 = vld [vmem:[#allocation5 + $0x74] sm:$0xf]
    %v565 = vld [vmem:[#allocation5 + $0x78] sm:$0xff]
    %v566 = vld [vmem:[#allocation5 + $0x80] sm:$0xf]
    %v567 = vld [vmem:[#allocation5 + $0x84] sm:$0xff]
    %v568 = vld [vmem:[#allocation5 + $0x8c] sm:$0xf]
    %v569 = vld [vmem:[#allocation5 + $0x90] sm:$0xff]
    %v570 = vld [vmem:[#allocation5 + $0x98] sm:$0xf]
    %v571 = vld [vmem:[#allocation5 + $0x9c] sm:$0xff]
    %v572 = vld [vmem:[#allocation5 + $0xa4] sm:$0xf]
    %v573 = vld [vmem:[#allocation5 + $0xa8] sm:$0xff]
    %v574 = vld [vmem:[#allocation5 + $0xb0] sm:$0xf]
    %v575 = vld [vmem:[#allocation5 + $0xb4] sm:$0xff]
    %v576 = vld [vmem:[#allocation5 + $0xbc] sm:$0xf]
    %v577 = vld [vmem:[%s4] sm:$0x7]
    %v578 = vld [vmem:[%s8] sm:$0x7]
    %v579 = vld [vmem:[%s7] sm:$0x7]
    %v580 = vld [vmem:[#allocation2] sm:$0xff]
    %v581 = vld [vmem:[#allocation2 + $0x8] sm:$0xff]
    %v582 = vld [vmem:[#allocation2 + $0x10] sm:$0xff]
    %v584 = vlaneseq
    %v585 = vshrl.u32 %v584, 7
    %v586 = vsub.s32 0, %v585
    %v587 = vrot.slane %v577, %v586
    %v588 = vlaneseq
    %v589 = vshrl.u32 %v588, 7
    %v590 = vsub.s32 1, %v589
    %v591 = vrot.slane %v577, %v590
    %v592 = vlaneseq
    %v593 = vshrl.u32 %v592, 7
    %v594 = vsub.s32 2, %v593
    %v595 = vrot.slane %v577, %v594
    %v631 = vunpack.c.l.b16 %v481
    %v632 = vunpack.c.h.b16 %v481
    %v633 = vunpack.c.l.b16 %v482
    %v634 = vunpack.c.l.b16 %v483
    %v635 = vunpack.c.h.b16 %v483
    %v636 = vunpack.c.l.b16 %v484
    %v637 = vunpack.c.l.b16 %v485
    %v638 = vunpack.c.h.b16 %v485
    %v639 = vunpack.c.l.b16 %v486
    %v640 = vunpack.c.l.b16 %v487
    %v641 = vunpack.c.h.b16 %v487
    %v642 = vunpack.c.l.b16 %v488
    %v643 = vunpack.c.l.b16 %v489
    %v644 = vunpack.c.h.b16 %v489
    %v645 = vunpack.c.l.b16 %v490
    %v646 = vunpack.c.l.b16 %v491
    %v647 = vunpack.c.h.b16 %v491
    %v648 = vunpack.c.l.b16 %v492
    %v649 = vunpack.c.l.b16 %v493
    %v650 = vunpack.c.h.b16 %v493
    %v651 = vunpack.c.l.b16 %v494
    %v652 = vunpack.c.l.b16 %v495
    %v653 = vunpack.c.h.b16 %v495
    %v654 = vunpack.c.l.b16 %v496
    %v655 = vunpack.c.l.b16 %v497
    %v656 = vunpack.c.h.b16 %v497
    %v657 = vunpack.c.l.b16 %v498
    %v658 = vunpack.c.l.b16 %v499
    %v659 = vunpack.c.h.b16 %v499
    %v660 = vunpack.c.l.b16 %v500
    %v661 = vunpack.c.l.b16 %v501
    %v662 = vunpack.c.h.b16 %v501
    %v663 = vunpack.c.l.b16 %v502
    %v664 = vunpack.c.l.b16 %v503
    %v665 = vunpack.c.h.b16 %v503
    %v666 = vunpack.c.l.b16 %v504
    %v667 = vunpack.c.l.b16 %v505
    %v668 = vunpack.c.h.b16 %v505
    %v669 = vunpack.c.l.b16 %v506
    %v670 = vunpack.c.l.b16 %v507
    %v671 = vunpack.c.h.b16 %v507
    %v672 = vunpack.c.l.b16 %v508
    %v673 = vunpack.c.l.b16 %v509
    %v674 = vunpack.c.h.b16 %v509
    %v675 = vunpack.c.l.b16 %v510
    %v676 = vunpack.c.l.b16 %v511
    %v677 = vunpack.c.h.b16 %v511
    %v678 = vunpack.c.l.b16 %v512
    %v679 = vpack.c.b16 %v634, %v631
    %v680 = vpack.c.b16 %v635, %v632
    %v681 = vpack.c.b16 %v636, %v633
    %v682 = vpack.c.b16 %v640, %v637
    %v683 = vpack.c.b16 %v641, %v638
    %v684 = vpack.c.b16 %v642, %v639
    %v685 = vpack.c.b16 %v646, %v643
    %v686 = vpack.c.b16 %v647, %v644
    %v687 = vpack.c.b16 %v648, %v645
    %v688 = vpack.c.b16 %v652, %v649
    %v689 = vpack.c.b16 %v653, %v650
    %v690 = vpack.c.b16 %v654, %v651
    %v691 = vpack.c.b16 %v658, %v655
    %v692 = vpack.c.b16 %v659, %v656
    %v693 = vpack.c.b16 %v660, %v657
    %v694 = vpack.c.b16 %v664, %v661
    %v695 = vpack.c.b16 %v665, %v662
    %v696 = vpack.c.b16 %v666, %v663
    %v697 = vpack.c.b16 %v670, %v667
    %v698 = vpack.c.b16 %v671, %v668
    %v699 = vpack.c.b16 %v672, %v669
    %v700 = vpack.c.b16 %v676, %v673
    %v701 = vpack.c.b16 %v677, %v674
    %v702 = vpack.c.b16 %v678, %v675
    %727 = vmatprep.subr.bf16.mxu0 %v680
    %728 = vmatpush1.bf16.msra.mxu0 %v679
    %729 = vmatprep.subr.bf16.mxu0 %v683
    %730 = vmatpush1.bf16.msra.mxu0 %v682
    %731 = vmatprep.subr.bf16.mxu0 %v686
    %732 = vmatpush1.bf16.msra.mxu0 %v685
    %733 = vmatprep.subr.bf16.mxu0 %v689
    %734 = vmatpush1.bf16.msra.mxu0 %v688
    %735 = vmatprep.subr.bf16.mxu0 %v692
    %736 = vmatpush1.bf16.msra.mxu0 %v691
    %737 = vmatprep.subr.bf16.mxu0 %v695
    %738 = vmatpush1.bf16.msra.mxu0 %v694
    %739 = vmatprep.subr.bf16.mxu0 %v698
    %740 = vmatpush1.bf16.msra.mxu0 %v697
    %741 = vmatprep.subr.bf16.mxu0 %v701
    %742 = vmatpush1.bf16.msra.mxu0 %v700
    %743 = vmatprep.subr.bf16.mxu0 0
    %744 = vmatpush1.bf16.msra.mxu0 0
    %745 = vmatprep.subr.bf16.mxu0 0
    %746 = vmatpush1.bf16.msra.mxu0 0
    %747 = vmatprep.subr.bf16.mxu0 0
    %748 = vmatpush1.bf16.msra.mxu0 0
    %749 = vmatprep.subr.bf16.mxu0 0
    %750 = vmatpush1.bf16.msra.mxu0 0
    %751 = vmatprep.subr.bf16.mxu0 0
    %752 = vmatpush1.bf16.msra.mxu0 0
    %753 = vmatprep.subr.bf16.mxu0 0
    %754 = vmatpush1.bf16.msra.mxu0 0
    %755 = vmatprep.subr.bf16.mxu0 0
    %756 = vmatpush1.bf16.msra.mxu0 0
    %757 = vmatprep.subr.bf16.mxu0 0
    %758 = vmatpush1.bf16.msra.mxu0 0
    %759 = vmatprep.mubr.bf16.mxu0 0
    %760 = vmatmul.mubr.bf16.gmra.mrb[0].mxu0 0
    %v761 = vpop.f32.mrb[0].mxu0
    %v762 = vadd.f32 %v587, %v761
    %v763 = vpop.f32.mrb[0].mxu0
    %v764 = vadd.f32 %v591, %v763
    %v765 = vpop.f32.mrb[0].mxu0
    %v766 = vpop.f32.mrb[0].mxu0
    %767 = vdwg.mxu0
    %768 = vmatprep.subr.bf16.mxu0 0
    %769 = vmatpush1.bf16.msra.mxu0 %v681
    %770 = vmatprep.subr.bf16.mxu0 0
    %771 = vmatpush1.bf16.msra.mxu0 %v684
    %772 = vmatprep.subr.bf16.mxu0 0
    %773 = vmatpush1.bf16.msra.mxu0 %v687
    %774 = vmatprep.subr.bf16.mxu0 0
    %775 = vmatpush1.bf16.msra.mxu0 %v690
    %776 = vmatprep.subr.bf16.mxu0 0
    %777 = vmatpush1.bf16.msra.mxu0 %v693
    %778 = vmatprep.subr.bf16.mxu0 0
    %779 = vmatpush1.bf16.msra.mxu0 %v696
    %780 = vmatprep.subr.bf16.mxu0 0
    %781 = vmatpush1.bf16.msra.mxu0 %v699
    %782 = vmatprep.subr.bf16.mxu0 0
    %783 = vmatpush1.bf16.msra.mxu0 %v702
    %784 = vmatprep.subr.bf16.mxu0 0
    %785 = vmatpush1.bf16.msra.mxu0 0
    %786 = vmatprep.subr.bf16.mxu0 0
    %787 = vmatpush1.bf16.msra.mxu0 0
    %788 = vmatprep.subr.bf16.mxu0 0
    %789 = vmatpush1.bf16.msra.mxu0 0
    %790 = vmatprep.subr.bf16.mxu0 0
    %791 = vmatpush1.bf16.msra.mxu0 0
    %792 = vmatprep.subr.bf16.mxu0 0
    %793 = vmatpush1.bf16.msra.mxu0 0
    %794 = vmatprep.subr.bf16.mxu0 0
    %795 = vmatpush1.bf16.msra.mxu0 0
    %796 = vmatprep.subr.bf16.mxu0 0
    %797 = vmatpush1.bf16.msra.mxu0 0
    %798 = vmatprep.subr.bf16.mxu0 0
    %799 = vmatpush1.bf16.msra.mxu0 0
    %800 = vmatprep.mubr.bf16.mxu0 0
    %801 = vmatmul.mubr.bf16.gmra.mrb[0].mxu0 0
    %v802 = vpop.f32.mrb[0].mxu0
    %v803 = vadd.f32 %v595, %v802
    %v804 = vpop.f32.mrb[0].mxu0
    %v805 = vpop.f32.mrb[0].mxu0
    %v806 = vpop.f32.mrb[0].mxu0
    %807 = vdwg.mxu0
    %v808 = vadd.f32 %v580, %v762
    %v809 = vxor.u32 %v808, 2147483648
    %v810 = vmul.f32 %v809, 1.442695
    %v811 = vpow.pop %v810
    %v812 = vadd.f32 %v811, 1.0
    %v813 = vrcp.pop %v812
    %v814 = vmul.f32 1.0, %v813
    %v815 = vadd.f32 %v581, %v764
    %v816 = vxor.u32 %v815, 2147483648
    %v817 = vmul.f32 %v816, 1.442695
    %v818 = vpow.pop %v817
    %v819 = vadd.f32 %v818, 1.0
    %v820 = vrcp.pop %v819
    %v821 = vmul.f32 1.0, %v820
    %v822 = vmul.f32 %v814, %v803
    %v823 = vadd.f32 %v582, %v822
    %v824 = vtanh.pop %v823
    %v825 = vsub.f32 1.0, %v821
    %v826 = vmul.f32 %v825, %v824
    %v827 = vmul.f32 %v821, 0.0
    %v828 = vadd.f32 %v826, %v827
    %v829 = vpack.c.bf16 %v828, %v828
    %v831 = vlaneseq
    %v832 = vshrl.u32 %v831, 7
    %v833 = vsub.s32 0, %v832
    %v834 = vrot.slane %v579, %v833
    %v835 = vlaneseq
    %v836 = vshrl.u32 %v835, 7
    %v837 = vsub.s32 1, %v836
    %v838 = vrot.slane %v579, %v837
    %v839 = vlaneseq
    %v840 = vshrl.u32 %v839, 7
    %v841 = vsub.s32 2, %v840
    %v842 = vrot.slane %v579, %v841
    %v878 = vunpack.c.l.b16 %v545
    %v879 = vunpack.c.h.b16 %v545
    %v880 = vunpack.c.l.b16 %v546
    %v881 = vunpack.c.l.b16 %v547
    %v882 = vunpack.c.h.b16 %v547
    %v883 = vunpack.c.l.b16 %v548
    %v884 = vunpack.c.l.b16 %v549
    %v885 = vunpack.c.h.b16 %v549
    %v886 = vunpack.c.l.b16 %v550
    %v887 = vunpack.c.l.b16 %v551
    %v888 = vunpack.c.h.b16 %v551
    %v889 = vunpack.c.l.b16 %v552
    %v890 = vunpack.c.l.b16 %v553
    %v891 = vunpack.c.h.b16 %v553
    %v892 = vunpack.c.l.b16 %v554
    %v893 = vunpack.c.l.b16 %v555
    %v894 = vunpack.c.h.b16 %v555
    %v895 = vunpack.c.l.b16 %v556
    %v896 = vunpack.c.l.b16 %v557
    %v897 = vunpack.c.h.b16 %v557
    %v898 = vunpack.c.l.b16 %v558
    %v899 = vunpack.c.l.b16 %v559
    %v900 = vunpack.c.h.b16 %v559
    %v901 = vunpack.c.l.b16 %v560
    %v902 = vunpack.c.l.b16 %v561
    %v903 = vunpack.c.h.b16 %v561
    %v904 = vunpack.c.l.b16 %v562
    %v905 = vunpack.c.l.b16 %v563
    %v906 = vunpack.c.h.b16 %v563
    %v907 = vunpack.c.l.b16 %v564
    %v908 = vunpack.c.l.b16 %v565
    %v909 = vunpack.c.h.b16 %v565
    %v910 = vunpack.c.l.b16 %v566
    %v911 = vunpack.c.l.b16 %v567
    %v912 = vunpack.c.h.b16 %v567
    %v913 = vunpack.c.l.b16 %v568
    %v914 = vunpack.c.l.b16 %v569
    %v915 = vunpack.c.h.b16 %v569
    %v916 = vunpack.c.l.b16 %v570
    %v917 = vunpack.c.l.b16 %v571
    %v918 = vunpack.c.h.b16 %v571
    %v919 = vunpack.c.l.b16 %v572
    %v920 = vunpack.c.l.b16 %v573
    %v921 = vunpack.c.h.b16 %v573
    %v922 = vunpack.c.l.b16 %v574
    %v923 = vunpack.c.l.b16 %v575
    %v924 = vunpack.c.h.b16 %v575
    %v925 = vunpack.c.l.b16 %v576
    %v926 = vpack.c.b16 %v881, %v878
    %v927 = vpack.c.b16 %v882, %v879
    %v928 = vpack.c.b16 %v883, %v880
    %v929 = vpack.c.b16 %v887, %v884
    %v930 = vpack.c.b16 %v888, %v885
    %v931 = vpack.c.b16 %v889, %v886
    %v932 = vpack.c.b16 %v893, %v890
    %v933 = vpack.c.b16 %v894, %v891
    %v934 = vpack.c.b16 %v895, %v892
    %v935 = vpack.c.b16 %v899, %v896
    %v936 = vpack.c.b16 %v900, %v897
    %v937 = vpack.c.b16 %v901, %v898
    %v938 = vpack.c.b16 %v905, %v902
    %v939 = vpack.c.b16 %v906, %v903
    %v940 = vpack.c.b16 %v907, %v904
    %v941 = vpack.c.b16 %v911, %v908
    %v942 = vpack.c.b16 %v912, %v909
    %v943 = vpack.c.b16 %v913, %v910
    %v944 = vpack.c.b16 %v917, %v914
    %v945 = vpack.c.b16 %v918, %v915
    %v946 = vpack.c.b16 %v919, %v916
    %v947 = vpack.c.b16 %v923, %v920
    %v948 = vpack.c.b16 %v924, %v921
    %v949 = vpack.c.b16 %v925, %v922
    %974 = vmatprep.subr.bf16.mxu0 %v927
    %975 = vmatpush1.bf16.msra.mxu0 %v926
    %976 = vmatprep.subr.bf16.mxu0 %v930
    %977 = vmatpush1.bf16.msra.mxu0 %v929
    %978 = vmatprep.subr.bf16.mxu0 %v933
    %979 = vmatpush1.bf16.msra.mxu0 %v932
    %980 = vmatprep.subr.bf16.mxu0 %v936
    %981 = vmatpush1.bf16.msra.mxu0 %v935
    %982 = vmatprep.subr.bf16.mxu0 %v939
    %983 = vmatpush1.bf16.msra.mxu0 %v938
    %984 = vmatprep.subr.bf16.mxu0 %v942
    %985 = vmatpush1.bf16.msra.mxu0 %v941
    %986 = vmatprep.subr.bf16.mxu0 %v945
    %987 = vmatpush1.bf16.msra.mxu0 %v944
    %988 = vmatprep.subr.bf16.mxu0 %v948
    %989 = vmatpush1.bf16.msra.mxu0 %v947
    %990 = vmatprep.subr.bf16.mxu0 0
    %991 = vmatpush1.bf16.msra.mxu0 0
    %992 = vmatprep.subr.bf16.mxu0 0
    %993 = vmatpush1.bf16.msra.mxu0 0
    %994 = vmatprep.subr.bf16.mxu0 0
    %995 = vmatpush1.bf16.msra.mxu0 0
    %996 = vmatprep.subr.bf16.mxu0 0
    %997 = vmatpush1.bf16.msra.mxu0 0
    %998 = vmatprep.subr.bf16.mxu0 0
    %999 = vmatpush1.bf16.msra.mxu0 0
    %1000 = vmatprep.subr.bf16.mxu0 0
    %1001 = vmatpush1.bf16.msra.mxu0 0
    %1002 = vmatprep.subr.bf16.mxu0 0
    %1003 = vmatpush1.bf16.msra.mxu0 0
    %1004 = vmatprep.subr.bf16.mxu0 0
    %1005 = vmatpush1.bf16.msra.mxu0 0
    %1006 = vmatprep.mubr.bf16.mxu0 0
    %1007 = vmatmul.mubr.bf16.gmra.mrb[0].mxu0 %v829
    %v1008 = vpop.f32.mrb[0].mxu0
    %v1009 = vadd.f32 %v834, %v1008
    %v1010 = vpop.f32.mrb[0].mxu0
    %v1011 = vadd.f32 %v838, %v1010
    %v1012 = vpop.f32.mrb[0].mxu0
    %v1013 = vpop.f32.mrb[0].mxu0
    %1014 = vdwg.mxu0
    %1015 = vmatprep.subr.bf16.mxu0 0
    %1016 = vmatpush1.bf16.msra.mxu0 %v928
    %1017 = vmatprep.subr.bf16.mxu0 0
    %1018 = vmatpush1.bf16.msra.mxu0 %v931
    %1019 = vmatprep.subr.bf16.mxu0 0
    %1020 = vmatpush1.bf16.msra.mxu0 %v934
    %1021 = vmatprep.subr.bf16.mxu0 0
    %1022 = vmatpush1.bf16.msra.mxu0 %v937
    %1023 = vmatprep.subr.bf16.mxu0 0
    %1024 = vmatpush1.bf16.msra.mxu0 %v940
    %1025 = vmatprep.subr.bf16.mxu0 0
    %1026 = vmatpush1.bf16.msra.mxu0 %v943
    %1027 = vmatprep.subr.bf16.mxu0 0
    %1028 = vmatpush1.bf16.msra.mxu0 %v946
    %1029 = vmatprep.subr.bf16.mxu0 0
    %1030 = vmatpush1.bf16.msra.mxu0 %v949
    %1031 = vmatprep.subr.bf16.mxu0 0
    %1032 = vmatpush1.bf16.msra.mxu0 0
    %1033 = vmatprep.subr.bf16.mxu0 0
    %1034 = vmatpush1.bf16.msra.mxu0 0
    %1035 = vmatprep.subr.bf16.mxu0 0
    %1036 = vmatpush1.bf16.msra.mxu0 0
    %1037 = vmatprep.subr.bf16.mxu0 0
    %1038 = vmatpush1.bf16.msra.mxu0 0
    %1039 = vmatprep.subr.bf16.mxu0 0
    %1040 = vmatpush1.bf16.msra.mxu0 0
    %1041 = vmatprep.subr.bf16.mxu0 0
    %1042 = vmatpush1.bf16.msra.mxu0 0
    %1043 = vmatprep.subr.bf16.mxu0 0
    %1044 = vmatpush1.bf16.msra.mxu0 0
    %1045 = vmatprep.subr.bf16.mxu0 0
    %1046 = vmatpush1.bf16.msra.mxu0 0
    %1047 = vmatprep.mubr.bf16.mxu0 0
    %1048 = vmatmul.mubr.bf16.gmra.mrb[0].mxu0 %v829
    %v1049 = vpop.f32.mrb[0].mxu0
    %v1050 = vadd.f32 %v842, %v1049
    %v1051 = vpop.f32.mrb[0].mxu0
    %v1052 = vpop.f32.mrb[0].mxu0
    %v1053 = vpop.f32.mrb[0].mxu0
    %1054 = vdwg.mxu0
    %v1056 = vlaneseq
    %v1057 = vshrl.u32 %v1056, 7
    %v1058 = vsub.s32 0, %v1057
    %v1059 = vrot.slane %v578, %v1058
    %v1060 = vlaneseq
    %v1061 = vshrl.u32 %v1060, 7
    %v1062 = vsub.s32 1, %v1061
    %v1063 = vrot.slane %v578, %v1062
    %v1064 = vlaneseq
    %v1065 = vshrl.u32 %v1064, 7
    %v1066 = vsub.s32 2, %v1065
    %v1067 = vrot.slane %v578, %v1066
    %v1103 = vunpack.c.l.b16 %v513
    %v1104 = vunpack.c.h.b16 %v513
    %v1105 = vunpack.c.l.b16 %v514
    %v1106 = vunpack.c.l.b16 %v515
    %v1107 = vunpack.c.h.b16 %v515
    %v1108 = vunpack.c.l.b16 %v516
    %v1109 = vunpack.c.l.b16 %v517
    %v1110 = vunpack.c.h.b16 %v517
    %v1111 = vunpack.c.l.b16 %v518
    %v1112 = vunpack.c.l.b16 %v519
    %v1113 = vunpack.c.h.b16 %v519
    %v1114 = vunpack.c.l.b16 %v520
    %v1115 = vunpack.c.l.b16 %v521
    %v1116 = vunpack.c.h.b16 %v521
    %v1117 = vunpack.c.l.b16 %v522
    %v1118 = vunpack.c.l.b16 %v523
    %v1119 = vunpack.c.h.b16 %v523
    %v1120 = vunpack.c.l.b16 %v524
    %v1121 = vunpack.c.l.b16 %v525
    %v1122 = vunpack.c.h.b16 %v525
    %v1123 = vunpack.c.l.b16 %v526
    %v1124 = vunpack.c.l.b16 %v527
    %v1125 = vunpack.c.h.b16 %v527
    %v1126 = vunpack.c.l.b16 %v528
    %v1127 = vunpack.c.l.b16 %v529
    %v1128 = vunpack.c.h.b16 %v529
    %v1129 = vunpack.c.l.b16 %v530
    %v1130 = vunpack.c.l.b16 %v531
    %v1131 = vunpack.c.h.b16 %v531
    %v1132 = vunpack.c.l.b16 %v532
    %v1133 = vunpack.c.l.b16 %v533
    %v1134 = vunpack.c.h.b16 %v533
    %v1135 = vunpack.c.l.b16 %v534
    %v1136 = vunpack.c.l.b16 %v535
    %v1137 = vunpack.c.h.b16 %v535
    %v1138 = vunpack.c.l.b16 %v536
    %v1139 = vunpack.c.l.b16 %v537
    %v1140 = vunpack.c.h.b16 %v537
    %v1141 = vunpack.c.l.b16 %v538
    %v1142 = vunpack.c.l.b16 %v539
    %v1143 = vunpack.c.h.b16 %v539
    %v1144 = vunpack.c.l.b16 %v540
    %v1145 = vunpack.c.l.b16 %v541
    %v1146 = vunpack.c.h.b16 %v541
    %v1147 = vunpack.c.l.b16 %v542
    %v1148 = vunpack.c.l.b16 %v543
    %v1149 = vunpack.c.h.b16 %v543
    %v1150 = vunpack.c.l.b16 %v544
    %v1151 = vpack.c.b16 %v1106, %v1103
    %v1152 = vpack.c.b16 %v1107, %v1104
    %v1153 = vpack.c.b16 %v1108, %v1105
    %v1154 = vpack.c.b16 %v1112, %v1109
    %v1155 = vpack.c.b16 %v1113, %v1110
    %v1156 = vpack.c.b16 %v1114, %v1111
    %v1157 = vpack.c.b16 %v1118, %v1115
    %v1158 = vpack.c.b16 %v1119, %v1116
    %v1159 = vpack.c.b16 %v1120, %v1117
    %v1160 = vpack.c.b16 %v1124, %v1121
    %v1161 = vpack.c.b16 %v1125, %v1122
    %v1162 = vpack.c.b16 %v1126, %v1123
    %v1163 = vpack.c.b16 %v1130, %v1127
    %v1164 = vpack.c.b16 %v1131, %v1128
    %v1165 = vpack.c.b16 %v1132, %v1129
    %v1166 = vpack.c.b16 %v1136, %v1133
    %v1167 = vpack.c.b16 %v1137, %v1134
    %v1168 = vpack.c.b16 %v1138, %v1135
    %v1169 = vpack.c.b16 %v1142, %v1139
    %v1170 = vpack.c.b16 %v1143, %v1140
    %v1171 = vpack.c.b16 %v1144, %v1141
    %v1172 = vpack.c.b16 %v1148, %v1145
    %v1173 = vpack.c.b16 %v1149, %v1146
    %v1174 = vpack.c.b16 %v1150, %v1147
    %1199 = vmatprep.subr.bf16.mxu0 %v1152
    %1200 = vmatpush1.bf16.msra.mxu0 %v1151
    %1201 = vmatprep.subr.bf16.mxu0 %v1155
    %1202 = vmatpush1.bf16.msra.mxu0 %v1154
    %1203 = vmatprep.subr.bf16.mxu0 %v1158
    %1204 = vmatpush1.bf16.msra.mxu0 %v1157
    %1205 = vmatprep.subr.bf16.mxu0 %v1161
    %1206 = vmatpush1.bf16.msra.mxu0 %v1160
    %1207 = vmatprep.subr.bf16.mxu0 %v1164
    %1208 = vmatpush1.bf16.msra.mxu0 %v1163
    %1209 = vmatprep.subr.bf16.mxu0 %v1167
    %1210 = vmatpush1.bf16.msra.mxu0 %v1166
    %1211 = vmatprep.subr.bf16.mxu0 %v1170
    %1212 = vmatpush1.bf16.msra.mxu0 %v1169
    %1213 = vmatprep.subr.bf16.mxu0 %v1173
    %1214 = vmatpush1.bf16.msra.mxu0 %v1172
    %1215 = vmatprep.subr.bf16.mxu0 0
    %1216 = vmatpush1.bf16.msra.mxu0 0
    %1217 = vmatprep.subr.bf16.mxu0 0
    %1218 = vmatpush1.bf16.msra.mxu0 0
    %1219 = vmatprep.subr.bf16.mxu0 0
    %1220 = vmatpush1.bf16.msra.mxu0 0
    %1221 = vmatprep.subr.bf16.mxu0 0
    %1222 = vmatpush1.bf16.msra.mxu0 0
    %1223 = vmatprep.subr.bf16.mxu0 0
    %1224 = vmatpush1.bf16.msra.mxu0 0
    %1225 = vmatprep.subr.bf16.mxu0 0
    %1226 = vmatpush1.bf16.msra.mxu0 0
    %1227 = vmatprep.subr.bf16.mxu0 0
    %1228 = vmatpush1.bf16.msra.mxu0 0
    %1229 = vmatprep.subr.bf16.mxu0 0
    %1230 = vmatpush1.bf16.msra.mxu0 0
    %1231 = vmatprep.mubr.bf16.mxu0 0
    %1232 = vmatmul.mubr.bf16.gmra.mrb[0].mxu0 0
    %v1233 = vpop.f32.mrb[0].mxu0
    %v1234 = vadd.f32 %v1059, %v1233
    %v1235 = vpop.f32.mrb[0].mxu0
    %v1236 = vadd.f32 %v1063, %v1235
    %v1237 = vpop.f32.mrb[0].mxu0
    %v1238 = vpop.f32.mrb[0].mxu0
    %1239 = vdwg.mxu0
    %1240 = vmatprep.subr.bf16.mxu0 0
    %1241 = vmatpush1.bf16.msra.mxu0 %v1153
    %1242 = vmatprep.subr.bf16.mxu0 0
    %1243 = vmatpush1.bf16.msra.mxu0 %v1156
    %1244 = vmatprep.subr.bf16.mxu0 0
    %1245 = vmatpush1.bf16.msra.mxu0 %v1159
    %1246 = vmatprep.subr.bf16.mxu0 0
    %1247 = vmatpush1.bf16.msra.mxu0 %v1162
    %1248 = vmatprep.subr.bf16.mxu0 0
    %1249 = vmatpush1.bf16.msra.mxu0 %v1165
    %1250 = vmatprep.subr.bf16.mxu0 0
    %1251 = vmatpush1.bf16.msra.mxu0 %v1168
    %1252 = vmatprep.subr.bf16.mxu0 0
    %1253 = vmatpush1.bf16.msra.mxu0 %v1171
    %1254 = vmatprep.subr.bf16.mxu0 0
    %1255 = vmatpush1.bf16.msra.mxu0 %v1174
    %1256 = vmatprep.subr.bf16.mxu0 0
    %1257 = vmatpush1.bf16.msra.mxu0 0
    %1258 = vmatprep.subr.bf16.mxu0 0
    %1259 = vmatpush1.bf16.msra.mxu0 0
    %1260 = vmatprep.subr.bf16.mxu0 0
    %1261 = vmatpush1.bf16.msra.mxu0 0
    %1262 = vmatprep.subr.bf16.mxu0 0
    %1263 = vmatpush1.bf16.msra.mxu0 0
    %1264 = vmatprep.subr.bf16.mxu0 0
    %1265 = vmatpush1.bf16.msra.mxu0 0
    %1266 = vmatprep.subr.bf16.mxu0 0
    %1267 = vmatpush1.bf16.msra.mxu0 0
    %1268 = vmatprep.subr.bf16.mxu0 0
    %1269 = vmatpush1.bf16.msra.mxu0 0
    %1270 = vmatprep.subr.bf16.mxu0 0
    %1271 = vmatpush1.bf16.msra.mxu0 0
    %1272 = vmatprep.mubr.bf16.mxu0 0
    %1273 = vmatmul.mubr.bf16.gmra.mrb[0].mxu0 0
    %v1274 = vpop.f32.mrb[0].mxu0
    %v1275 = vadd.f32 %v1067, %v1274
    %v1276 = vpop.f32.mrb[0].mxu0
    %v1277 = vpop.f32.mrb[0].mxu0
    %v1278 = vpop.f32.mrb[0].mxu0
    %1279 = vdwg.mxu0
    %v1280 = vadd.f32 %v1009, %v1234
    %v1281 = vxor.u32 %v1280, 2147483648
    %v1282 = vmul.f32 %v1281, 1.442695
    %v1283 = vpow.pop %v1282
    %v1284 = vadd.f32 %v1283, 1.0
    %v1285 = vrcp.pop %v1284
    %v1286 = vmul.f32 1.0, %v1285
    %v1287 = vadd.f32 %v1011, %v1236
    %v1288 = vxor.u32 %v1287, 2147483648
    %v1289 = vmul.f32 %v1288, 1.442695
    %v1290 = vpow.pop %v1289
    %v1291 = vadd.f32 %v1290, 1.0
    %v1292 = vrcp.pop %v1291
    %v1293 = vmul.f32 1.0, %v1292
    %v1294 = vmul.f32 %v1286, %v1275
    %v1295 = vadd.f32 %v1050, %v1294
    %v1296 = vtanh.pop %v1295
    %v1297 = vsub.f32 1.0, %v1293
    %v1298 = vmul.f32 %v1297, %v1296
    %v1299 = vmul.f32 %v1293, 0.0
    %v1300 = vadd.f32 %v1298, %v1299
    %s1301 = smul.u32 1, 3
    %s1302 = smul.addr %s1301, 8
    %s1303 = scalar_lea.vmem [#allocation2], %s1302
    %v1304 = vld [vmem:[%s1303] sm:$0xff]
    %v1305 = vld [vmem:[%s1303 + $0x8] sm:$0xff]
    %v1306 = vld [vmem:[%s1303 + $0x10] sm:$0xff]
    %1307 = vmatprep.subr.bf16.mxu0 %v680
    %1308 = vmatpush1.bf16.msra.mxu0 %v679
    %1309 = vmatprep.subr.bf16.mxu0 %v683
    %1310 = vmatpush1.bf16.msra.mxu0 %v682
    %1311 = vmatprep.subr.bf16.mxu0 %v686
    %1312 = vmatpush1.bf16.msra.mxu0 %v685
    %1313 = vmatprep.subr.bf16.mxu0 %v689
    %1314 = vmatpush1.bf16.msra.mxu0 %v688
    %1315 = vmatprep.subr.bf16.mxu0 %v692
    %1316 = vmatpush1.bf16.msra.mxu0 %v691
    %1317 = vmatprep.subr.bf16.mxu0 %v695
    %1318 = vmatpush1.bf16.msra.mxu0 %v694
    %1319 = vmatprep.subr.bf16.mxu0 %v698
    %1320 = vmatpush1.bf16.msra.mxu0 %v697
    %1321 = vmatprep.subr.bf16.mxu0 %v701
    %1322 = vmatpush1.bf16.msra.mxu0 %v700
    %1323 = vmatprep.subr.bf16.mxu0 0
    %1324 = vmatpush1.bf16.msra.mxu0 0
    %1325 = vmatprep.subr.bf16.mxu0 0
    %1326 = vmatpush1.bf16.msra.mxu0 0
    %1327 = vmatprep.subr.bf16.mxu0 0
    %1328 = vmatpush1.bf16.msra.mxu0 0
    %1329 = vmatprep.subr.bf16.mxu0 0
    %1330 = vmatpush1.bf16.msra.mxu0 0
    %1331 = vmatprep.subr.bf16.mxu0 0
    %1332 = vmatpush1.bf16.msra.mxu0 0
    %1333 = vmatprep.subr.bf16.mxu0 0
    %1334 = vmatpush1.bf16.msra.mxu0 0
    %1335 = vmatprep.subr.bf16.mxu0 0
    %1336 = vmatpush1.bf16.msra.mxu0 0
    %1337 = vmatprep.subr.bf16.mxu0 0
    %1338 = vmatpush1.bf16.msra.mxu0 0
    %1339 = vmatprep.mubr.bf16.mxu0 0
    %1340 = vmatmul.mubr.bf16.gmra.mrb[0].mxu0 %v829
    %v1341 = vpop.f32.mrb[0].mxu0
    %v1342 = vadd.f32 %v587, %v1341
    %v1343 = vpop.f32.mrb[0].mxu0
    %v1344 = vadd.f32 %v591, %v1343
    %v1345 = vpop.f32.mrb[0].mxu0
    %v1346 = vpop.f32.mrb[0].mxu0
    %1347 = vdwg.mxu0
    %1348 = vmatprep.subr.bf16.mxu0 0
    %1349 = vmatpush1.bf16.msra.mxu0 %v681
    %1350 = vmatprep.subr.bf16.mxu0 0
    %1351 = vmatpush1.bf16.msra.mxu0 %v684
    %1352 = vmatprep.subr.bf16.mxu0 0
    %1353 = vmatpush1.bf16.msra.mxu0 %v687
    %1354 = vmatprep.subr.bf16.mxu0 0
    %1355 = vmatpush1.bf16.msra.mxu0 %v690
    %1356 = vmatprep.subr.bf16.mxu0 0
    %1357 = vmatpush1.bf16.msra.mxu0 %v693
    %1358 = vmatprep.subr.bf16.mxu0 0
    %1359 = vmatpush1.bf16.msra.mxu0 %v696
    %1360 = vmatprep.subr.bf16.mxu0 0
    %1361 = vmatpush1.bf16.msra.mxu0 %v699
    %1362 = vmatprep.subr.bf16.mxu0 0
    %1363 = vmatpush1.bf16.msra.mxu0 %v702
    %1364 = vmatprep.subr.bf16.mxu0 0
    %1365 = vmatpush1.bf16.msra.mxu0 0
    %1366 = vmatprep.subr.bf16.mxu0 0
    %1367 = vmatpush1.bf16.msra.mxu0 0
    %1368 = vmatprep.subr.bf16.mxu0 0
    %1369 = vmatpush1.bf16.msra.mxu0 0
    %1370 = vmatprep.subr.bf16.mxu0 0
    %1371 = vmatpush1.bf16.msra.mxu0 0
    %1372 = vmatprep.subr.bf16.mxu0 0
    %1373 = vmatpush1.bf16.msra.mxu0 0
    %1374 = vmatprep.subr.bf16.mxu0 0
    %1375 = vmatpush1.bf16.msra.mxu0 0
    %1376 = vmatprep.subr.bf16.mxu0 0
    %1377 = vmatpush1.bf16.msra.mxu0 0
    %1378 = vmatprep.subr.bf16.mxu0 0
    %1379 = vmatpush1.bf16.msra.mxu0 0
    %1380 = vmatprep.mubr.bf16.mxu0 0
    %1381 = vmatmul.mubr.bf16.gmra.mrb[0].mxu0 %v829
    %v1382 = vpop.f32.mrb[0].mxu0
    %v1383 = vadd.f32 %v595, %v1382
    %v1384 = vpop.f32.mrb[0].mxu0
    %v1385 = vpop.f32.mrb[0].mxu0
    %v1386 = vpop.f32.mrb[0].mxu0
    %1387 = vdwg.mxu0
    %v1388 = vadd.f32 %v1304, %v1342
    %v1389 = vxor.u32 %v1388, 2147483648
    %v1390 = vmul.f32 %v1389, 1.442695
    %v1391 = vpow.pop %v1390
    %v1392 = vadd.f32 %v1391, 1.0
    %v1393 = vrcp.pop %v1392
    %v1394 = vmul.f32 1.0, %v1393
    %v1395 = vadd.f32 %v1305, %v1344
    %v1396 = vxor.u32 %v1395, 2147483648
    %v1397 = vmul.f32 %v1396, 1.442695
    %v1398 = vpow.pop %v1397
    %v1399 = vadd.f32 %v1398, 1.0
    %v1400 = vrcp.pop %v1399
    %v1401 = vmul.f32 1.0, %v1400
    %v1402 = vmul.f32 %v1394, %v1383
    %v1403 = vadd.f32 %v1306, %v1402
    %v1404 = vtanh.pop %v1403
    %v1405 = vsub.f32 1.0, %v1401
    %v1406 = vmul.f32 %v1405, %v1404
    %v1407 = vmul.f32 %v1401, %v828
    %v1408 = vadd.f32 %v1406, %v1407
    %v1409 = vpack.c.bf16 %v1408, %v1408
    %1410 = vmatprep.subr.bf16.mxu0 %v927
    %1411 = vmatpush1.bf16.msra.mxu0 %v926
    %1412 = vmatprep.subr.bf16.mxu0 %v930
    %1413 = vmatpush1.bf16.msra.mxu0 %v929
    %1414 = vmatprep.subr.bf16.mxu0 %v933
    %1415 = vmatpush1.bf16.msra.mxu0 %v932
    %1416 = vmatprep.subr.bf16.mxu0 %v936
    %1417 = vmatpush1.bf16.msra.mxu0 %v935
    %1418 = vmatprep.subr.bf16.mxu0 %v939
    %1419 = vmatpush1.bf16.msra.mxu0 %v938
    %1420 = vmatprep.subr.bf16.mxu0 %v942
    %1421 = vmatpush1.bf16.msra.mxu0 %v941
    %1422 = vmatprep.subr.bf16.mxu0 %v945
    %1423 = vmatpush1.bf16.msra.mxu0 %v944
    %1424 = vmatprep.subr.bf16.mxu0 %v948
    %1425 = vmatpush1.bf16.msra.mxu0 %v947
    %1426 = vmatprep.subr.bf16.mxu0 0
    %1427 = vmatpush1.bf16.msra.mxu0 0
    %1428 = vmatprep.subr.bf16.mxu0 0
    %1429 = vmatpush1.bf16.msra.mxu0 0
    %1430 = vmatprep.subr.bf16.mxu0 0
    %1431 = vmatpush1.bf16.msra.mxu0 0
    %1432 = vmatprep.subr.bf16.mxu0 0
    %1433 = vmatpush1.bf16.msra.mxu0 0
    %1434 = vmatprep.subr.bf16.mxu0 0
    %1435 = vmatpush1.bf16.msra.mxu0 0
    %1436 = vmatprep.subr.bf16.mxu0 0
    %1437 = vmatpush1.bf16.msra.mxu0 0
    %1438 = vmatprep.subr.bf16.mxu0 0
    %1439 = vmatpush1.bf16.msra.mxu0 0
    %1440 = vmatprep.subr.bf16.mxu0 0
    %1441 = vmatpush1.bf16.msra.mxu0 0
    %1442 = vmatprep.mubr.bf16.mxu0 0
    %1443 = vmatmul.mubr.bf16.gmra.mrb[0].mxu0 %v1409
    %v1444 = vpop.f32.mrb[0].mxu0
    %v1445 = vadd.f32 %v834, %v1444
    %v1446 = vpop.f32.mrb[0].mxu0
    %v1447 = vadd.f32 %v838, %v1446
    %v1448 = vpop.f32.mrb[0].mxu0
    %v1449 = vpop.f32.mrb[0].mxu0
    %1450 = vdwg.mxu0
    %1451 = vmatprep.subr.bf16.mxu0 0
    %1452 = vmatpush1.bf16.msra.mxu0 %v928
    %1453 = vmatprep.subr.bf16.mxu0 0
    %1454 = vmatpush1.bf16.msra.mxu0 %v931
    %1455 = vmatprep.subr.bf16.mxu0 0
    %1456 = vmatpush1.bf16.msra.mxu0 %v934
    %1457 = vmatprep.subr.bf16.mxu0 0
    %1458 = vmatpush1.bf16.msra.mxu0 %v937
    %1459 = vmatprep.subr.bf16.mxu0 0
    %1460 = vmatpush1.bf16.msra.mxu0 %v940
    %1461 = vmatprep.subr.bf16.mxu0 0
    %1462 = vmatpush1.bf16.msra.mxu0 %v943
    %1463 = vmatprep.subr.bf16.mxu0 0
    %1464 = vmatpush1.bf16.msra.mxu0 %v946
    %1465 = vmatprep.subr.bf16.mxu0 0
    %1466 = vmatpush1.bf16.msra.mxu0 %v949
    %1467 = vmatprep.subr.bf16.mxu0 0
    %1468 = vmatpush1.bf16.msra.mxu0 0
    %1469 = vmatprep.subr.bf16.mxu0 0
    %1470 = vmatpush1.bf16.msra.mxu0 0
    %1471 = vmatprep.subr.bf16.mxu0 0
    %1472 = vmatpush1.bf16.msra.mxu0 0
    %1473 = vmatprep.subr.bf16.mxu0 0
    %1474 = vmatpush1.bf16.msra.mxu0 0
    %1475 = vmatprep.subr.bf16.mxu0 0
    %1476 = vmatpush1.bf16.msra.mxu0 0
    %1477 = vmatprep.subr.bf16.mxu0 0
    %1478 = vmatpush1.bf16.msra.mxu0 0
    %1479 = vmatprep.subr.bf16.mxu0 0
    %1480 = vmatpush1.bf16.msra.mxu0 0
    %1481 = vmatprep.subr.bf16.mxu0 0
    %1482 = vmatpush1.bf16.msra.mxu0 0
    %1483 = vmatprep.mubr.bf16.mxu0 0
    %1484 = vmatmul.mubr.bf16.gmra.mrb[0].mxu0 %v1409
    %v1485 = vpop.f32.mrb[0].mxu0
    %v1486 = vadd.f32 %v842, %v1485
    %v1487 = vpop.f32.mrb[0].mxu0
    %v1488 = vpop.f32.mrb[0].mxu0
    %v1489 = vpop.f32.mrb[0].mxu0
    %1490 = vdwg.mxu0
    %v1491 = vpack.c.bf16 %v1300, %v1300
    %1492 = vmatprep.subr.bf16.mxu0 %v1152
    %1493 = vmatpush1.bf16.msra.mxu0 %v1151
    %1494 = vmatprep.subr.bf16.mxu0 %v1155
    %1495 = vmatpush1.bf16.msra.mxu0 %v1154
    %1496 = vmatprep.subr.bf16.mxu0 %v1158
    %1497 = vmatpush1.bf16.msra.mxu0 %v1157
    %1498 = vmatprep.subr.bf16.mxu0 %v1161
    %1499 = vmatpush1.bf16.msra.mxu0 %v1160
    %1500 = vmatprep.subr.bf16.mxu0 %v1164
    %1501 = vmatpush1.bf16.msra.mxu0 %v1163
    %1502 = vmatprep.subr.bf16.mxu0 %v1167
    %1503 = vmatpush1.bf16.msra.mxu0 %v1166
    %1504 = vmatprep.subr.bf16.mxu0 %v1170
    %1505 = vmatpush1.bf16.msra.mxu0 %v1169
    %1506 = vmatprep.subr.bf16.mxu0 %v1173
    %1507 = vmatpush1.bf16.msra.mxu0 %v1172
    %1508 = vmatprep.subr.bf16.mxu0 0
    %1509 = vmatpush1.bf16.msra.mxu0 0
    %1510 = vmatprep.subr.bf16.mxu0 0
    %1511 = vmatpush1.bf16.msra.mxu0 0
    %1512 = vmatprep.subr.bf16.mxu0 0
    %1513 = vmatpush1.bf16.msra.mxu0 0
    %1514 = vmatprep.subr.bf16.mxu0 0
    %1515 = vmatpush1.bf16.msra.mxu0 0
    %1516 = vmatprep.subr.bf16.mxu0 0
    %1517 = vmatpush1.bf16.msra.mxu0 0
    %1518 = vmatprep.subr.bf16.mxu0 0
    %1519 = vmatpush1.bf16.msra.mxu0 0
    %1520 = vmatprep.subr.bf16.mxu0 0
    %1521 = vmatpush1.bf16.msra.mxu0 0
    %1522 = vmatprep.subr.bf16.mxu0 0
    %1523 = vmatpush1.bf16.msra.mxu0 0
    %1524 = vmatprep.mubr.bf16.mxu0 0
    %1525 = vmatmul.mubr.bf16.gmra.mrb[0].mxu0 %v1491
    %v1526 = vpop.f32.mrb[0].mxu0
    %v1527 = vadd.f32 %v1059, %v1526
    %v1528 = vpop.f32.mrb[0].mxu0
    %v1529 = vadd.f32 %v1063, %v1528
    %v1530 = vpop.f32.mrb[0].mxu0
    %v1531 = vpop.f32.mrb[0].mxu0
    %1532 = vdwg.mxu0
    %1533 = vmatprep.subr.bf16.mxu0 0
    %1534 = vmatpush1.bf16.msra.mxu0 %v1153
    %1535 = vmatprep.subr.bf16.mxu0 0
    %1536 = vmatpush1.bf16.msra.mxu0 %v1156
    %1537 = vmatprep.subr.bf16.mxu0 0
    %1538 = vmatpush1.bf16.msra.mxu0 %v1159
    %1539 = vmatprep.subr.bf16.mxu0 0
    %1540 = vmatpush1.bf16.msra.mxu0 %v1162
    %1541 = vmatprep.subr.bf16.mxu0 0
    %1542 = vmatpush1.bf16.msra.mxu0 %v1165
    %1543 = vmatprep.subr.bf16.mxu0 0
    %1544 = vmatpush1.bf16.msra.mxu0 %v1168
    %1545 = vmatprep.subr.bf16.mxu0 0
    %1546 = vmatpush1.bf16.msra.mxu0 %v1171
    %1547 = vmatprep.subr.bf16.mxu0 0
    %1548 = vmatpush1.bf16.msra.mxu0 %v1174
    %1549 = vmatprep.subr.bf16.mxu0 0
    %1550 = vmatpush1.bf16.msra.mxu0 0
    %1551 = vmatprep.subr.bf16.mxu0 0
    %1552 = vmatpush1.bf16.msra.mxu0 0
    %1553 = vmatprep.subr.bf16.mxu0 0
    %1554 = vmatpush1.bf16.msra.mxu0 0
    %1555 = vmatprep.subr.bf16.mxu0 0
    %1556 = vmatpush1.bf16.msra.mxu0 0
    %1557 = vmatprep.subr.bf16.mxu0 0
    %1558 = vmatpush1.bf16.msra.mxu0 0
    %1559 = vmatprep.subr.bf16.mxu0 0
    %1560 = vmatpush1.bf16.msra.mxu0 0
    %1561 = vmatprep.subr.bf16.mxu0 0
    %1562 = vmatpush1.bf16.msra.mxu0 0
    %1563 = vmatprep.subr.bf16.mxu0 0
    %1564 = vmatpush1.bf16.msra.mxu0 0
    %1565 = vmatprep.mubr.bf16.mxu0 0
    %1566 = vmatmul.mubr.bf16.gmra.mrb[0].mxu0 %v1491
    %v1567 = vpop.f32.mrb[0].mxu0
    %v1568 = vadd.f32 %v1067, %v1567
    %v1569 = vpop.f32.mrb[0].mxu0
    %v1570 = vpop.f32.mrb[0].mxu0
    %v1571 = vpop.f32.mrb[0].mxu0
    %1572 = vdwg.mxu0
    %v1573 = vadd.f32 %v1445, %v1527
    %v1574 = vxor.u32 %v1573, 2147483648
    %v1575 = vmul.f32 %v1574, 1.442695
    %v1576 = vpow.pop %v1575
    %v1577 = vadd.f32 %v1576, 1.0
    %v1578 = vrcp.pop %v1577
    %v1579 = vmul.f32 1.0, %v1578
    %v1580 = vadd.f32 %v1447, %v1529
    %v1581 = vxor.u32 %v1580, 2147483648
    %v1582 = vmul.f32 %v1581, 1.442695
    %v1583 = vpow.pop %v1582
    %v1584 = vadd.f32 %v1583, 1.0
    %v1585 = vrcp.pop %v1584
    %v1586 = vmul.f32 1.0, %v1585
    %v1587 = vmul.f32 %v1579, %v1568
    %v1588 = vadd.f32 %v1486, %v1587
    %v1589 = vtanh.pop %v1588
    %v1590 = vsub.f32 1.0, %v1586
    %v1591 = vmul.f32 %v1590, %v1589
    %v1592 = vmul.f32 %v1586, %v1300
    %v1593 = vadd.f32 %v1591, %v1592
    %s1594 = smul.u32 2, 3
    %s1595 = smul.addr %s1594, 8
    %s1596 = scalar_lea.vmem [#allocation2], %s1595
    %v1597 = vld [vmem:[%s1596] sm:$0xff]
    %v1598 = vld [vmem:[%s1596 + $0x8] sm:$0xff]
    %v1599 = vld [vmem:[%s1596 + $0x10] sm:$0xff]
    %1600 = vmatprep.subr.bf16.mxu0 %v680
    %1601 = vmatpush1.bf16.msra.mxu0 %v679
    %1602 = vmatprep.subr.bf16.mxu0 %v683
    %1603 = vmatpush1.bf16.msra.mxu0 %v682
    %1604 = vmatprep.subr.bf16.mxu0 %v686
    %1605 = vmatpush1.bf16.msra.mxu0 %v685
    %1606 = vmatprep.subr.bf16.mxu0 %v689
    %1607 = vmatpush1.bf16.msra.mxu0 %v688
    %1608 = vmatprep.subr.bf16.mxu0 %v692
    %1609 = vmatpush1.bf16.msra.mxu0 %v691
    %1610 = vmatprep.subr.bf16.mxu0 %v695
    %1611 = vmatpush1.bf16.msra.mxu0 %v694
    %1612 = vmatprep.subr.bf16.mxu0 %v698
    %1613 = vmatpush1.bf16.msra.mxu0 %v697
    %1614 = vmatprep.subr.bf16.mxu0 %v701
    %1615 = vmatpush1.bf16.msra.mxu0 %v700
    %1616 = vmatprep.subr.bf16.mxu0 0
    %1617 = vmatpush1.bf16.msra.mxu0 0
    %1618 = vmatprep.subr.bf16.mxu0 0
    %1619 = vmatpush1.bf16.msra.mxu0 0
    %1620 = vmatprep.subr.bf16.mxu0 0
    %1621 = vmatpush1.bf16.msra.mxu0 0
    %1622 = vmatprep.subr.bf16.mxu0 0
    %1623 = vmatpush1.bf16.msra.mxu0 0
    %1624 = vmatprep.subr.bf16.mxu0 0
    %1625 = vmatpush1.bf16.msra.mxu0 0
    %1626 = vmatprep.subr.bf16.mxu0 0
    %1627 = vmatpush1.bf16.msra.mxu0 0
    %1628 = vmatprep.subr.bf16.mxu0 0
    %1629 = vmatpush1.bf16.msra.mxu0 0
    %1630 = vmatprep.subr.bf16.mxu0 0
    %1631 = vmatpush1.bf16.msra.mxu0 0
    %1632 = vmatprep.mubr.bf16.mxu0 0
    %1633 = vmatmul.mubr.bf16.gmra.mrb[0].mxu0 %v1409
    %v1634 = vpop.f32.mrb[0].mxu0
    %v1635 = vadd.f32 %v587, %v1634
    %v1636 = vpop.f32.mrb[0].mxu0
    %v1637 = vadd.f32 %v591, %v1636
    %v1638 = vpop.f32.mrb[0].mxu0
    %v1639 = vpop.f32.mrb[0].mxu0
    %1640 = vdwg.mxu0
    %1641 = vmatprep.subr.bf16.mxu0 0
    %1642 = vmatpush1.bf16.msra.mxu0 %v681
    %1643 = vmatprep.subr.bf16.mxu0 0
    %1644 = vmatpush1.bf16.msra.mxu0 %v684
    %1645 = vmatprep.subr.bf16.mxu0 0
    %1646 = vmatpush1.bf16.msra.mxu0 %v687
    %1647 = vmatprep.subr.bf16.mxu0 0
    %1648 = vmatpush1.bf16.msra.mxu0 %v690
    %1649 = vmatprep.subr.bf16.mxu0 0
    %1650 = vmatpush1.bf16.msra.mxu0 %v693
    %1651 = vmatprep.subr.bf16.mxu0 0
    %1652 = vmatpush1.bf16.msra.mxu0 %v696
    %1653 = vmatprep.subr.bf16.mxu0 0
    %1654 = vmatpush1.bf16.msra.mxu0 %v699
    %1655 = vmatprep.subr.bf16.mxu0 0
    %1656 = vmatpush1.bf16.msra.mxu0 %v702
    %1657 = vmatprep.subr.bf16.mxu0 0
    %1658 = vmatpush1.bf16.msra.mxu0 0
    %1659 = vmatprep.subr.bf16.mxu0 0
    %1660 = vmatpush1.bf16.msra.mxu0 0
    %1661 = vmatprep.subr.bf16.mxu0 0
    %1662 = vmatpush1.bf16.msra.mxu0 0
    %1663 = vmatprep.subr.bf16.mxu0 0
    %1664 = vmatpush1.bf16.msra.mxu0 0
    %1665 = vmatprep.subr.bf16.mxu0 0
    %1666 = vmatpush1.bf16.msra.mxu0 0
    %1667 = vmatprep.subr.bf16.mxu0 0
    %1668 = vmatpush1.bf16.msra.mxu0 0
    %1669 = vmatprep.subr.bf16.mxu0 0
    %1670 = vmatpush1.bf16.msra.mxu0 0
    %1671 = vmatprep.subr.bf16.mxu0 0
    %1672 = vmatpush1.bf16.msra.mxu0 0
    %1673 = vmatprep.mubr.bf16.mxu0 0
    %1674 = vmatmul.mubr.bf16.gmra.mrb[0].mxu0 %v1409
    %v1675 = vpop.f32.mrb[0].mxu0
    %v1676 = vadd.f32 %v595, %v1675
    %v1677 = vpop.f32.mrb[0].mxu0
    %v1678 = vpop.f32.mrb[0].mxu0
    %v1679 = vpop.f32.mrb[0].mxu0
    %1680 = vdwg.mxu0
    %v1681 = vadd.f32 %v1597, %v1635
    %v1682 = vxor.u32 %v1681, 2147483648
    %v1683 = vmul.f32 %v1682, 1.442695
    %v1684 = vpow.pop %v1683
    %v1685 = vadd.f32 %v1684, 1.0
    %v1686 = vrcp.pop %v1685
    %v1687 = vmul.f32 1.0, %v1686
    %v1688 = vadd.f32 %v1598, %v1637
    %v1689 = vxor.u32 %v1688, 2147483648
    %v1690 = vmul.f32 %v1689, 1.442695
    %v1691 = vpow.pop %v1690
    %v1692 = vadd.f32 %v1691, 1.0
    %v1693 = vrcp.pop %v1692
    %v1694 = vmul.f32 1.0, %v1693
    %v1695 = vmul.f32 %v1687, %v1676
    %v1696 = vadd.f32 %v1599, %v1695
    %v1697 = vtanh.pop %v1696
    %v1698 = vsub.f32 1.0, %v1694
    %v1699 = vmul.f32 %v1698, %v1697
    %v1700 = vmul.f32 %v1694, %v1408
    %v1701 = vadd.f32 %v1699, %v1700
    %v1702 = vpack.c.bf16 %v1701, %v1701
    %1703 = vmatprep.subr.bf16.mxu0 %v927
    %1704 = vmatpush1.bf16.msra.mxu0 %v926
    %1705 = vmatprep.subr.bf16.mxu0 %v930
    %1706 = vmatpush1.bf16.msra.mxu0 %v929
    %1707 = vmatprep.subr.bf16.mxu0 %v933
    %1708 = vmatpush1.bf16.msra.mxu0 %v932
    %1709 = vmatprep.subr.bf16.mxu0 %v936
    %1710 = vmatpush1.bf16.msra.mxu0 %v935
    %1711 = vmatprep.subr.bf16.mxu0 %v939
    %1712 = vmatpush1.bf16.msra.mxu0 %v938
    %1713 = vmatprep.subr.bf16.mxu0 %v942
    %1714 = vmatpush1.bf16.msra.mxu0 %v941
    %1715 = vmatprep.subr.bf16.mxu0 %v945
    %1716 = vmatpush1.bf16.msra.mxu0 %v944
    %1717 = vmatprep.subr.bf16.mxu0 %v948
    %1718 = vmatpush1.bf16.msra.mxu0 %v947
    %1719 = vmatprep.subr.bf16.mxu0 0
    %1720 = vmatpush1.bf16.msra.mxu0 0
    %1721 = vmatprep.subr.bf16.mxu0 0
    %1722 = vmatpush1.bf16.msra.mxu0 0
    %1723 = vmatprep.subr.bf16.mxu0 0
    %1724 = vmatpush1.bf16.msra.mxu0 0
    %1725 = vmatprep.subr.bf16.mxu0 0
    %1726 = vmatpush1.bf16.msra.mxu0 0
    %1727 = vmatprep.subr.bf16.mxu0 0
    %1728 = vmatpush1.bf16.msra.mxu0 0
    %1729 = vmatprep.subr.bf16.mxu0 0
    %1730 = vmatpush1.bf16.msra.mxu0 0
    %1731 = vmatprep.subr.bf16.mxu0 0
    %1732 = vmatpush1.bf16.msra.mxu0 0
    %1733 = vmatprep.subr.bf16.mxu0 0
    %1734 = vmatpush1.bf16.msra.mxu0 0
    %1735 = vmatprep.mubr.bf16.mxu0 0
    %1736 = vmatmul.mubr.bf16.gmra.mrb[0].mxu0 %v1702
    %v1737 = vpop.f32.mrb[0].mxu0
    %v1738 = vadd.f32 %v834, %v1737
    %v1739 = vpop.f32.mrb[0].mxu0
    %v1740 = vadd.f32 %v838, %v1739
    %v1741 = vpop.f32.mrb[0].mxu0
    %v1742 = vpop.f32.mrb[0].mxu0
    %1743 = vdwg.mxu0
    %1744 = vmatprep.subr.bf16.mxu0 0
    %1745 = vmatpush1.bf16.msra.mxu0 %v928
    %1746 = vmatprep.subr.bf16.mxu0 0
    %1747 = vmatpush1.bf16.msra.mxu0 %v931
    %1748 = vmatprep.subr.bf16.mxu0 0
    %1749 = vmatpush1.bf16.msra.mxu0 %v934
    %1750 = vmatprep.subr.bf16.mxu0 0
    %1751 = vmatpush1.bf16.msra.mxu0 %v937
    %1752 = vmatprep.subr.bf16.mxu0 0
    %1753 = vmatpush1.bf16.msra.mxu0 %v940
    %1754 = vmatprep.subr.bf16.mxu0 0
    %1755 = vmatpush1.bf16.msra.mxu0 %v943
    %1756 = vmatprep.subr.bf16.mxu0 0
    %1757 = vmatpush1.bf16.msra.mxu0 %v946
    %1758 = vmatprep.subr.bf16.mxu0 0
    %1759 = vmatpush1.bf16.msra.mxu0 %v949
    %1760 = vmatprep.subr.bf16.mxu0 0
    %1761 = vmatpush1.bf16.msra.mxu0 0
    %1762 = vmatprep.subr.bf16.mxu0 0
    %1763 = vmatpush1.bf16.msra.mxu0 0
    %1764 = vmatprep.subr.bf16.mxu0 0
    %1765 = vmatpush1.bf16.msra.mxu0 0
    %1766 = vmatprep.subr.bf16.mxu0 0
    %1767 = vmatpush1.bf16.msra.mxu0 0
    %1768 = vmatprep.subr.bf16.mxu0 0
    %1769 = vmatpush1.bf16.msra.mxu0 0
    %1770 = vmatprep.subr.bf16.mxu0 0
    %1771 = vmatpush1.bf16.msra.mxu0 0
    %1772 = vmatprep.subr.bf16.mxu0 0
    %1773 = vmatpush1.bf16.msra.mxu0 0
    %1774 = vmatprep.subr.bf16.mxu0 0
    %1775 = vmatpush1.bf16.msra.mxu0 0
    %1776 = vmatprep.mubr.bf16.mxu0 0
    %1777 = vmatmul.mubr.bf16.gmra.mrb[0].mxu0 %v1702
    %v1778 = vpop.f32.mrb[0].mxu0
    %v1779 = vadd.f32 %v842, %v1778
    %v1780 = vpop.f32.mrb[0].mxu0
    %v1781 = vpop.f32.mrb[0].mxu0
    %v1782 = vpop.f32.mrb[0].mxu0
    %1783 = vdwg.mxu0
    %v1784 = vpack.c.bf16 %v1593, %v1593
    %1785 = vmatprep.subr.bf16.mxu0 %v1152
    %1786 = vmatpush1.bf16.msra.mxu0 %v1151
    %1787 = vmatprep.subr.bf16.mxu0 %v1155
    %1788 = vmatpush1.bf16.msra.mxu0 %v1154
    %1789 = vmatprep.subr.bf16.mxu0 %v1158
    %1790 = vmatpush1.bf16.msra.mxu0 %v1157
    %1791 = vmatprep.subr.bf16.mxu0 %v1161
    %1792 = vmatpush1.bf16.msra.mxu0 %v1160
    %1793 = vmatprep.subr.bf16.mxu0 %v1164
    %1794 = vmatpush1.bf16.msra.mxu0 %v1163
    %1795 = vmatprep.subr.bf16.mxu0 %v1167
    %1796 = vmatpush1.bf16.msra.mxu0 %v1166
    %1797 = vmatprep.subr.bf16.mxu0 %v1170
    %1798 = vmatpush1.bf16.msra.mxu0 %v1169
    %1799 = vmatprep.subr.bf16.mxu0 %v1173
    %1800 = vmatpush1.bf16.msra.mxu0 %v1172
    %1801 = vmatprep.subr.bf16.mxu0 0
    %1802 = vmatpush1.bf16.msra.mxu0 0
    %1803 = vmatprep.subr.bf16.mxu0 0
    %1804 = vmatpush1.bf16.msra.mxu0 0
    %1805 = vmatprep.subr.bf16.mxu0 0
    %1806 = vmatpush1.bf16.msra.mxu0 0
    %1807 = vmatprep.subr.bf16.mxu0 0
    %1808 = vmatpush1.bf16.msra.mxu0 0
    %1809 = vmatprep.subr.bf16.mxu0 0
    %1810 = vmatpush1.bf16.msra.mxu0 0
    %1811 = vmatprep.subr.bf16.mxu0 0
    %1812 = vmatpush1.bf16.msra.mxu0 0
    %1813 = vmatprep.subr.bf16.mxu0 0
    %1814 = vmatpush1.bf16.msra.mxu0 0
    %1815 = vmatprep.subr.bf16.mxu0 0
    %1816 = vmatpush1.bf16.msra.mxu0 0
    %1817 = vmatprep.mubr.bf16.mxu0 0
    %1818 = vmatmul.mubr.bf16.gmra.mrb[0].mxu0 %v1784
    %v1819 = vpop.f32.mrb[0].mxu0
    %v1820 = vadd.f32 %v1059, %v1819
    %v1821 = vpop.f32.mrb[0].mxu0
    %v1822 = vadd.f32 %v1063, %v1821
    %v1823 = vpop.f32.mrb[0].mxu0
    %v1824 = vpop.f32.mrb[0].mxu0
    %1825 = vdwg.mxu0
    %1826 = vmatprep.subr.bf16.mxu0 0
    %1827 = vmatpush1.bf16.msra.mxu0 %v1153
    %1828 = vmatprep.subr.bf16.mxu0 0
    %1829 = vmatpush1.bf16.msra.mxu0 %v1156
    %1830 = vmatprep.subr.bf16.mxu0 0
    %1831 = vmatpush1.bf16.msra.mxu0 %v1159
    %1832 = vmatprep.subr.bf16.mxu0 0
    %1833 = vmatpush1.bf16.msra.mxu0 %v1162
    %1834 = vmatprep.subr.bf16.mxu0 0
    %1835 = vmatpush1.bf16.msra.mxu0 %v1165
    %1836 = vmatprep.subr.bf16.mxu0 0
    %1837 = vmatpush1.bf16.msra.mxu0 %v1168
    %1838 = vmatprep.subr.bf16.mxu0 0
    %1839 = vmatpush1.bf16.msra.mxu0 %v1171
    %1840 = vmatprep.subr.bf16.mxu0 0
    %1841 = vmatpush1.bf16.msra.mxu0 %v1174
    %1842 = vmatprep.subr.bf16.mxu0 0
    %1843 = vmatpush1.bf16.msra.mxu0 0
    %1844 = vmatprep.subr.bf16.mxu0 0
    %1845 = vmatpush1.bf16.msra.mxu0 0
    %1846 = vmatprep.subr.bf16.mxu0 0
    %1847 = vmatpush1.bf16.msra.mxu0 0
    %1848 = vmatprep.subr.bf16.mxu0 0
    %1849 = vmatpush1.bf16.msra.mxu0 0
    %1850 = vmatprep.subr.bf16.mxu0 0
    %1851 = vmatpush1.bf16.msra.mxu0 0
    %1852 = vmatprep.subr.bf16.mxu0 0
    %1853 = vmatpush1.bf16.msra.mxu0 0
    %1854 = vmatprep.subr.bf16.mxu0 0
    %1855 = vmatpush1.bf16.msra.mxu0 0
    %1856 = vmatprep.subr.bf16.mxu0 0
    %1857 = vmatpush1.bf16.msra.mxu0 0
    %1858 = vmatprep.mubr.bf16.mxu0 0
    %1859 = vmatmul.mubr.bf16.gmra.mrb[0].mxu0 %v1784
    %v1860 = vpop.f32.mrb[0].mxu0
    %v1861 = vadd.f32 %v1067, %v1860
    %v1862 = vpop.f32.mrb[0].mxu0
    %v1863 = vpop.f32.mrb[0].mxu0
    %v1864 = vpop.f32.mrb[0].mxu0
    %1865 = vdwg.mxu0
    %v1866 = vadd.f32 %v1738, %v1820
    %v1867 = vxor.u32 %v1866, 2147483648
    %v1868 = vmul.f32 %v1867, 1.442695
    %v1869 = vpow.pop %v1868
    %v1870 = vadd.f32 %v1869, 1.0
    %v1871 = vrcp.pop %v1870
    %v1872 = vmul.f32 1.0, %v1871
    %v1873 = vadd.f32 %v1740, %v1822
    %v1874 = vxor.u32 %v1873, 2147483648
    %v1875 = vmul.f32 %v1874, 1.442695
    %v1876 = vpow.pop %v1875
    %v1877 = vadd.f32 %v1876, 1.0
    %v1878 = vrcp.pop %v1877
    %v1879 = vmul.f32 1.0, %v1878
    %v1880 = vmul.f32 %v1872, %v1861
    %v1881 = vadd.f32 %v1779, %v1880
    %v1882 = vtanh.pop %v1881
    %v1883 = vsub.f32 1.0, %v1879
    %v1884 = vmul.f32 %v1883, %v1882
    %v1885 = vmul.f32 %v1879, %v1593
    %v1886 = vadd.f32 %v1884, %v1885
    %s1887 = smul.u32 3, 3
    %s1888 = smul.addr %s1887, 8
    %s1889 = scalar_lea.vmem [#allocation2], %s1888
    %v1890 = vld [vmem:[%s1889] sm:$0xff]
    %v1891 = vld [vmem:[%s1889 + $0x8] sm:$0xff]
    %v1892 = vld [vmem:[%s1889 + $0x10] sm:$0xff]
    %1893 = vmatprep.subr.bf16.mxu0 %v680
    %1894 = vmatpush1.bf16.msra.mxu0 %v679
    %1895 = vmatprep.subr.bf16.mxu0 %v683
    %1896 = vmatpush1.bf16.msra.mxu0 %v682
    %1897 = vmatprep.subr.bf16.mxu0 %v686
    %1898 = vmatpush1.bf16.msra.mxu0 %v685
    %1899 = vmatprep.subr.bf16.mxu0 %v689
    %1900 = vmatpush1.bf16.msra.mxu0 %v688
    %1901 = vmatprep.subr.bf16.mxu0 %v692
    %1902 = vmatpush1.bf16.msra.mxu0 %v691
    %1903 = vmatprep.subr.bf16.mxu0 %v695
    %1904 = vmatpush1.bf16.msra.mxu0 %v694
    %1905 = vmatprep.subr.bf16.mxu0 %v698
    %1906 = vmatpush1.bf16.msra.mxu0 %v697
    %1907 = vmatprep.subr.bf16.mxu0 %v701
    %1908 = vmatpush1.bf16.msra.mxu0 %v700
    %1909 = vmatprep.subr.bf16.mxu0 0
    %1910 = vmatpush1.bf16.msra.mxu0 0
    %1911 = vmatprep.subr.bf16.mxu0 0
    %1912 = vmatpush1.bf16.msra.mxu0 0
    %1913 = vmatprep.subr.bf16.mxu0 0
    %1914 = vmatpush1.bf16.msra.mxu0 0
    %1915 = vmatprep.subr.bf16.mxu0 0
    %1916 = vmatpush1.bf16.msra.mxu0 0
    %1917 = vmatprep.subr.bf16.mxu0 0
    %1918 = vmatpush1.bf16.msra.mxu0 0
    %1919 = vmatprep.subr.bf16.mxu0 0
    %1920 = vmatpush1.bf16.msra.mxu0 0
    %1921 = vmatprep.subr.bf16.mxu0 0
    %1922 = vmatpush1.bf16.msra.mxu0 0
    %1923 = vmatprep.subr.bf16.mxu0 0
    %1924 = vmatpush1.bf16.msra.mxu0 0
    %1925 = vmatprep.mubr.bf16.mxu0 0
    %1926 = vmatmul.mubr.bf16.gmra.mrb[0].mxu0 %v1702
    %v1927 = vpop.f32.mrb[0].mxu0
    %v1928 = vadd.f32 %v587, %v1927
    %v1929 = vpop.f32.mrb[0].mxu0
    %v1930 = vadd.f32 %v591, %v1929
    %v1931 = vpop.f32.mrb[0].mxu0
    %v1932 = vpop.f32.mrb[0].mxu0
    %1933 = vdwg.mxu0
    %1934 = vmatprep.subr.bf16.mxu0 0
    %1935 = vmatpush1.bf16.msra.mxu0 %v681
    %1936 = vmatprep.subr.bf16.mxu0 0
    %1937 = vmatpush1.bf16.msra.mxu0 %v684
    %1938 = vmatprep.subr.bf16.mxu0 0
    %1939 = vmatpush1.bf16.msra.mxu0 %v687
    %1940 = vmatprep.subr.bf16.mxu0 0
    %1941 = vmatpush1.bf16.msra.mxu0 %v690
    %1942 = vmatprep.subr.bf16.mxu0 0
    %1943 = vmatpush1.bf16.msra.mxu0 %v693
    %1944 = vmatprep.subr.bf16.mxu0 0
    %1945 = vmatpush1.bf16.msra.mxu0 %v696
    %1946 = vmatprep.subr.bf16.mxu0 0
    %1947 = vmatpush1.bf16.msra.mxu0 %v699
    %1948 = vmatprep.subr.bf16.mxu0 0
    %1949 = vmatpush1.bf16.msra.mxu0 %v702
    %1950 = vmatprep.subr.bf16.mxu0 0
    %1951 = vmatpush1.bf16.msra.mxu0 0
    %1952 = vmatprep.subr.bf16.mxu0 0
    %1953 = vmatpush1.bf16.msra.mxu0 0
    %1954 = vmatprep.subr.bf16.mxu0 0
    %1955 = vmatpush1.bf16.msra.mxu0 0
    %1956 = vmatprep.subr.bf16.mxu0 0
    %1957 = vmatpush1.bf16.msra.mxu0 0
    %1958 = vmatprep.subr.bf16.mxu0 0
    %1959 = vmatpush1.bf16.msra.mxu0 0
    %1960 = vmatprep.subr.bf16.mxu0 0
    %1961 = vmatpush1.bf16.msra.mxu0 0
    %1962 = vmatprep.subr.bf16.mxu0 0
    %1963 = vmatpush1.bf16.msra.mxu0 0
    %1964 = vmatprep.subr.bf16.mxu0 0
    %1965 = vmatpush1.bf16.msra.mxu0 0
    %1966 = vmatprep.mubr.bf16.mxu0 0
    %1967 = vmatmul.mubr.bf16.gmra.mrb[0].mxu0 %v1702
    %v1968 = vpop.f32.mrb[0].mxu0
    %v1969 = vadd.f32 %v595, %v1968
    %v1970 = vpop.f32.mrb[0].mxu0
    %v1971 = vpop.f32.mrb[0].mxu0
    %v1972 = vpop.f32.mrb[0].mxu0
    %1973 = vdwg.mxu0
    %v1974 = vadd.f32 %v1890, %v1928
    %v1975 = vxor.u32 %v1974, 2147483648
    %v1976 = vmul.f32 %v1975, 1.442695
    %v1977 = vpow.pop %v1976
    %v1978 = vadd.f32 %v1977, 1.0
    %v1979 = vrcp.pop %v1978
    %v1980 = vmul.f32 1.0, %v1979
    %v1981 = vadd.f32 %v1891, %v1930
    %v1982 = vxor.u32 %v1981, 2147483648
    %v1983 = vmul.f32 %v1982, 1.442695
    %v1984 = vpow.pop %v1983
    %v1985 = vadd.f32 %v1984, 1.0
    %v1986 = vrcp.pop %v1985
    %v1987 = vmul.f32 1.0, %v1986
    %v1988 = vmul.f32 %v1980, %v1969
    %v1989 = vadd.f32 %v1892, %v1988
    %v1990 = vtanh.pop %v1989
    %v1991 = vsub.f32 1.0, %v1987
    %v1992 = vmul.f32 %v1991, %v1990
    %v1993 = vmul.f32 %v1987, %v1701
    %v1994 = vadd.f32 %v1992, %v1993
    %v1995 = vpack.c.bf16 %v1994, %v1994
    %1996 = vmatprep.subr.bf16.mxu0 %v927
    %1997 = vmatpush1.bf16.msra.mxu0 %v926
    %1998 = vmatprep.subr.bf16.mxu0 %v930
    %1999 = vmatpush1.bf16.msra.mxu0 %v929
    %2000 = vmatprep.subr.bf16.mxu0 %v933
    %2001 = vmatpush1.bf16.msra.mxu0 %v932
    %2002 = vmatprep.subr.bf16.mxu0 %v936
    %2003 = vmatpush1.bf16.msra.mxu0 %v935
    %2004 = vmatprep.subr.bf16.mxu0 %v939
    %2005 = vmatpush1.bf16.msra.mxu0 %v938
    %2006 = vmatprep.subr.bf16.mxu0 %v942
    %2007 = vmatpush1.bf16.msra.mxu0 %v941
    %2008 = vmatprep.subr.bf16.mxu0 %v945
    %2009 = vmatpush1.bf16.msra.mxu0 %v944
    %2010 = vmatprep.subr.bf16.mxu0 %v948
    %2011 = vmatpush1.bf16.msra.mxu0 %v947
    %2012 = vmatprep.subr.bf16.mxu0 0
    %2013 = vmatpush1.bf16.msra.mxu0 0
    %2014 = vmatprep.subr.bf16.mxu0 0
    %2015 = vmatpush1.bf16.msra.mxu0 0
    %2016 = vmatprep.subr.bf16.mxu0 0
    %2017 = vmatpush1.bf16.msra.mxu0 0
    %2018 = vmatprep.subr.bf16.mxu0 0
    %2019 = vmatpush1.bf16.msra.mxu0 0
    %2020 = vmatprep.subr.bf16.mxu0 0
    %2021 = vmatpush1.bf16.msra.mxu0 0
    %2022 = vmatprep.subr.bf16.mxu0 0
    %2023 = vmatpush1.bf16.msra.mxu0 0
    %2024 = vmatprep.subr.bf16.mxu0 0
    %2025 = vmatpush1.bf16.msra.mxu0 0
    %2026 = vmatprep.subr.bf16.mxu0 0
    %2027 = vmatpush1.bf16.msra.mxu0 0
    %2028 = vmatprep.mubr.bf16.mxu0 0
    %2029 = vmatmul.mubr.bf16.gmra.mrb[0].mxu0 %v1995
    %v2030 = vpop.f32.mrb[0].mxu0
    %v2031 = vadd.f32 %v834, %v2030
    %v2032 = vpop.f32.mrb[0].mxu0
    %v2033 = vadd.f32 %v838, %v2032
    %v2034 = vpop.f32.mrb[0].mxu0
    %v2035 = vpop.f32.mrb[0].mxu0
    %2036 = vdwg.mxu0
    %2037 = vmatprep.subr.bf16.mxu0 0
    %2038 = vmatpush1.bf16.msra.mxu0 %v928
    %2039 = vmatprep.subr.bf16.mxu0 0
    %2040 = vmatpush1.bf16.msra.mxu0 %v931
    %2041 = vmatprep.subr.bf16.mxu0 0
    %2042 = vmatpush1.bf16.msra.mxu0 %v934
    %2043 = vmatprep.subr.bf16.mxu0 0
    %2044 = vmatpush1.bf16.msra.mxu0 %v937
    %2045 = vmatprep.subr.bf16.mxu0 0
    %2046 = vmatpush1.bf16.msra.mxu0 %v940
    %2047 = vmatprep.subr.bf16.mxu0 0
    %2048 = vmatpush1.bf16.msra.mxu0 %v943
    %2049 = vmatprep.subr.bf16.mxu0 0
    %2050 = vmatpush1.bf16.msra.mxu0 %v946
    %2051 = vmatprep.subr.bf16.mxu0 0
    %2052 = vmatpush1.bf16.msra.mxu0 %v949
    %2053 = vmatprep.subr.bf16.mxu0 0
    %2054 = vmatpush1.bf16.msra.mxu0 0
    %2055 = vmatprep.subr.bf16.mxu0 0
    %2056 = vmatpush1.bf16.msra.mxu0 0
    %2057 = vmatprep.subr.bf16.mxu0 0
    %2058 = vmatpush1.bf16.msra.mxu0 0
    %2059 = vmatprep.subr.bf16.mxu0 0
    %2060 = vmatpush1.bf16.msra.mxu0 0
    %2061 = vmatprep.subr.bf16.mxu0 0
    %2062 = vmatpush1.bf16.msra.mxu0 0
    %2063 = vmatprep.subr.bf16.mxu0 0
    %2064 = vmatpush1.bf16.msra.mxu0 0
    %2065 = vmatprep.subr.bf16.mxu0 0
    %2066 = vmatpush1.bf16.msra.mxu0 0
    %2067 = vmatprep.subr.bf16.mxu0 0
    %2068 = vmatpush1.bf16.msra.mxu0 0
    %2069 = vmatprep.mubr.bf16.mxu0 0
    %2070 = vmatmul.mubr.bf16.gmra.mrb[0].mxu0 %v1995
    %v2071 = vpop.f32.mrb[0].mxu0
    %v2072 = vadd.f32 %v842, %v2071
    %v2073 = vpop.f32.mrb[0].mxu0
    %v2074 = vpop.f32.mrb[0].mxu0
    %v2075 = vpop.f32.mrb[0].mxu0
    %2076 = vdwg.mxu0
    %v2077 = vpack.c.bf16 %v1886, %v1886
    %2078 = vmatprep.subr.bf16.mxu0 %v1152
    %2079 = vmatpush1.bf16.msra.mxu0 %v1151
    %2080 = vmatprep.subr.bf16.mxu0 %v1155
    %2081 = vmatpush1.bf16.msra.mxu0 %v1154
    %2082 = vmatprep.subr.bf16.mxu0 %v1158
    %2083 = vmatpush1.bf16.msra.mxu0 %v1157
    %2084 = vmatprep.subr.bf16.mxu0 %v1161
    %2085 = vmatpush1.bf16.msra.mxu0 %v1160
    %2086 = vmatprep.subr.bf16.mxu0 %v1164
    %2087 = vmatpush1.bf16.msra.mxu0 %v1163
    %2088 = vmatprep.subr.bf16.mxu0 %v1167
    %2089 = vmatpush1.bf16.msra.mxu0 %v1166
    %2090 = vmatprep.subr.bf16.mxu0 %v1170
    %2091 = vmatpush1.bf16.msra.mxu0 %v1169
    %2092 = vmatprep.subr.bf16.mxu0 %v1173
    %2093 = vmatpush1.bf16.msra.mxu0 %v1172
    %2094 = vmatprep.subr.bf16.mxu0 0
    %2095 = vmatpush1.bf16.msra.mxu0 0
    %2096 = vmatprep.subr.bf16.mxu0 0
    %2097 = vmatpush1.bf16.msra.mxu0 0
    %2098 = vmatprep.subr.bf16.mxu0 0
    %2099 = vmatpush1.bf16.msra.mxu0 0
    %2100 = vmatprep.subr.bf16.mxu0 0
    %2101 = vmatpush1.bf16.msra.mxu0 0
    %2102 = vmatprep.subr.bf16.mxu0 0
    %2103 = vmatpush1.bf16.msra.mxu0 0
    %2104 = vmatprep.subr.bf16.mxu0 0
    %2105 = vmatpush1.bf16.msra.mxu0 0
    %2106 = vmatprep.subr.bf16.mxu0 0
    %2107 = vmatpush1.bf16.msra.mxu0 0
    %2108 = vmatprep.subr.bf16.mxu0 0
    %2109 = vmatpush1.bf16.msra.mxu0 0
    %2110 = vmatprep.mubr.bf16.mxu0 0
    %2111 = vmatmul.mubr.bf16.gmra.mrb[0].mxu0 %v2077
    %v2112 = vpop.f32.mrb[0].mxu0
    %v2113 = vadd.f32 %v1059, %v2112
    %v2114 = vpop.f32.mrb[0].mxu0
    %v2115 = vadd.f32 %v1063, %v2114
    %v2116 = vpop.f32.mrb[0].mxu0
    %v2117 = vpop.f32.mrb[0].mxu0
    %2118 = vdwg.mxu0
    %2119 = vmatprep.subr.bf16.mxu0 0
    %2120 = vmatpush1.bf16.msra.mxu0 %v1153
    %2121 = vmatprep.subr.bf16.mxu0 0
    %2122 = vmatpush1.bf16.msra.mxu0 %v1156
    %2123 = vmatprep.subr.bf16.mxu0 0
    %2124 = vmatpush1.bf16.msra.mxu0 %v1159
    %2125 = vmatprep.subr.bf16.mxu0 0
    %2126 = vmatpush1.bf16.msra.mxu0 %v1162
    %2127 = vmatprep.subr.bf16.mxu0 0
    %2128 = vmatpush1.bf16.msra.mxu0 %v1165
    %2129 = vmatprep.subr.bf16.mxu0 0
    %2130 = vmatpush1.bf16.msra.mxu0 %v1168
    %2131 = vmatprep.subr.bf16.mxu0 0
    %2132 = vmatpush1.bf16.msra.mxu0 %v1171
    %2133 = vmatprep.subr.bf16.mxu0 0
    %2134 = vmatpush1.bf16.msra.mxu0 %v1174
    %2135 = vmatprep.subr.bf16.mxu0 0
    %2136 = vmatpush1.bf16.msra.mxu0 0
    %2137 = vmatprep.subr.bf16.mxu0 0
    %2138 = vmatpush1.bf16.msra.mxu0 0
    %2139 = vmatprep.subr.bf16.mxu0 0
    %2140 = vmatpush1.bf16.msra.mxu0 0
    %2141 = vmatprep.subr.bf16.mxu0 0
    %2142 = vmatpush1.bf16.msra.mxu0 0
    %2143 = vmatprep.subr.bf16.mxu0 0
    %2144 = vmatpush1.bf16.msra.mxu0 0
    %2145 = vmatprep.subr.bf16.mxu0 0
    %2146 = vmatpush1.bf16.msra.mxu0 0
    %2147 = vmatprep.subr.bf16.mxu0 0
    %2148 = vmatpush1.bf16.msra.mxu0 0
    %2149 = vmatprep.subr.bf16.mxu0 0
    %2150 = vmatpush1.bf16.msra.mxu0 0
    %2151 = vmatprep.mubr.bf16.mxu0 0
    %2152 = vmatmul.mubr.bf16.gmra.mrb[0].mxu0 %v2077
    %v2153 = vpop.f32.mrb[0].mxu0
    %v2154 = vadd.f32 %v1067, %v2153
    %v2155 = vpop.f32.mrb[0].mxu0
    %v2156 = vpop.f32.mrb[0].mxu0
    %v2157 = vpop.f32.mrb[0].mxu0
    %2158 = vdwg.mxu0
    %v2159 = vadd.f32 %v2031, %v2113
    %v2160 = vxor.u32 %v2159, 2147483648
    %v2161 = vmul.f32 %v2160, 1.442695
    %v2162 = vpow.pop %v2161
    %v2163 = vadd.f32 %v2162, 1.0
    %v2164 = vrcp.pop %v2163
    %v2165 = vmul.f32 1.0, %v2164
    %v2166 = vadd.f32 %v2033, %v2115
    %v2167 = vxor.u32 %v2166, 2147483648
    %v2168 = vmul.f32 %v2167, 1.442695
    %v2169 = vpow.pop %v2168
    %v2170 = vadd.f32 %v2169, 1.0
    %v2171 = vrcp.pop %v2170
    %v2172 = vmul.f32 1.0, %v2171
    %v2173 = vmul.f32 %v2165, %v2154
    %v2174 = vadd.f32 %v2072, %v2173
    %v2175 = vtanh.pop %v2174
    %v2176 = vsub.f32 1.0, %v2172
    %v2177 = vmul.f32 %v2176, %v2175
    %v2178 = vmul.f32 %v2172, %v1886
    %v2179 = vadd.f32 %v2177, %v2178
    %s2180 = smul.u32 4, 3
    %s2181 = smul.addr %s2180, 8
    %s2182 = scalar_lea.vmem [#allocation2], %s2181
    %v2183 = vld [vmem:[%s2182] sm:$0xff]
    %v2184 = vld [vmem:[%s2182 + $0x8] sm:$0xff]
    %v2185 = vld [vmem:[%s2182 + $0x10] sm:$0xff]
    %2186 = vmatprep.subr.bf16.mxu0 %v680
    %2187 = vmatpush1.bf16.msra.mxu0 %v679
    %2188 = vmatprep.subr.bf16.mxu0 %v683
    %2189 = vmatpush1.bf16.msra.mxu0 %v682
    %2190 = vmatprep.subr.bf16.mxu0 %v686
    %2191 = vmatpush1.bf16.msra.mxu0 %v685
    %2192 = vmatprep.subr.bf16.mxu0 %v689
    %2193 = vmatpush1.bf16.msra.mxu0 %v688
    %2194 = vmatprep.subr.bf16.mxu0 %v692
    %2195 = vmatpush1.bf16.msra.mxu0 %v691
    %2196 = vmatprep.subr.bf16.mxu0 %v695
    %2197 = vmatpush1.bf16.msra.mxu0 %v694
    %2198 = vmatprep.subr.bf16.mxu0 %v698
    %2199 = vmatpush1.bf16.msra.mxu0 %v697
    %2200 = vmatprep.subr.bf16.mxu0 %v701
    %2201 = vmatpush1.bf16.msra.mxu0 %v700
    %2202 = vmatprep.subr.bf16.mxu0 0
    %2203 = vmatpush1.bf16.msra.mxu0 0
    %2204 = vmatprep.subr.bf16.mxu0 0
    %2205 = vmatpush1.bf16.msra.mxu0 0
    %2206 = vmatprep.subr.bf16.mxu0 0
    %2207 = vmatpush1.bf16.msra.mxu0 0
    %2208 = vmatprep.subr.bf16.mxu0 0
    %2209 = vmatpush1.bf16.msra.mxu0 0
    %2210 = vmatprep.subr.bf16.mxu0 0
    %2211 = vmatpush1.bf16.msra.mxu0 0
    %2212 = vmatprep.subr.bf16.mxu0 0
    %2213 = vmatpush1.bf16.msra.mxu0 0
    %2214 = vmatprep.subr.bf16.mxu0 0
    %2215 = vmatpush1.bf16.msra.mxu0 0
    %2216 = vmatprep.subr.bf16.mxu0 0
    %2217 = vmatpush1.bf16.msra.mxu0 0
    %2218 = vmatprep.mubr.bf16.mxu0 0
    %2219 = vmatmul.mubr.bf16.gmra.mrb[0].mxu0 %v1995
    %v2220 = vpop.f32.mrb[0].mxu0
    %v2221 = vadd.f32 %v587, %v2220
    %v2222 = vpop.f32.mrb[0].mxu0
    %v2223 = vadd.f32 %v591, %v2222
    %v2224 = vpop.f32.mrb[0].mxu0
    %v2225 = vpop.f32.mrb[0].mxu0
    %2226 = vdwg.mxu0
    %2227 = vmatprep.subr.bf16.mxu0 0
    %2228 = vmatpush1.bf16.msra.mxu0 %v681
    %2229 = vmatprep.subr.bf16.mxu0 0
    %2230 = vmatpush1.bf16.msra.mxu0 %v684
    %2231 = vmatprep.subr.bf16.mxu0 0
    %2232 = vmatpush1.bf16.msra.mxu0 %v687
    %2233 = vmatprep.subr.bf16.mxu0 0
    %2234 = vmatpush1.bf16.msra.mxu0 %v690
    %2235 = vmatprep.subr.bf16.mxu0 0
    %2236 = vmatpush1.bf16.msra.mxu0 %v693
    %2237 = vmatprep.subr.bf16.mxu0 0
    %2238 = vmatpush1.bf16.msra.mxu0 %v696
    %2239 = vmatprep.subr.bf16.mxu0 0
    %2240 = vmatpush1.bf16.msra.mxu0 %v699
    %2241 = vmatprep.subr.bf16.mxu0 0
    %2242 = vmatpush1.bf16.msra.mxu0 %v702
    %2243 = vmatprep.subr.bf16.mxu0 0
    %2244 = vmatpush1.bf16.msra.mxu0 0
    %2245 = vmatprep.subr.bf16.mxu0 0
    %2246 = vmatpush1.bf16.msra.mxu0 0
    %2247 = vmatprep.subr.bf16.mxu0 0
    %2248 = vmatpush1.bf16.msra.mxu0 0
    %2249 = vmatprep.subr.bf16.mxu0 0
    %2250 = vmatpush1.bf16.msra.mxu0 0
    %2251 = vmatprep.subr.bf16.mxu0 0
    %2252 = vmatpush1.bf16.msra.mxu0 0
    %2253 = vmatprep.subr.bf16.mxu0 0
    %2254 = vmatpush1.bf16.msra.mxu0 0
    %2255 = vmatprep.subr.bf16.mxu0 0
    %2256 = vmatpush1.bf16.msra.mxu0 0
    %2257 = vmatprep.subr.bf16.mxu0 0
    %2258 = vmatpush1.bf16.msra.mxu0 0
    %2259 = vmatprep.mubr.bf16.mxu0 0
    %2260 = vmatmul.mubr.bf16.gmra.mrb[0].mxu0 %v1995
    %v2261 = vpop.f32.mrb[0].mxu0
    %v2262 = vadd.f32 %v595, %v2261
    %v2263 = vpop.f32.mrb[0].mxu0
    %v2264 = vpop.f32.mrb[0].mxu0
    %v2265 = vpop.f32.mrb[0].mxu0
    %2266 = vdwg.mxu0
    %v2267 = vadd.f32 %v2183, %v2221
    %v2268 = vxor.u32 %v2267, 2147483648
    %v2269 = vmul.f32 %v2268, 1.442695
    %v2270 = vpow.pop %v2269
    %v2271 = vadd.f32 %v2270, 1.0
    %v2272 = vrcp.pop %v2271
    %v2273 = vmul.f32 1.0, %v2272
    %v2274 = vadd.f32 %v2184, %v2223
    %v2275 = vxor.u32 %v2274, 2147483648
    %v2276 = vmul.f32 %v2275, 1.442695
    %v2277 = vpow.pop %v2276
    %v2278 = vadd.f32 %v2277, 1.0
    %v2279 = vrcp.pop %v2278
    %v2280 = vmul.f32 1.0, %v2279
    %v2281 = vmul.f32 %v2273, %v2262
    %v2282 = vadd.f32 %v2185, %v2281
    %v2283 = vtanh.pop %v2282
    %v2284 = vsub.f32 1.0, %v2280
    %v2285 = vmul.f32 %v2284, %v2283
    %v2286 = vmul.f32 %v2280, %v1994
    %v2287 = vadd.f32 %v2285, %v2286
    %v2288 = vpack.c.bf16 %v2287, %v2287
    %2289 = vmatprep.subr.bf16.mxu0 %v927
    %2290 = vmatpush1.bf16.msra.mxu0 %v926
    %2291 = vmatprep.subr.bf16.mxu0 %v930
    %2292 = vmatpush1.bf16.msra.mxu0 %v929
    %2293 = vmatprep.subr.bf16.mxu0 %v933
    %2294 = vmatpush1.bf16.msra.mxu0 %v932
    %2295 = vmatprep.subr.bf16.mxu0 %v936
    %2296 = vmatpush1.bf16.msra.mxu0 %v935
    %2297 = vmatprep.subr.bf16.mxu0 %v939
    %2298 = vmatpush1.bf16.msra.mxu0 %v938
    %2299 = vmatprep.subr.bf16.mxu0 %v942
    %2300 = vmatpush1.bf16.msra.mxu0 %v941
    %2301 = vmatprep.subr.bf16.mxu0 %v945
    %2302 = vmatpush1.bf16.msra.mxu0 %v944
    %2303 = vmatprep.subr.bf16.mxu0 %v948
    %2304 = vmatpush1.bf16.msra.mxu0 %v947
    %2305 = vmatprep.subr.bf16.mxu0 0
    %2306 = vmatpush1.bf16.msra.mxu0 0
    %2307 = vmatprep.subr.bf16.mxu0 0
    %2308 = vmatpush1.bf16.msra.mxu0 0
    %2309 = vmatprep.subr.bf16.mxu0 0
    %2310 = vmatpush1.bf16.msra.mxu0 0
    %2311 = vmatprep.subr.bf16.mxu0 0
    %2312 = vmatpush1.bf16.msra.mxu0 0
    %2313 = vmatprep.subr.bf16.mxu0 0
    %2314 = vmatpush1.bf16.msra.mxu0 0
    %2315 = vmatprep.subr.bf16.mxu0 0
    %2316 = vmatpush1.bf16.msra.mxu0 0
    %2317 = vmatprep.subr.bf16.mxu0 0
    %2318 = vmatpush1.bf16.msra.mxu0 0
    %2319 = vmatprep.subr.bf16.mxu0 0
    %2320 = vmatpush1.bf16.msra.mxu0 0
    %2321 = vmatprep.mubr.bf16.mxu0 0
    %2322 = vmatmul.mubr.bf16.gmra.mrb[0].mxu0 %v2288
    %v2323 = vpop.f32.mrb[0].mxu0
    %v2324 = vadd.f32 %v834, %v2323
    %v2325 = vpop.f32.mrb[0].mxu0
    %v2326 = vadd.f32 %v838, %v2325
    %v2327 = vpop.f32.mrb[0].mxu0
    %v2328 = vpop.f32.mrb[0].mxu0
    %2329 = vdwg.mxu0
    %2330 = vmatprep.subr.bf16.mxu0 0
    %2331 = vmatpush1.bf16.msra.mxu0 %v928
    %2332 = vmatprep.subr.bf16.mxu0 0
    %2333 = vmatpush1.bf16.msra.mxu0 %v931
    %2334 = vmatprep.subr.bf16.mxu0 0
    %2335 = vmatpush1.bf16.msra.mxu0 %v934
    %2336 = vmatprep.subr.bf16.mxu0 0
    %2337 = vmatpush1.bf16.msra.mxu0 %v937
    %2338 = vmatprep.subr.bf16.mxu0 0
    %2339 = vmatpush1.bf16.msra.mxu0 %v940
    %2340 = vmatprep.subr.bf16.mxu0 0
    %2341 = vmatpush1.bf16.msra.mxu0 %v943
    %2342 = vmatprep.subr.bf16.mxu0 0
    %2343 = vmatpush1.bf16.msra.mxu0 %v946
    %2344 = vmatprep.subr.bf16.mxu0 0
    %2345 = vmatpush1.bf16.msra.mxu0 %v949
    %2346 = vmatprep.subr.bf16.mxu0 0
    %2347 = vmatpush1.bf16.msra.mxu0 0
    %2348 = vmatprep.subr.bf16.mxu0 0
    %2349 = vmatpush1.bf16.msra.mxu0 0
    %2350 = vmatprep.subr.bf16.mxu0 0
    %2351 = vmatpush1.bf16.msra.mxu0 0
    %2352 = vmatprep.subr.bf16.mxu0 0
    %2353 = vmatpush1.bf16.msra.mxu0 0
    %2354 = vmatprep.subr.bf16.mxu0 0
    %2355 = vmatpush1.bf16.msra.mxu0 0
    %2356 = vmatprep.subr.bf16.mxu0 0
    %2357 = vmatpush1.bf16.msra.mxu0 0
    %2358 = vmatprep.subr.bf16.mxu0 0
    %2359 = vmatpush1.bf16.msra.mxu0 0
    %2360 = vmatprep.subr.bf16.mxu0 0
    %2361 = vmatpush1.bf16.msra.mxu0 0
    %2362 = vmatprep.mubr.bf16.mxu0 0
    %2363 = vmatmul.mubr.bf16.gmra.mrb[0].mxu0 %v2288
    %v2364 = vpop.f32.mrb[0].mxu0
    %v2365 = vadd.f32 %v842, %v2364
    %v2366 = vpop.f32.mrb[0].mxu0
    %v2367 = vpop.f32.mrb[0].mxu0
    %v2368 = vpop.f32.mrb[0].mxu0
    %2369 = vdwg.mxu0
    %v2370 = vpack.c.bf16 %v2179, %v2179
    %2371 = vmatprep.subr.bf16.mxu0 %v1152
    %2372 = vmatpush1.bf16.msra.mxu0 %v1151
    %2373 = vmatprep.subr.bf16.mxu0 %v1155
    %2374 = vmatpush1.bf16.msra.mxu0 %v1154
    %2375 = vmatprep.subr.bf16.mxu0 %v1158
    %2376 = vmatpush1.bf16.msra.mxu0 %v1157
    %2377 = vmatprep.subr.bf16.mxu0 %v1161
    %2378 = vmatpush1.bf16.msra.mxu0 %v1160
    %2379 = vmatprep.subr.bf16.mxu0 %v1164
    %2380 = vmatpush1.bf16.msra.mxu0 %v1163
    %2381 = vmatprep.subr.bf16.mxu0 %v1167
    %2382 = vmatpush1.bf16.msra.mxu0 %v1166
    %2383 = vmatprep.subr.bf16.mxu0 %v1170
    %2384 = vmatpush1.bf16.msra.mxu0 %v1169
    %2385 = vmatprep.subr.bf16.mxu0 %v1173
    %2386 = vmatpush1.bf16.msra.mxu0 %v1172
    %2387 = vmatprep.subr.bf16.mxu0 0
    %2388 = vmatpush1.bf16.msra.mxu0 0
    %2389 = vmatprep.subr.bf16.mxu0 0
    %2390 = vmatpush1.bf16.msra.mxu0 0
    %2391 = vmatprep.subr.bf16.mxu0 0
    %2392 = vmatpush1.bf16.msra.mxu0 0
    %2393 = vmatprep.subr.bf16.mxu0 0
    %2394 = vmatpush1.bf16.msra.mxu0 0
    %2395 = vmatprep.subr.bf16.mxu0 0
    %2396 = vmatpush1.bf16.msra.mxu0 0
    %2397 = vmatprep.subr.bf16.mxu0 0
    %2398 = vmatpush1.bf16.msra.mxu0 0
    %2399 = vmatprep.subr.bf16.mxu0 0
    %2400 = vmatpush1.bf16.msra.mxu0 0
    %2401 = vmatprep.subr.bf16.mxu0 0
    %2402 = vmatpush1.bf16.msra.mxu0 0
    %2403 = vmatprep.mubr.bf16.mxu0 0
    %2404 = vmatmul.mubr.bf16.gmra.mrb[0].mxu0 %v2370
    %v2405 = vpop.f32.mrb[0].mxu0
    %v2406 = vadd.f32 %v1059, %v2405
    %v2407 = vpop.f32.mrb[0].mxu0
    %v2408 = vadd.f32 %v1063, %v2407
    %v2409 = vpop.f32.mrb[0].mxu0
    %v2410 = vpop.f32.mrb[0].mxu0
    %2411 = vdwg.mxu0
    %2412 = vmatprep.subr.bf16.mxu0 0
    %2413 = vmatpush1.bf16.msra.mxu0 %v1153
    %2414 = vmatprep.subr.bf16.mxu0 0
    %2415 = vmatpush1.bf16.msra.mxu0 %v1156
    %2416 = vmatprep.subr.bf16.mxu0 0
    %2417 = vmatpush1.bf16.msra.mxu0 %v1159
    %2418 = vmatprep.subr.bf16.mxu0 0
    %2419 = vmatpush1.bf16.msra.mxu0 %v1162
    %2420 = vmatprep.subr.bf16.mxu0 0
    %2421 = vmatpush1.bf16.msra.mxu0 %v1165
    %2422 = vmatprep.subr.bf16.mxu0 0
    %2423 = vmatpush1.bf16.msra.mxu0 %v1168
    %2424 = vmatprep.subr.bf16.mxu0 0
    %2425 = vmatpush1.bf16.msra.mxu0 %v1171
    %2426 = vmatprep.subr.bf16.mxu0 0
    %2427 = vmatpush1.bf16.msra.mxu0 %v1174
    %2428 = vmatprep.subr.bf16.mxu0 0
    %2429 = vmatpush1.bf16.msra.mxu0 0
    %2430 = vmatprep.subr.bf16.mxu0 0
    %2431 = vmatpush1.bf16.msra.mxu0 0
    %2432 = vmatprep.subr.bf16.mxu0 0
    %2433 = vmatpush1.bf16.msra.mxu0 0
    %2434 = vmatprep.subr.bf16.mxu0 0
    %2435 = vmatpush1.bf16.msra.mxu0 0
    %2436 = vmatprep.subr.bf16.mxu0 0
    %2437 = vmatpush1.bf16.msra.mxu0 0
    %2438 = vmatprep.subr.bf16.mxu0 0
    %2439 = vmatpush1.bf16.msra.mxu0 0
    %2440 = vmatprep.subr.bf16.mxu0 0
    %2441 = vmatpush1.bf16.msra.mxu0 0
    %2442 = vmatprep.subr.bf16.mxu0 0
    %2443 = vmatpush1.bf16.msra.mxu0 0
    %2444 = vmatprep.mubr.bf16.mxu0 0
    %2445 = vmatmul.mubr.bf16.gmra.mrb[0].mxu0 %v2370
    %v2446 = vpop.f32.mrb[0].mxu0
    %v2447 = vadd.f32 %v1067, %v2446
    %v2448 = vpop.f32.mrb[0].mxu0
    %v2449 = vpop.f32.mrb[0].mxu0
    %v2450 = vpop.f32.mrb[0].mxu0
    %2451 = vdwg.mxu0
    %v2452 = vadd.f32 %v2324, %v2406
    %v2453 = vxor.u32 %v2452, 2147483648
    %v2454 = vmul.f32 %v2453, 1.442695
    %v2455 = vpow.pop %v2454
    %v2456 = vadd.f32 %v2455, 1.0
    %v2457 = vrcp.pop %v2456
    %v2458 = vmul.f32 1.0, %v2457
    %v2459 = vadd.f32 %v2326, %v2408
    %v2460 = vxor.u32 %v2459, 2147483648
    %v2461 = vmul.f32 %v2460, 1.442695
    %v2462 = vpow.pop %v2461
    %v2463 = vadd.f32 %v2462, 1.0
    %v2464 = vrcp.pop %v2463
    %v2465 = vmul.f32 1.0, %v2464
    %v2466 = vmul.f32 %v2458, %v2447
    %v2467 = vadd.f32 %v2365, %v2466
    %v2468 = vtanh.pop %v2467
    %v2469 = vsub.f32 1.0, %v2465
    %v2470 = vmul.f32 %v2469, %v2468
    %v2471 = vmul.f32 %v2465, %v2179
    %v2472 = vadd.f32 %v2470, %v2471
    %s2473 = smul.u32 5, 3
    %s2474 = smul.addr %s2473, 8
    %s2475 = scalar_lea.vmem [#allocation2], %s2474
    %v2476 = vld [vmem:[%s2475] sm:$0xff]
    %v2477 = vld [vmem:[%s2475 + $0x8] sm:$0xff]
    %v2478 = vld [vmem:[%s2475 + $0x10] sm:$0xff]
    %2479 = vmatprep.subr.bf16.mxu0 %v680
    %2480 = vmatpush1.bf16.msra.mxu0 %v679
    %2481 = vmatprep.subr.bf16.mxu0 %v683
    %2482 = vmatpush1.bf16.msra.mxu0 %v682
    %2483 = vmatprep.subr.bf16.mxu0 %v686
    %2484 = vmatpush1.bf16.msra.mxu0 %v685
    %2485 = vmatprep.subr.bf16.mxu0 %v689
    %2486 = vmatpush1.bf16.msra.mxu0 %v688
    %2487 = vmatprep.subr.bf16.mxu0 %v692
    %2488 = vmatpush1.bf16.msra.mxu0 %v691
    %2489 = vmatprep.subr.bf16.mxu0 %v695
    %2490 = vmatpush1.bf16.msra.mxu0 %v694
    %2491 = vmatprep.subr.bf16.mxu0 %v698
    %2492 = vmatpush1.bf16.msra.mxu0 %v697
    %2493 = vmatprep.subr.bf16.mxu0 %v701
    %2494 = vmatpush1.bf16.msra.mxu0 %v700
    %2495 = vmatprep.subr.bf16.mxu0 0
    %2496 = vmatpush1.bf16.msra.mxu0 0
    %2497 = vmatprep.subr.bf16.mxu0 0
    %2498 = vmatpush1.bf16.msra.mxu0 0
    %2499 = vmatprep.subr.bf16.mxu0 0
    %2500 = vmatpush1.bf16.msra.mxu0 0
    %2501 = vmatprep.subr.bf16.mxu0 0
    %2502 = vmatpush1.bf16.msra.mxu0 0
    %2503 = vmatprep.subr.bf16.mxu0 0
    %2504 = vmatpush1.bf16.msra.mxu0 0
    %2505 = vmatprep.subr.bf16.mxu0 0
    %2506 = vmatpush1.bf16.msra.mxu0 0
    %2507 = vmatprep.subr.bf16.mxu0 0
    %2508 = vmatpush1.bf16.msra.mxu0 0
    %2509 = vmatprep.subr.bf16.mxu0 0
    %2510 = vmatpush1.bf16.msra.mxu0 0
    %2511 = vmatprep.mubr.bf16.mxu0 0
    %2512 = vmatmul.mubr.bf16.gmra.mrb[0].mxu0 %v2288
    %v2513 = vpop.f32.mrb[0].mxu0
    %v2514 = vadd.f32 %v587, %v2513
    %v2515 = vpop.f32.mrb[0].mxu0
    %v2516 = vadd.f32 %v591, %v2515
    %v2517 = vpop.f32.mrb[0].mxu0
    %v2518 = vpop.f32.mrb[0].mxu0
    %2519 = vdwg.mxu0
    %2520 = vmatprep.subr.bf16.mxu0 0
    %2521 = vmatpush1.bf16.msra.mxu0 %v681
    %2522 = vmatprep.subr.bf16.mxu0 0
    %2523 = vmatpush1.bf16.msra.mxu0 %v684
    %2524 = vmatprep.subr.bf16.mxu0 0
    %2525 = vmatpush1.bf16.msra.mxu0 %v687
    %2526 = vmatprep.subr.bf16.mxu0 0
    %2527 = vmatpush1.bf16.msra.mxu0 %v690
    %2528 = vmatprep.subr.bf16.mxu0 0
    %2529 = vmatpush1.bf16.msra.mxu0 %v693
    %2530 = vmatprep.subr.bf16.mxu0 0
    %2531 = vmatpush1.bf16.msra.mxu0 %v696
    %2532 = vmatprep.subr.bf16.mxu0 0
    %2533 = vmatpush1.bf16.msra.mxu0 %v699
    %2534 = vmatprep.subr.bf16.mxu0 0
    %2535 = vmatpush1.bf16.msra.mxu0 %v702
    %2536 = vmatprep.subr.bf16.mxu0 0
    %2537 = vmatpush1.bf16.msra.mxu0 0
    %2538 = vmatprep.subr.bf16.mxu0 0
    %2539 = vmatpush1.bf16.msra.mxu0 0
    %2540 = vmatprep.subr.bf16.mxu0 0
    %2541 = vmatpush1.bf16.msra.mxu0 0
    %2542 = vmatprep.subr.bf16.mxu0 0
    %2543 = vmatpush1.bf16.msra.mxu0 0
    %2544 = vmatprep.subr.bf16.mxu0 0
    %2545 = vmatpush1.bf16.msra.mxu0 0
    %2546 = vmatprep.subr.bf16.mxu0 0
    %2547 = vmatpush1.bf16.msra.mxu0 0
    %2548 = vmatprep.subr.bf16.mxu0 0
    %2549 = vmatpush1.bf16.msra.mxu0 0
    %2550 = vmatprep.subr.bf16.mxu0 0
    %2551 = vmatpush1.bf16.msra.mxu0 0
    %2552 = vmatprep.mubr.bf16.mxu0 0
    %2553 = vmatmul.mubr.bf16.gmra.mrb[0].mxu0 %v2288
    %v2554 = vpop.f32.mrb[0].mxu0
    %v2555 = vadd.f32 %v595, %v2554
    %v2556 = vpop.f32.mrb[0].mxu0
    %v2557 = vpop.f32.mrb[0].mxu0
    %v2558 = vpop.f32.mrb[0].mxu0
    %2559 = vdwg.mxu0
    %v2560 = vadd.f32 %v2476, %v2514
    %v2561 = vxor.u32 %v2560, 2147483648
    %v2562 = vmul.f32 %v2561, 1.442695
    %v2563 = vpow.pop %v2562
    %v2564 = vadd.f32 %v2563, 1.0
    %v2565 = vrcp.pop %v2564
    %v2566 = vmul.f32 1.0, %v2565
    %v2567 = vadd.f32 %v2477, %v2516
    %v2568 = vxor.u32 %v2567, 2147483648
    %v2569 = vmul.f32 %v2568, 1.442695
    %v2570 = vpow.pop %v2569
    %v2571 = vadd.f32 %v2570, 1.0
    %v2572 = vrcp.pop %v2571
    %v2573 = vmul.f32 1.0, %v2572
    %v2574 = vmul.f32 %v2566, %v2555
    %v2575 = vadd.f32 %v2478, %v2574
    %v2576 = vtanh.pop %v2575
    %v2577 = vsub.f32 1.0, %v2573
    %v2578 = vmul.f32 %v2577, %v2576
    %v2579 = vmul.f32 %v2573, %v2287
    %v2580 = vadd.f32 %v2578, %v2579
    %v2581 = vpack.c.bf16 %v2580, %v2580
    %2582 = vmatprep.subr.bf16.mxu0 %v927
    %2583 = vmatpush1.bf16.msra.mxu0 %v926
    %2584 = vmatprep.subr.bf16.mxu0 %v930
    %2585 = vmatpush1.bf16.msra.mxu0 %v929
    %2586 = vmatprep.subr.bf16.mxu0 %v933
    %2587 = vmatpush1.bf16.msra.mxu0 %v932
    %2588 = vmatprep.subr.bf16.mxu0 %v936
    %2589 = vmatpush1.bf16.msra.mxu0 %v935
    %2590 = vmatprep.subr.bf16.mxu0 %v939
    %2591 = vmatpush1.bf16.msra.mxu0 %v938
    %2592 = vmatprep.subr.bf16.mxu0 %v942
    %2593 = vmatpush1.bf16.msra.mxu0 %v941
    %2594 = vmatprep.subr.bf16.mxu0 %v945
    %2595 = vmatpush1.bf16.msra.mxu0 %v944
    %2596 = vmatprep.subr.bf16.mxu0 %v948
    %2597 = vmatpush1.bf16.msra.mxu0 %v947
    %2598 = vmatprep.subr.bf16.mxu0 0
    %2599 = vmatpush1.bf16.msra.mxu0 0
    %2600 = vmatprep.subr.bf16.mxu0 0
    %2601 = vmatpush1.bf16.msra.mxu0 0
    %2602 = vmatprep.subr.bf16.mxu0 0
    %2603 = vmatpush1.bf16.msra.mxu0 0
    %2604 = vmatprep.subr.bf16.mxu0 0
    %2605 = vmatpush1.bf16.msra.mxu0 0
    %2606 = vmatprep.subr.bf16.mxu0 0
    %2607 = vmatpush1.bf16.msra.mxu0 0
    %2608 = vmatprep.subr.bf16.mxu0 0
    %2609 = vmatpush1.bf16.msra.mxu0 0
    %2610 = vmatprep.subr.bf16.mxu0 0
    %2611 = vmatpush1.bf16.msra.mxu0 0
    %2612 = vmatprep.subr.bf16.mxu0 0
    %2613 = vmatpush1.bf16.msra.mxu0 0
    %2614 = vmatprep.mubr.bf16.mxu0 0
    %2615 = vmatmul.mubr.bf16.gmra.mrb[0].mxu0 %v2581
    %v2616 = vpop.f32.mrb[0].mxu0
    %v2617 = vadd.f32 %v834, %v2616
    %v2618 = vpop.f32.mrb[0].mxu0
    %v2619 = vadd.f32 %v838, %v2618
    %v2620 = vpop.f32.mrb[0].mxu0
    %v2621 = vpop.f32.mrb[0].mxu0
    %2622 = vdwg.mxu0
    %2623 = vmatprep.subr.bf16.mxu0 0
    %2624 = vmatpush1.bf16.msra.mxu0 %v928
    %2625 = vmatprep.subr.bf16.mxu0 0
    %2626 = vmatpush1.bf16.msra.mxu0 %v931
    %2627 = vmatprep.subr.bf16.mxu0 0
    %2628 = vmatpush1.bf16.msra.mxu0 %v934
    %2629 = vmatprep.subr.bf16.mxu0 0
    %2630 = vmatpush1.bf16.msra.mxu0 %v937
    %2631 = vmatprep.subr.bf16.mxu0 0
    %2632 = vmatpush1.bf16.msra.mxu0 %v940
    %2633 = vmatprep.subr.bf16.mxu0 0
    %2634 = vmatpush1.bf16.msra.mxu0 %v943
    %2635 = vmatprep.subr.bf16.mxu0 0
    %2636 = vmatpush1.bf16.msra.mxu0 %v946
    %2637 = vmatprep.subr.bf16.mxu0 0
    %2638 = vmatpush1.bf16.msra.mxu0 %v949
    %2639 = vmatprep.subr.bf16.mxu0 0
    %2640 = vmatpush1.bf16.msra.mxu0 0
    %2641 = vmatprep.subr.bf16.mxu0 0
    %2642 = vmatpush1.bf16.msra.mxu0 0
    %2643 = vmatprep.subr.bf16.mxu0 0
    %2644 = vmatpush1.bf16.msra.mxu0 0
    %2645 = vmatprep.subr.bf16.mxu0 0
    %2646 = vmatpush1.bf16.msra.mxu0 0
    %2647 = vmatprep.subr.bf16.mxu0 0
    %2648 = vmatpush1.bf16.msra.mxu0 0
    %2649 = vmatprep.subr.bf16.mxu0 0
    %2650 = vmatpush1.bf16.msra.mxu0 0
    %2651 = vmatprep.subr.bf16.mxu0 0
    %2652 = vmatpush1.bf16.msra.mxu0 0
    %2653 = vmatprep.subr.bf16.mxu0 0
    %2654 = vmatpush1.bf16.msra.mxu0 0
    %2655 = vmatprep.mubr.bf16.mxu0 0
    %2656 = vmatmul.mubr.bf16.gmra.mrb[0].mxu0 %v2581
    %v2657 = vpop.f32.mrb[0].mxu0
    %v2658 = vadd.f32 %v842, %v2657
    %v2659 = vpop.f32.mrb[0].mxu0
    %v2660 = vpop.f32.mrb[0].mxu0
    %v2661 = vpop.f32.mrb[0].mxu0
    %2662 = vdwg.mxu0
    %v2663 = vpack.c.bf16 %v2472, %v2472
    %2664 = vmatprep.subr.bf16.mxu0 %v1152
    %2665 = vmatpush1.bf16.msra.mxu0 %v1151
    %2666 = vmatprep.subr.bf16.mxu0 %v1155
    %2667 = vmatpush1.bf16.msra.mxu0 %v1154
    %2668 = vmatprep.subr.bf16.mxu0 %v1158
    %2669 = vmatpush1.bf16.msra.mxu0 %v1157
    %2670 = vmatprep.subr.bf16.mxu0 %v1161
    %2671 = vmatpush1.bf16.msra.mxu0 %v1160
    %2672 = vmatprep.subr.bf16.mxu0 %v1164
    %2673 = vmatpush1.bf16.msra.mxu0 %v1163
    %2674 = vmatprep.subr.bf16.mxu0 %v1167
    %2675 = vmatpush1.bf16.msra.mxu0 %v1166
    %2676 = vmatprep.subr.bf16.mxu0 %v1170
    %2677 = vmatpush1.bf16.msra.mxu0 %v1169
    %2678 = vmatprep.subr.bf16.mxu0 %v1173
    %2679 = vmatpush1.bf16.msra.mxu0 %v1172
    %2680 = vmatprep.subr.bf16.mxu0 0
    %2681 = vmatpush1.bf16.msra.mxu0 0
    %2682 = vmatprep.subr.bf16.mxu0 0
    %2683 = vmatpush1.bf16.msra.mxu0 0
    %2684 = vmatprep.subr.bf16.mxu0 0
    %2685 = vmatpush1.bf16.msra.mxu0 0
    %2686 = vmatprep.subr.bf16.mxu0 0
    %2687 = vmatpush1.bf16.msra.mxu0 0
    %2688 = vmatprep.subr.bf16.mxu0 0
    %2689 = vmatpush1.bf16.msra.mxu0 0
    %2690 = vmatprep.subr.bf16.mxu0 0
    %2691 = vmatpush1.bf16.msra.mxu0 0
    %2692 = vmatprep.subr.bf16.mxu0 0
    %2693 = vmatpush1.bf16.msra.mxu0 0
    %2694 = vmatprep.subr.bf16.mxu0 0
    %2695 = vmatpush1.bf16.msra.mxu0 0
    %2696 = vmatprep.mubr.bf16.mxu0 0
    %2697 = vmatmul.mubr.bf16.gmra.mrb[0].mxu0 %v2663
    %v2698 = vpop.f32.mrb[0].mxu0
    %v2699 = vadd.f32 %v1059, %v2698
    %v2700 = vpop.f32.mrb[0].mxu0
    %v2701 = vadd.f32 %v1063, %v2700
    %v2702 = vpop.f32.mrb[0].mxu0
    %v2703 = vpop.f32.mrb[0].mxu0
    %2704 = vdwg.mxu0
    %2705 = vmatprep.subr.bf16.mxu0 0
    %2706 = vmatpush1.bf16.msra.mxu0 %v1153
    %2707 = vmatprep.subr.bf16.mxu0 0
    %2708 = vmatpush1.bf16.msra.mxu0 %v1156
    %2709 = vmatprep.subr.bf16.mxu0 0
    %2710 = vmatpush1.bf16.msra.mxu0 %v1159
    %2711 = vmatprep.subr.bf16.mxu0 0
    %2712 = vmatpush1.bf16.msra.mxu0 %v1162
    %2713 = vmatprep.subr.bf16.mxu0 0
    %2714 = vmatpush1.bf16.msra.mxu0 %v1165
    %2715 = vmatprep.subr.bf16.mxu0 0
    %2716 = vmatpush1.bf16.msra.mxu0 %v1168
    %2717 = vmatprep.subr.bf16.mxu0 0
    %2718 = vmatpush1.bf16.msra.mxu0 %v1171
    %2719 = vmatprep.subr.bf16.mxu0 0
    %2720 = vmatpush1.bf16.msra.mxu0 %v1174
    %2721 = vmatprep.subr.bf16.mxu0 0
    %2722 = vmatpush1.bf16.msra.mxu0 0
    %2723 = vmatprep.subr.bf16.mxu0 0
    %2724 = vmatpush1.bf16.msra.mxu0 0
    %2725 = vmatprep.subr.bf16.mxu0 0
    %2726 = vmatpush1.bf16.msra.mxu0 0
    %2727 = vmatprep.subr.bf16.mxu0 0
    %2728 = vmatpush1.bf16.msra.mxu0 0
    %2729 = vmatprep.subr.bf16.mxu0 0
    %2730 = vmatpush1.bf16.msra.mxu0 0
    %2731 = vmatprep.subr.bf16.mxu0 0
    %2732 = vmatpush1.bf16.msra.mxu0 0
    %2733 = vmatprep.subr.bf16.mxu0 0
    %2734 = vmatpush1.bf16.msra.mxu0 0
    %2735 = vmatprep.subr.bf16.mxu0 0
    %2736 = vmatpush1.bf16.msra.mxu0 0
    %2737 = vmatprep.mubr.bf16.mxu0 0
    %2738 = vmatmul.mubr.bf16.gmra.mrb[0].mxu0 %v2663
    %v2739 = vpop.f32.mrb[0].mxu0
    %v2740 = vadd.f32 %v1067, %v2739
    %v2741 = vpop.f32.mrb[0].mxu0
    %v2742 = vpop.f32.mrb[0].mxu0
    %v2743 = vpop.f32.mrb[0].mxu0
    %2744 = vdwg.mxu0
    %v2745 = vadd.f32 %v2617, %v2699
    %v2746 = vxor.u32 %v2745, 2147483648
    %v2747 = vmul.f32 %v2746, 1.442695
    %v2748 = vpow.pop %v2747
    %v2749 = vadd.f32 %v2748, 1.0
    %v2750 = vrcp.pop %v2749
    %v2751 = vmul.f32 1.0, %v2750
    %v2752 = vadd.f32 %v2619, %v2701
    %v2753 = vxor.u32 %v2752, 2147483648
    %v2754 = vmul.f32 %v2753, 1.442695
    %v2755 = vpow.pop %v2754
    %v2756 = vadd.f32 %v2755, 1.0
    %v2757 = vrcp.pop %v2756
    %v2758 = vmul.f32 1.0, %v2757
    %v2759 = vmul.f32 %v2751, %v2740
    %v2760 = vadd.f32 %v2658, %v2759
    %v2761 = vtanh.pop %v2760
    %v2762 = vsub.f32 1.0, %v2758
    %v2763 = vmul.f32 %v2762, %v2761
    %v2764 = vmul.f32 %v2758, %v2472
    %v2765 = vadd.f32 %v2763, %v2764
    %s2766 = smul.u32 6, 3
    %s2767 = smul.addr %s2766, 8
    %s2768 = scalar_lea.vmem [#allocation2], %s2767
    %v2769 = vld [vmem:[%s2768] sm:$0xff]
    %v2770 = vld [vmem:[%s2768 + $0x8] sm:$0xff]
    %v2771 = vld [vmem:[%s2768 + $0x10] sm:$0xff]
    %2772 = vmatprep.subr.bf16.mxu0 %v680
    %2773 = vmatpush1.bf16.msra.mxu0 %v679
    %2774 = vmatprep.subr.bf16.mxu0 %v683
    %2775 = vmatpush1.bf16.msra.mxu0 %v682
    %2776 = vmatprep.subr.bf16.mxu0 %v686
    %2777 = vmatpush1.bf16.msra.mxu0 %v685
    %2778 = vmatprep.subr.bf16.mxu0 %v689
    %2779 = vmatpush1.bf16.msra.mxu0 %v688
    %2780 = vmatprep.subr.bf16.mxu0 %v692
    %2781 = vmatpush1.bf16.msra.mxu0 %v691
    %2782 = vmatprep.subr.bf16.mxu0 %v695
    %2783 = vmatpush1.bf16.msra.mxu0 %v694
    %2784 = vmatprep.subr.bf16.mxu0 %v698
    %2785 = vmatpush1.bf16.msra.mxu0 %v697
    %2786 = vmatprep.subr.bf16.mxu0 %v701
    %2787 = vmatpush1.bf16.msra.mxu0 %v700
    %2788 = vmatprep.subr.bf16.mxu0 0
    %2789 = vmatpush1.bf16.msra.mxu0 0
    %2790 = vmatprep.subr.bf16.mxu0 0
    %2791 = vmatpush1.bf16.msra.mxu0 0
    %2792 = vmatprep.subr.bf16.mxu0 0
    %2793 = vmatpush1.bf16.msra.mxu0 0
    %2794 = vmatprep.subr.bf16.mxu0 0
    %2795 = vmatpush1.bf16.msra.mxu0 0
    %2796 = vmatprep.subr.bf16.mxu0 0
    %2797 = vmatpush1.bf16.msra.mxu0 0
    %2798 = vmatprep.subr.bf16.mxu0 0
    %2799 = vmatpush1.bf16.msra.mxu0 0
    %2800 = vmatprep.subr.bf16.mxu0 0
    %2801 = vmatpush1.bf16.msra.mxu0 0
    %2802 = vmatprep.subr.bf16.mxu0 0
    %2803 = vmatpush1.bf16.msra.mxu0 0
    %2804 = vmatprep.mubr.bf16.mxu0 0
    %2805 = vmatmul.mubr.bf16.gmra.mrb[0].mxu0 %v2581
    %v2806 = vpop.f32.mrb[0].mxu0
    %v2807 = vadd.f32 %v587, %v2806
    %v2808 = vpop.f32.mrb[0].mxu0
    %v2809 = vadd.f32 %v591, %v2808
    %v2810 = vpop.f32.mrb[0].mxu0
    %v2811 = vpop.f32.mrb[0].mxu0
    %2812 = vdwg.mxu0
    %2813 = vmatprep.subr.bf16.mxu0 0
    %2814 = vmatpush1.bf16.msra.mxu0 %v681
    %2815 = vmatprep.subr.bf16.mxu0 0
    %2816 = vmatpush1.bf16.msra.mxu0 %v684
    %2817 = vmatprep.subr.bf16.mxu0 0
    %2818 = vmatpush1.bf16.msra.mxu0 %v687
    %2819 = vmatprep.subr.bf16.mxu0 0
    %2820 = vmatpush1.bf16.msra.mxu0 %v690
    %2821 = vmatprep.subr.bf16.mxu0 0
    %2822 = vmatpush1.bf16.msra.mxu0 %v693
    %2823 = vmatprep.subr.bf16.mxu0 0
    %2824 = vmatpush1.bf16.msra.mxu0 %v696
    %2825 = vmatprep.subr.bf16.mxu0 0
    %2826 = vmatpush1.bf16.msra.mxu0 %v699
    %2827 = vmatprep.subr.bf16.mxu0 0
    %2828 = vmatpush1.bf16.msra.mxu0 %v702
    %2829 = vmatprep.subr.bf16.mxu0 0
    %2830 = vmatpush1.bf16.msra.mxu0 0
    %2831 = vmatprep.subr.bf16.mxu0 0
    %2832 = vmatpush1.bf16.msra.mxu0 0
    %2833 = vmatprep.subr.bf16.mxu0 0
    %2834 = vmatpush1.bf16.msra.mxu0 0
    %2835 = vmatprep.subr.bf16.mxu0 0
    %2836 = vmatpush1.bf16.msra.mxu0 0
    %2837 = vmatprep.subr.bf16.mxu0 0
    %2838 = vmatpush1.bf16.msra.mxu0 0
    %2839 = vmatprep.subr.bf16.mxu0 0
    %2840 = vmatpush1.bf16.msra.mxu0 0
    %2841 = vmatprep.subr.bf16.mxu0 0
    %2842 = vmatpush1.bf16.msra.mxu0 0
    %2843 = vmatprep.subr.bf16.mxu0 0
    %2844 = vmatpush1.bf16.msra.mxu0 0
    %2845 = vmatprep.mubr.bf16.mxu0 0
    %2846 = vmatmul.mubr.bf16.gmra.mrb[0].mxu0 %v2581
    %v2847 = vpop.f32.mrb[0].mxu0
    %v2848 = vadd.f32 %v595, %v2847
    %v2849 = vpop.f32.mrb[0].mxu0
    %v2850 = vpop.f32.mrb[0].mxu0
    %v2851 = vpop.f32.mrb[0].mxu0
    %2852 = vdwg.mxu0
    %v2853 = vadd.f32 %v2769, %v2807
    %v2854 = vxor.u32 %v2853, 2147483648
    %v2855 = vmul.f32 %v2854, 1.442695
    %v2856 = vpow.pop %v2855
    %v2857 = vadd.f32 %v2856, 1.0
    %v2858 = vrcp.pop %v2857
    %v2859 = vmul.f32 1.0, %v2858
    %v2860 = vadd.f32 %v2770, %v2809
    %v2861 = vxor.u32 %v2860, 2147483648
    %v2862 = vmul.f32 %v2861, 1.442695
    %v2863 = vpow.pop %v2862
    %v2864 = vadd.f32 %v2863, 1.0
    %v2865 = vrcp.pop %v2864
    %v2866 = vmul.f32 1.0, %v2865
    %v2867 = vmul.f32 %v2859, %v2848
    %v2868 = vadd.f32 %v2771, %v2867
    %v2869 = vtanh.pop %v2868
    %v2870 = vsub.f32 1.0, %v2866
    %v2871 = vmul.f32 %v2870, %v2869
    %v2872 = vmul.f32 %v2866, %v2580
    %v2873 = vadd.f32 %v2871, %v2872
    %v2874 = vpack.c.bf16 %v2873, %v2873
    %2875 = vmatprep.subr.bf16.mxu0 %v927
    %2876 = vmatpush1.bf16.msra.mxu0 %v926
    %2877 = vmatprep.subr.bf16.mxu0 %v930
    %2878 = vmatpush1.bf16.msra.mxu0 %v929
    %2879 = vmatprep.subr.bf16.mxu0 %v933
    %2880 = vmatpush1.bf16.msra.mxu0 %v932
    %2881 = vmatprep.subr.bf16.mxu0 %v936
    %2882 = vmatpush1.bf16.msra.mxu0 %v935
    %2883 = vmatprep.subr.bf16.mxu0 %v939
    %2884 = vmatpush1.bf16.msra.mxu0 %v938
    %2885 = vmatprep.subr.bf16.mxu0 %v942
    %2886 = vmatpush1.bf16.msra.mxu0 %v941
    %2887 = vmatprep.subr.bf16.mxu0 %v945
    %2888 = vmatpush1.bf16.msra.mxu0 %v944
    %2889 = vmatprep.subr.bf16.mxu0 %v948
    %2890 = vmatpush1.bf16.msra.mxu0 %v947
    %2891 = vmatprep.subr.bf16.mxu0 0
    %2892 = vmatpush1.bf16.msra.mxu0 0
    %2893 = vmatprep.subr.bf16.mxu0 0
    %2894 = vmatpush1.bf16.msra.mxu0 0
    %2895 = vmatprep.subr.bf16.mxu0 0
    %2896 = vmatpush1.bf16.msra.mxu0 0
    %2897 = vmatprep.subr.bf16.mxu0 0
    %2898 = vmatpush1.bf16.msra.mxu0 0
    %2899 = vmatprep.subr.bf16.mxu0 0
    %2900 = vmatpush1.bf16.msra.mxu0 0
    %2901 = vmatprep.subr.bf16.mxu0 0
    %2902 = vmatpush1.bf16.msra.mxu0 0
    %2903 = vmatprep.subr.bf16.mxu0 0
    %2904 = vmatpush1.bf16.msra.mxu0 0
    %2905 = vmatprep.subr.bf16.mxu0 0
    %2906 = vmatpush1.bf16.msra.mxu0 0
    %2907 = vmatprep.mubr.bf16.mxu0 0
    %2908 = vmatmul.mubr.bf16.gmra.mrb[0].mxu0 %v2874
    %v2909 = vpop.f32.mrb[0].mxu0
    %v2910 = vadd.f32 %v834, %v2909
    %v2911 = vpop.f32.mrb[0].mxu0
    %v2912 = vadd.f32 %v838, %v2911
    %v2913 = vpop.f32.mrb[0].mxu0
    %v2914 = vpop.f32.mrb[0].mxu0
    %2915 = vdwg.mxu0
    %2916 = vmatprep.subr.bf16.mxu0 0
    %2917 = vmatpush1.bf16.msra.mxu0 %v928
    %2918 = vmatprep.subr.bf16.mxu0 0
    %2919 = vmatpush1.bf16.msra.mxu0 %v931
    %2920 = vmatprep.subr.bf16.mxu0 0
    %2921 = vmatpush1.bf16.msra.mxu0 %v934
    %2922 = vmatprep.subr.bf16.mxu0 0
    %2923 = vmatpush1.bf16.msra.mxu0 %v937
    %2924 = vmatprep.subr.bf16.mxu0 0
    %2925 = vmatpush1.bf16.msra.mxu0 %v940
    %2926 = vmatprep.subr.bf16.mxu0 0
    %2927 = vmatpush1.bf16.msra.mxu0 %v943
    %2928 = vmatprep.subr.bf16.mxu0 0
    %2929 = vmatpush1.bf16.msra.mxu0 %v946
    %2930 = vmatprep.subr.bf16.mxu0 0
    %2931 = vmatpush1.bf16.msra.mxu0 %v949
    %2932 = vmatprep.subr.bf16.mxu0 0
    %2933 = vmatpush1.bf16.msra.mxu0 0
    %2934 = vmatprep.subr.bf16.mxu0 0
    %2935 = vmatpush1.bf16.msra.mxu0 0
    %2936 = vmatprep.subr.bf16.mxu0 0
    %2937 = vmatpush1.bf16.msra.mxu0 0
    %2938 = vmatprep.subr.bf16.mxu0 0
    %2939 = vmatpush1.bf16.msra.mxu0 0
    %2940 = vmatprep.subr.bf16.mxu0 0
    %2941 = vmatpush1.bf16.msra.mxu0 0
    %2942 = vmatprep.subr.bf16.mxu0 0
    %2943 = vmatpush1.bf16.msra.mxu0 0
    %2944 = vmatprep.subr.bf16.mxu0 0
    %2945 = vmatpush1.bf16.msra.mxu0 0
    %2946 = vmatprep.subr.bf16.mxu0 0
    %2947 = vmatpush1.bf16.msra.mxu0 0
    %2948 = vmatprep.mubr.bf16.mxu0 0
    %2949 = vmatmul.mubr.bf16.gmra.mrb[0].mxu0 %v2874
    %v2950 = vpop.f32.mrb[0].mxu0
    %v2951 = vadd.f32 %v842, %v2950
    %v2952 = vpop.f32.mrb[0].mxu0
    %v2953 = vpop.f32.mrb[0].mxu0
    %v2954 = vpop.f32.mrb[0].mxu0
    %2955 = vdwg.mxu0
    %v2956 = vpack.c.bf16 %v2765, %v2765
    %2957 = vmatprep.subr.bf16.mxu0 %v1152
    %2958 = vmatpush1.bf16.msra.mxu0 %v1151
    %2959 = vmatprep.subr.bf16.mxu0 %v1155
    %2960 = vmatpush1.bf16.msra.mxu0 %v1154
    %2961 = vmatprep.subr.bf16.mxu0 %v1158
    %2962 = vmatpush1.bf16.msra.mxu0 %v1157
    %2963 = vmatprep.subr.bf16.mxu0 %v1161
    %2964 = vmatpush1.bf16.msra.mxu0 %v1160
    %2965 = vmatprep.subr.bf16.mxu0 %v1164
    %2966 = vmatpush1.bf16.msra.mxu0 %v1163
    %2967 = vmatprep.subr.bf16.mxu0 %v1167
    %2968 = vmatpush1.bf16.msra.mxu0 %v1166
    %2969 = vmatprep.subr.bf16.mxu0 %v1170
    %2970 = vmatpush1.bf16.msra.mxu0 %v1169
    %2971 = vmatprep.subr.bf16.mxu0 %v1173
    %2972 = vmatpush1.bf16.msra.mxu0 %v1172
    %2973 = vmatprep.subr.bf16.mxu0 0
    %2974 = vmatpush1.bf16.msra.mxu0 0
    %2975 = vmatprep.subr.bf16.mxu0 0
    %2976 = vmatpush1.bf16.msra.mxu0 0
    %2977 = vmatprep.subr.bf16.mxu0 0
    %2978 = vmatpush1.bf16.msra.mxu0 0
    %2979 = vmatprep.subr.bf16.mxu0 0
    %2980 = vmatpush1.bf16.msra.mxu0 0
    %2981 = vmatprep.subr.bf16.mxu0 0
    %2982 = vmatpush1.bf16.msra.mxu0 0
    %2983 = vmatprep.subr.bf16.mxu0 0
    %2984 = vmatpush1.bf16.msra.mxu0 0
    %2985 = vmatprep.subr.bf16.mxu0 0
    %2986 = vmatpush1.bf16.msra.mxu0 0
    %2987 = vmatprep.subr.bf16.mxu0 0
    %2988 = vmatpush1.bf16.msra.mxu0 0
    %2989 = vmatprep.mubr.bf16.mxu0 0
    %2990 = vmatmul.mubr.bf16.gmra.mrb[0].mxu0 %v2956
    %v2991 = vpop.f32.mrb[0].mxu0
    %v2992 = vadd.f32 %v1059, %v2991
    %v2993 = vpop.f32.mrb[0].mxu0
    %v2994 = vadd.f32 %v1063, %v2993
    %v2995 = vpop.f32.mrb[0].mxu0
    %v2996 = vpop.f32.mrb[0].mxu0
    %2997 = vdwg.mxu0
    %2998 = vmatprep.subr.bf16.mxu0 0
    %2999 = vmatpush1.bf16.msra.mxu0 %v1153
    %3000 = vmatprep.subr.bf16.mxu0 0
    %3001 = vmatpush1.bf16.msra.mxu0 %v1156
    %3002 = vmatprep.subr.bf16.mxu0 0
    %3003 = vmatpush1.bf16.msra.mxu0 %v1159
    %3004 = vmatprep.subr.bf16.mxu0 0
    %3005 = vmatpush1.bf16.msra.mxu0 %v1162
    %3006 = vmatprep.subr.bf16.mxu0 0
    %3007 = vmatpush1.bf16.msra.mxu0 %v1165
    %3008 = vmatprep.subr.bf16.mxu0 0
    %3009 = vmatpush1.bf16.msra.mxu0 %v1168
    %3010 = vmatprep.subr.bf16.mxu0 0
    %3011 = vmatpush1.bf16.msra.mxu0 %v1171
    %3012 = vmatprep.subr.bf16.mxu0 0
    %3013 = vmatpush1.bf16.msra.mxu0 %v1174
    %3014 = vmatprep.subr.bf16.mxu0 0
    %3015 = vmatpush1.bf16.msra.mxu0 0
    %3016 = vmatprep.subr.bf16.mxu0 0
    %3017 = vmatpush1.bf16.msra.mxu0 0
    %3018 = vmatprep.subr.bf16.mxu0 0
    %3019 = vmatpush1.bf16.msra.mxu0 0
    %3020 = vmatprep.subr.bf16.mxu0 0
    %3021 = vmatpush1.bf16.msra.mxu0 0
    %3022 = vmatprep.subr.bf16.mxu0 0
    %3023 = vmatpush1.bf16.msra.mxu0 0
    %3024 = vmatprep.subr.bf16.mxu0 0
    %3025 = vmatpush1.bf16.msra.mxu0 0
    %3026 = vmatprep.subr.bf16.mxu0 0
    %3027 = vmatpush1.bf16.msra.mxu0 0
    %3028 = vmatprep.subr.bf16.mxu0 0
    %3029 = vmatpush1.bf16.msra.mxu0 0
    %3030 = vmatprep.mubr.bf16.mxu0 0
    %3031 = vmatmul.mubr.bf16.gmra.mrb[0].mxu0 %v2956
    %v3032 = vpop.f32.mrb[0].mxu0
    %v3033 = vadd.f32 %v1067, %v3032
    %v3034 = vpop.f32.mrb[0].mxu0
    %v3035 = vpop.f32.mrb[0].mxu0
    %v3036 = vpop.f32.mrb[0].mxu0
    %3037 = vdwg.mxu0
    %v3038 = vadd.f32 %v2910, %v2992
    %v3039 = vxor.u32 %v3038, 2147483648
    %v3040 = vmul.f32 %v3039, 1.442695
    %v3041 = vpow.pop %v3040
    %v3042 = vadd.f32 %v3041, 1.0
    %v3043 = vrcp.pop %v3042
    %v3044 = vmul.f32 1.0, %v3043
    %v3045 = vadd.f32 %v2912, %v2994
    %v3046 = vxor.u32 %v3045, 2147483648
    %v3047 = vmul.f32 %v3046, 1.442695
    %v3048 = vpow.pop %v3047
    %v3049 = vadd.f32 %v3048, 1.0
    %v3050 = vrcp.pop %v3049
    %v3051 = vmul.f32 1.0, %v3050
    %v3052 = vmul.f32 %v3044, %v3033
    %v3053 = vadd.f32 %v2951, %v3052
    %v3054 = vtanh.pop %v3053
    %v3055 = vsub.f32 1.0, %v3051
    %v3056 = vmul.f32 %v3055, %v3054
    %v3057 = vmul.f32 %v3051, %v2765
    %v3058 = vadd.f32 %v3056, %v3057
    %s3059 = smul.u32 7, 3
    %s3060 = smul.addr %s3059, 8
    %s3061 = scalar_lea.vmem [#allocation2], %s3060
    %v3062 = vld [vmem:[%s3061] sm:$0xff]
    %v3063 = vld [vmem:[%s3061 + $0x8] sm:$0xff]
    %v3064 = vld [vmem:[%s3061 + $0x10] sm:$0xff]
    %3065 = vmatprep.subr.bf16.mxu0 %v680
    %3066 = vmatpush1.bf16.msra.mxu0 %v679
    %3067 = vmatprep.subr.bf16.mxu0 %v683
    %3068 = vmatpush1.bf16.msra.mxu0 %v682
    %3069 = vmatprep.subr.bf16.mxu0 %v686
    %3070 = vmatpush1.bf16.msra.mxu0 %v685
    %3071 = vmatprep.subr.bf16.mxu0 %v689
    %3072 = vmatpush1.bf16.msra.mxu0 %v688
    %3073 = vmatprep.subr.bf16.mxu0 %v692
    %3074 = vmatpush1.bf16.msra.mxu0 %v691
    %3075 = vmatprep.subr.bf16.mxu0 %v695
    %3076 = vmatpush1.bf16.msra.mxu0 %v694
    %3077 = vmatprep.subr.bf16.mxu0 %v698
    %3078 = vmatpush1.bf16.msra.mxu0 %v697
    %3079 = vmatprep.subr.bf16.mxu0 %v701
    %3080 = vmatpush1.bf16.msra.mxu0 %v700
    %3081 = vmatprep.subr.bf16.mxu0 0
    %3082 = vmatpush1.bf16.msra.mxu0 0
    %3083 = vmatprep.subr.bf16.mxu0 0
    %3084 = vmatpush1.bf16.msra.mxu0 0
    %3085 = vmatprep.subr.bf16.mxu0 0
    %3086 = vmatpush1.bf16.msra.mxu0 0
    %3087 = vmatprep.subr.bf16.mxu0 0
    %3088 = vmatpush1.bf16.msra.mxu0 0
    %3089 = vmatprep.subr.bf16.mxu0 0
    %3090 = vmatpush1.bf16.msra.mxu0 0
    %3091 = vmatprep.subr.bf16.mxu0 0
    %3092 = vmatpush1.bf16.msra.mxu0 0
    %3093 = vmatprep.subr.bf16.mxu0 0
    %3094 = vmatpush1.bf16.msra.mxu0 0
    %3095 = vmatprep.subr.bf16.mxu0 0
    %3096 = vmatpush1.bf16.msra.mxu0 0
    %3097 = vmatprep.mubr.bf16.mxu0 0
    %3098 = vmatmul.mubr.bf16.gmra.mrb[0].mxu0 %v2874
    %v3099 = vpop.f32.mrb[0].mxu0
    %v3100 = vadd.f32 %v587, %v3099
    %v3101 = vpop.f32.mrb[0].mxu0
    %v3102 = vadd.f32 %v591, %v3101
    %v3103 = vpop.f32.mrb[0].mxu0
    %v3104 = vpop.f32.mrb[0].mxu0
    %3105 = vdwg.mxu0
    %3106 = vmatprep.subr.bf16.mxu0 0
    %3107 = vmatpush1.bf16.msra.mxu0 %v681
    %3108 = vmatprep.subr.bf16.mxu0 0
    %3109 = vmatpush1.bf16.msra.mxu0 %v684
    %3110 = vmatprep.subr.bf16.mxu0 0
    %3111 = vmatpush1.bf16.msra.mxu0 %v687
    %3112 = vmatprep.subr.bf16.mxu0 0
    %3113 = vmatpush1.bf16.msra.mxu0 %v690
    %3114 = vmatprep.subr.bf16.mxu0 0
    %3115 = vmatpush1.bf16.msra.mxu0 %v693
    %3116 = vmatprep.subr.bf16.mxu0 0
    %3117 = vmatpush1.bf16.msra.mxu0 %v696
    %3118 = vmatprep.subr.bf16.mxu0 0
    %3119 = vmatpush1.bf16.msra.mxu0 %v699
    %3120 = vmatprep.subr.bf16.mxu0 0
    %3121 = vmatpush1.bf16.msra.mxu0 %v702
    %3122 = vmatprep.subr.bf16.mxu0 0
    %3123 = vmatpush1.bf16.msra.mxu0 0
    %3124 = vmatprep.subr.bf16.mxu0 0
    %3125 = vmatpush1.bf16.msra.mxu0 0
    %3126 = vmatprep.subr.bf16.mxu0 0
    %3127 = vmatpush1.bf16.msra.mxu0 0
    %3128 = vmatprep.subr.bf16.mxu0 0
    %3129 = vmatpush1.bf16.msra.mxu0 0
    %3130 = vmatprep.subr.bf16.mxu0 0
    %3131 = vmatpush1.bf16.msra.mxu0 0
    %3132 = vmatprep.subr.bf16.mxu0 0
    %3133 = vmatpush1.bf16.msra.mxu0 0
    %3134 = vmatprep.subr.bf16.mxu0 0
    %3135 = vmatpush1.bf16.msra.mxu0 0
    %3136 = vmatprep.subr.bf16.mxu0 0
    %3137 = vmatpush1.bf16.msra.mxu0 0
    %3138 = vmatprep.mubr.bf16.mxu0 0
    %3139 = vmatmul.mubr.bf16.gmra.mrb[0].mxu0 %v2874
    %v3140 = vpop.f32.mrb[0].mxu0
    %v3141 = vadd.f32 %v595, %v3140
    %v3142 = vpop.f32.mrb[0].mxu0
    %v3143 = vpop.f32.mrb[0].mxu0
    %v3144 = vpop.f32.mrb[0].mxu0
    %3145 = vdwg.mxu0
    %v3146 = vadd.f32 %v3062, %v3100
    %v3147 = vxor.u32 %v3146, 2147483648
    %v3148 = vmul.f32 %v3147, 1.442695
    %v3149 = vpow.pop %v3148
    %v3150 = vadd.f32 %v3149, 1.0
    %v3151 = vrcp.pop %v3150
    %v3152 = vmul.f32 1.0, %v3151
    %v3153 = vadd.f32 %v3063, %v3102
    %v3154 = vxor.u32 %v3153, 2147483648
    %v3155 = vmul.f32 %v3154, 1.442695
    %v3156 = vpow.pop %v3155
    %v3157 = vadd.f32 %v3156, 1.0
    %v3158 = vrcp.pop %v3157
    %v3159 = vmul.f32 1.0, %v3158
    %v3160 = vmul.f32 %v3152, %v3141
    %v3161 = vadd.f32 %v3064, %v3160
    %v3162 = vtanh.pop %v3161
    %v3163 = vsub.f32 1.0, %v3159
    %v3164 = vmul.f32 %v3163, %v3162
    %v3165 = vmul.f32 %v3159, %v2873
    %v3166 = vadd.f32 %v3164, %v3165
    %v3167 = vpack.c.bf16 %v3166, %v3166
    %3168 = vmatprep.subr.bf16.mxu0 %v927
    %3169 = vmatpush1.bf16.msra.mxu0 %v926
    %3170 = vmatprep.subr.bf16.mxu0 %v930
    %3171 = vmatpush1.bf16.msra.mxu0 %v929
    %3172 = vmatprep.subr.bf16.mxu0 %v933
    %3173 = vmatpush1.bf16.msra.mxu0 %v932
    %3174 = vmatprep.subr.bf16.mxu0 %v936
    %3175 = vmatpush1.bf16.msra.mxu0 %v935
    %3176 = vmatprep.subr.bf16.mxu0 %v939
    %3177 = vmatpush1.bf16.msra.mxu0 %v938
    %3178 = vmatprep.subr.bf16.mxu0 %v942
    %3179 = vmatpush1.bf16.msra.mxu0 %v941
    %3180 = vmatprep.subr.bf16.mxu0 %v945
    %3181 = vmatpush1.bf16.msra.mxu0 %v944
    %3182 = vmatprep.subr.bf16.mxu0 %v948
    %3183 = vmatpush1.bf16.msra.mxu0 %v947
    %3184 = vmatprep.subr.bf16.mxu0 0
    %3185 = vmatpush1.bf16.msra.mxu0 0
    %3186 = vmatprep.subr.bf16.mxu0 0
    %3187 = vmatpush1.bf16.msra.mxu0 0
    %3188 = vmatprep.subr.bf16.mxu0 0
    %3189 = vmatpush1.bf16.msra.mxu0 0
    %3190 = vmatprep.subr.bf16.mxu0 0
    %3191 = vmatpush1.bf16.msra.mxu0 0
    %3192 = vmatprep.subr.bf16.mxu0 0
    %3193 = vmatpush1.bf16.msra.mxu0 0
    %3194 = vmatprep.subr.bf16.mxu0 0
    %3195 = vmatpush1.bf16.msra.mxu0 0
    %3196 = vmatprep.subr.bf16.mxu0 0
    %3197 = vmatpush1.bf16.msra.mxu0 0
    %3198 = vmatprep.subr.bf16.mxu0 0
    %3199 = vmatpush1.bf16.msra.mxu0 0
    %3200 = vmatprep.mubr.bf16.mxu0 0
    %3201 = vmatmul.mubr.bf16.gmra.mrb[0].mxu0 %v3167
    %v3202 = vpop.f32.mrb[0].mxu0
    %v3203 = vadd.f32 %v834, %v3202
    %v3204 = vpop.f32.mrb[0].mxu0
    %v3205 = vadd.f32 %v838, %v3204
    %v3206 = vpop.f32.mrb[0].mxu0
    %v3207 = vpop.f32.mrb[0].mxu0
    %3208 = vdwg.mxu0
    %3209 = vmatprep.subr.bf16.mxu0 0
    %3210 = vmatpush1.bf16.msra.mxu0 %v928
    %3211 = vmatprep.subr.bf16.mxu0 0
    %3212 = vmatpush1.bf16.msra.mxu0 %v931
    %3213 = vmatprep.subr.bf16.mxu0 0
    %3214 = vmatpush1.bf16.msra.mxu0 %v934
    %3215 = vmatprep.subr.bf16.mxu0 0
    %3216 = vmatpush1.bf16.msra.mxu0 %v937
    %3217 = vmatprep.subr.bf16.mxu0 0
    %3218 = vmatpush1.bf16.msra.mxu0 %v940
    %3219 = vmatprep.subr.bf16.mxu0 0
    %3220 = vmatpush1.bf16.msra.mxu0 %v943
    %3221 = vmatprep.subr.bf16.mxu0 0
    %3222 = vmatpush1.bf16.msra.mxu0 %v946
    %3223 = vmatprep.subr.bf16.mxu0 0
    %3224 = vmatpush1.bf16.msra.mxu0 %v949
    %3225 = vmatprep.subr.bf16.mxu0 0
    %3226 = vmatpush1.bf16.msra.mxu0 0
    %3227 = vmatprep.subr.bf16.mxu0 0
    %3228 = vmatpush1.bf16.msra.mxu0 0
    %3229 = vmatprep.subr.bf16.mxu0 0
    %3230 = vmatpush1.bf16.msra.mxu0 0
    %3231 = vmatprep.subr.bf16.mxu0 0
    %3232 = vmatpush1.bf16.msra.mxu0 0
    %3233 = vmatprep.subr.bf16.mxu0 0
    %3234 = vmatpush1.bf16.msra.mxu0 0
    %3235 = vmatprep.subr.bf16.mxu0 0
    %3236 = vmatpush1.bf16.msra.mxu0 0
    %3237 = vmatprep.subr.bf16.mxu0 0
    %3238 = vmatpush1.bf16.msra.mxu0 0
    %3239 = vmatprep.subr.bf16.mxu0 0
    %3240 = vmatpush1.bf16.msra.mxu0 0
    %3241 = vmatprep.mubr.bf16.mxu0 0
    %3242 = vmatmul.mubr.bf16.gmra.mrb[0].mxu0 %v3167
    %v3243 = vpop.f32.mrb[0].mxu0
    %v3244 = vadd.f32 %v842, %v3243
    %v3245 = vpop.f32.mrb[0].mxu0
    %v3246 = vpop.f32.mrb[0].mxu0
    %v3247 = vpop.f32.mrb[0].mxu0
    %3248 = vdwg.mxu0
    %v3249 = vpack.c.bf16 %v3058, %v3058
    %3250 = vmatprep.subr.bf16.mxu0 %v1152
    %3251 = vmatpush1.bf16.msra.mxu0 %v1151
    %3252 = vmatprep.subr.bf16.mxu0 %v1155
    %3253 = vmatpush1.bf16.msra.mxu0 %v1154
    %3254 = vmatprep.subr.bf16.mxu0 %v1158
    %3255 = vmatpush1.bf16.msra.mxu0 %v1157
    %3256 = vmatprep.subr.bf16.mxu0 %v1161
    %3257 = vmatpush1.bf16.msra.mxu0 %v1160
    %3258 = vmatprep.subr.bf16.mxu0 %v1164
    %3259 = vmatpush1.bf16.msra.mxu0 %v1163
    %3260 = vmatprep.subr.bf16.mxu0 %v1167
    %3261 = vmatpush1.bf16.msra.mxu0 %v1166
    %3262 = vmatprep.subr.bf16.mxu0 %v1170
    %3263 = vmatpush1.bf16.msra.mxu0 %v1169
    %3264 = vmatprep.subr.bf16.mxu0 %v1173
    %3265 = vmatpush1.bf16.msra.mxu0 %v1172
    %3266 = vmatprep.subr.bf16.mxu0 0
    %3267 = vmatpush1.bf16.msra.mxu0 0
    %3268 = vmatprep.subr.bf16.mxu0 0
    %3269 = vmatpush1.bf16.msra.mxu0 0
    %3270 = vmatprep.subr.bf16.mxu0 0
    %3271 = vmatpush1.bf16.msra.mxu0 0
    %3272 = vmatprep.subr.bf16.mxu0 0
    %3273 = vmatpush1.bf16.msra.mxu0 0
    %3274 = vmatprep.subr.bf16.mxu0 0
    %3275 = vmatpush1.bf16.msra.mxu0 0
    %3276 = vmatprep.subr.bf16.mxu0 0
    %3277 = vmatpush1.bf16.msra.mxu0 0
    %3278 = vmatprep.subr.bf16.mxu0 0
    %3279 = vmatpush1.bf16.msra.mxu0 0
    %3280 = vmatprep.subr.bf16.mxu0 0
    %3281 = vmatpush1.bf16.msra.mxu0 0
    %3282 = vmatprep.mubr.bf16.mxu0 0
    %3283 = vmatmul.mubr.bf16.gmra.mrb[0].mxu0 %v3249
    %v3284 = vpop.f32.mrb[0].mxu0
    %v3285 = vadd.f32 %v1059, %v3284
    %v3286 = vpop.f32.mrb[0].mxu0
    %v3287 = vadd.f32 %v1063, %v3286
    %v3288 = vpop.f32.mrb[0].mxu0
    %v3289 = vpop.f32.mrb[0].mxu0
    %3290 = vdwg.mxu0
    %3291 = vmatprep.subr.bf16.mxu0 0
    %3292 = vmatpush1.bf16.msra.mxu0 %v1153
    %3293 = vmatprep.subr.bf16.mxu0 0
    %3294 = vmatpush1.bf16.msra.mxu0 %v1156
    %3295 = vmatprep.subr.bf16.mxu0 0
    %3296 = vmatpush1.bf16.msra.mxu0 %v1159
    %3297 = vmatprep.subr.bf16.mxu0 0
    %3298 = vmatpush1.bf16.msra.mxu0 %v1162
    %3299 = vmatprep.subr.bf16.mxu0 0
    %3300 = vmatpush1.bf16.msra.mxu0 %v1165
    %3301 = vmatprep.subr.bf16.mxu0 0
    %3302 = vmatpush1.bf16.msra.mxu0 %v1168
    %3303 = vmatprep.subr.bf16.mxu0 0
    %3304 = vmatpush1.bf16.msra.mxu0 %v1171
    %3305 = vmatprep.subr.bf16.mxu0 0
    %3306 = vmatpush1.bf16.msra.mxu0 %v1174
    %3307 = vmatprep.subr.bf16.mxu0 0
    %3308 = vmatpush1.bf16.msra.mxu0 0
    %3309 = vmatprep.subr.bf16.mxu0 0
    %3310 = vmatpush1.bf16.msra.mxu0 0
    %3311 = vmatprep.subr.bf16.mxu0 0
    %3312 = vmatpush1.bf16.msra.mxu0 0
    %3313 = vmatprep.subr.bf16.mxu0 0
    %3314 = vmatpush1.bf16.msra.mxu0 0
    %3315 = vmatprep.subr.bf16.mxu0 0
    %3316 = vmatpush1.bf16.msra.mxu0 0
    %3317 = vmatprep.subr.bf16.mxu0 0
    %3318 = vmatpush1.bf16.msra.mxu0 0
    %3319 = vmatprep.subr.bf16.mxu0 0
    %3320 = vmatpush1.bf16.msra.mxu0 0
    %3321 = vmatprep.subr.bf16.mxu0 0
    %3322 = vmatpush1.bf16.msra.mxu0 0
    %3323 = vmatprep.mubr.bf16.mxu0 0
    %3324 = vmatmul.mubr.bf16.gmra.mrb[0].mxu0 %v3249
    %v3325 = vpop.f32.mrb[0].mxu0
    %v3326 = vadd.f32 %v1067, %v3325
    %v3327 = vpop.f32.mrb[0].mxu0
    %v3328 = vpop.f32.mrb[0].mxu0
    %v3329 = vpop.f32.mrb[0].mxu0
    %3330 = vdwg.mxu0
    %v3331 = vadd.f32 %v3203, %v3285
    %v3332 = vxor.u32 %v3331, 2147483648
    %v3333 = vmul.f32 %v3332, 1.442695
    %v3334 = vpow.pop %v3333
    %v3335 = vadd.f32 %v3334, 1.0
    %v3336 = vrcp.pop %v3335
    %v3337 = vmul.f32 1.0, %v3336
    %v3338 = vadd.f32 %v3205, %v3287
    %v3339 = vxor.u32 %v3338, 2147483648
    %v3340 = vmul.f32 %v3339, 1.442695
    %v3341 = vpow.pop %v3340
    %v3342 = vadd.f32 %v3341, 1.0
    %v3343 = vrcp.pop %v3342
    %v3344 = vmul.f32 1.0, %v3343
    %v3345 = vmul.f32 %v3337, %v3326
    %v3346 = vadd.f32 %v3244, %v3345
    %v3347 = vtanh.pop %v3346
    %v3348 = vsub.f32 1.0, %v3344
    %v3349 = vmul.f32 %v3348, %v3347
    %v3350 = vmul.f32 %v3344, %v3058
    %v3351 = vadd.f32 %v3349, %v3350
    %v3352 = vld [vmem:[#allocation8] sm:$0xf]
    %v3353 = vld [vmem:[#allocation8 + $0x4] sm:$0xf]
    %v3354 = vld [vmem:[#allocation8 + $0x8] sm:$0xf]
    %v3355 = vld [vmem:[#allocation8 + $0xc] sm:$0xf]
    %v3356 = vld [vmem:[#allocation8 + $0x10] sm:$0xf]
    %v3357 = vld [vmem:[#allocation8 + $0x14] sm:$0xf]
    %v3358 = vld [vmem:[#allocation8 + $0x18] sm:$0xf]
    %v3359 = vld [vmem:[#allocation8 + $0x1c] sm:$0xf]
    %v3360 = vld [vmem:[#allocation8 + $0x20] sm:$0xf]
    %v3361 = vld [vmem:[#allocation8 + $0x24] sm:$0xf]
    %v3362 = vld [vmem:[#allocation8 + $0x28] sm:$0xf]
    %v3363 = vld [vmem:[#allocation8 + $0x2c] sm:$0xf]
    %v3364 = vld [vmem:[#allocation8 + $0x30] sm:$0xf]
    %v3365 = vld [vmem:[#allocation8 + $0x34] sm:$0xf]
    %v3366 = vld [vmem:[#allocation8 + $0x38] sm:$0xf]
    %v3367 = vld [vmem:[#allocation8 + $0x3c] sm:$0xf]
    %v3368 = vpack.c.bf16 %v3351, %v3351
    %v3369 = vld [vmem:[#allocation10] sm:$0xf]
    %v3370 = vld [vmem:[#allocation10 + $0x4] sm:$0xf]
    %v3371 = vld [vmem:[#allocation10 + $0x8] sm:$0xf]
    %v3372 = vld [vmem:[#allocation10 + $0xc] sm:$0xf]
    %v3373 = vld [vmem:[#allocation10 + $0x10] sm:$0xf]
    %v3374 = vld [vmem:[#allocation10 + $0x14] sm:$0xf]
    %v3375 = vld [vmem:[#allocation10 + $0x18] sm:$0xf]
    %v3376 = vld [vmem:[#allocation10 + $0x1c] sm:$0xf]
    %v3377 = vld [vmem:[#allocation10 + $0x20] sm:$0xf]
    %v3378 = vld [vmem:[#allocation10 + $0x24] sm:$0xf]
    %v3379 = vld [vmem:[#allocation10 + $0x28] sm:$0xf]
    %v3380 = vld [vmem:[#allocation10 + $0x2c] sm:$0xf]
    %v3381 = vld [vmem:[#allocation10 + $0x30] sm:$0xf]
    %v3382 = vld [vmem:[#allocation10 + $0x34] sm:$0xf]
    %v3383 = vld [vmem:[#allocation10 + $0x38] sm:$0xf]
    %v3384 = vld [vmem:[#allocation10 + $0x3c] sm:$0xf]
    %v3401 = vunpack.c.l.b16 %v3369
    %v3402 = vunpack.c.l.b16 %v3370
    %v3403 = vunpack.c.l.b16 %v3371
    %v3404 = vunpack.c.l.b16 %v3372
    %v3405 = vunpack.c.l.b16 %v3373
    %v3406 = vunpack.c.l.b16 %v3374
    %v3407 = vunpack.c.l.b16 %v3375
    %v3408 = vunpack.c.l.b16 %v3376
    %v3409 = vunpack.c.l.b16 %v3377
    %v3410 = vunpack.c.l.b16 %v3378
    %v3411 = vunpack.c.l.b16 %v3379
    %v3412 = vunpack.c.l.b16 %v3380
    %v3413 = vunpack.c.l.b16 %v3381
    %v3414 = vunpack.c.l.b16 %v3382
    %v3415 = vunpack.c.l.b16 %v3383
    %v3416 = vunpack.c.l.b16 %v3384
    %v3417 = vpack.c.b16 %v3402, %v3401
    %v3418 = vpack.c.b16 %v3404, %v3403
    %v3419 = vpack.c.b16 %v3406, %v3405
    %v3420 = vpack.c.b16 %v3408, %v3407
    %v3421 = vpack.c.b16 %v3410, %v3409
    %v3422 = vpack.c.b16 %v3412, %v3411
    %v3423 = vpack.c.b16 %v3414, %v3413
    %v3424 = vpack.c.b16 %v3416, %v3415
    %3433 = vmatprep.subr.bf16.mxu0 0
    %3434 = vmatpush1.bf16.msra.mxu0 %v3417
    %3435 = vmatprep.subr.bf16.mxu0 0
    %3436 = vmatpush1.bf16.msra.mxu0 %v3418
    %3437 = vmatprep.subr.bf16.mxu0 0
    %3438 = vmatpush1.bf16.msra.mxu0 %v3419
    %3439 = vmatprep.subr.bf16.mxu0 0
    %3440 = vmatpush1.bf16.msra.mxu0 %v3420
    %3441 = vmatprep.subr.bf16.mxu0 0
    %3442 = vmatpush1.bf16.msra.mxu0 %v3421
    %3443 = vmatprep.subr.bf16.mxu0 0
    %3444 = vmatpush1.bf16.msra.mxu0 %v3422
    %3445 = vmatprep.subr.bf16.mxu0 0
    %3446 = vmatpush1.bf16.msra.mxu0 %v3423
    %3447 = vmatprep.subr.bf16.mxu0 0
    %3448 = vmatpush1.bf16.msra.mxu0 %v3424
    %3449 = vmatprep.subr.bf16.mxu0 0
    %3450 = vmatpush1.bf16.msra.mxu0 0
    %3451 = vmatprep.subr.bf16.mxu0 0
    %3452 = vmatpush1.bf16.msra.mxu0 0
    %3453 = vmatprep.subr.bf16.mxu0 0
    %3454 = vmatpush1.bf16.msra.mxu0 0
    %3455 = vmatprep.subr.bf16.mxu0 0
    %3456 = vmatpush1.bf16.msra.mxu0 0
    %3457 = vmatprep.subr.bf16.mxu0 0
    %3458 = vmatpush1.bf16.msra.mxu0 0
    %3459 = vmatprep.subr.bf16.mxu0 0
    %3460 = vmatpush1.bf16.msra.mxu0 0
    %3461 = vmatprep.subr.bf16.mxu0 0
    %3462 = vmatpush1.bf16.msra.mxu0 0
    %3463 = vmatprep.subr.bf16.mxu0 0
    %3464 = vmatpush1.bf16.msra.mxu0 0
    %3465 = vmatprep.mubr.bf16.mxu0 0
    %3466 = vmatmul.mubr.bf16.gmra.mrb[0].mxu0 %v3368
    %v3467 = vpop.f32.mrb[0].mxu0
    %v3468 = vadd.f32 0.0, %v3467
    %v3469 = vpop.f32.mrb[0].mxu0
    %v3470 = vpop.f32.mrb[0].mxu0
    %v3471 = vpop.f32.mrb[0].mxu0
    %3472 = vdwg.mxu0
    %v3489 = vunpack.c.l.b16 %v3352
    %v3490 = vunpack.c.l.b16 %v3353
    %v3491 = vunpack.c.l.b16 %v3354
    %v3492 = vunpack.c.l.b16 %v3355
    %v3493 = vunpack.c.l.b16 %v3356
    %v3494 = vunpack.c.l.b16 %v3357
    %v3495 = vunpack.c.l.b16 %v3358
    %v3496 = vunpack.c.l.b16 %v3359
    %v3497 = vunpack.c.l.b16 %v3360
    %v3498 = vunpack.c.l.b16 %v3361
    %v3499 = vunpack.c.l.b16 %v3362
    %v3500 = vunpack.c.l.b16 %v3363
    %v3501 = vunpack.c.l.b16 %v3364
    %v3502 = vunpack.c.l.b16 %v3365
    %v3503 = vunpack.c.l.b16 %v3366
    %v3504 = vunpack.c.l.b16 %v3367
    %v3505 = vpack.c.b16 %v3490, %v3489
    %v3506 = vpack.c.b16 %v3492, %v3491
    %v3507 = vpack.c.b16 %v3494, %v3493
    %v3508 = vpack.c.b16 %v3496, %v3495
    %v3509 = vpack.c.b16 %v3498, %v3497
    %v3510 = vpack.c.b16 %v3500, %v3499
    %v3511 = vpack.c.b16 %v3502, %v3501
    %v3512 = vpack.c.b16 %v3504, %v3503
    %3521 = vmatprep.subr.bf16.mxu0 0
    %3522 = vmatpush1.bf16.msra.mxu0 %v3505
    %3523 = vmatprep.subr.bf16.mxu0 0
    %3524 = vmatpush1.bf16.msra.mxu0 %v3506
    %3525 = vmatprep.subr.bf16.mxu0 0
    %3526 = vmatpush1.bf16.msra.mxu0 %v3507
    %3527 = vmatprep.subr.bf16.mxu0 0
    %3528 = vmatpush1.bf16.msra.mxu0 %v3508
    %3529 = vmatprep.subr.bf16.mxu0 0
    %3530 = vmatpush1.bf16.msra.mxu0 %v3509
    %3531 = vmatprep.subr.bf16.mxu0 0
    %3532 = vmatpush1.bf16.msra.mxu0 %v3510
    %3533 = vmatprep.subr.bf16.mxu0 0
    %3534 = vmatpush1.bf16.msra.mxu0 %v3511
    %3535 = vmatprep.subr.bf16.mxu0 0
    %3536 = vmatpush1.bf16.msra.mxu0 %v3512
    %3537 = vmatprep.subr.bf16.mxu0 0
    %3538 = vmatpush1.bf16.msra.mxu0 0
    %3539 = vmatprep.subr.bf16.mxu0 0
    %3540 = vmatpush1.bf16.msra.mxu0 0
    %3541 = vmatprep.subr.bf16.mxu0 0
    %3542 = vmatpush1.bf16.msra.mxu0 0
    %3543 = vmatprep.subr.bf16.mxu0 0
    %3544 = vmatpush1.bf16.msra.mxu0 0
    %3545 = vmatprep.subr.bf16.mxu0 0
    %3546 = vmatpush1.bf16.msra.mxu0 0
    %3547 = vmatprep.subr.bf16.mxu0 0
    %3548 = vmatpush1.bf16.msra.mxu0 0
    %3549 = vmatprep.subr.bf16.mxu0 0
    %3550 = vmatpush1.bf16.msra.mxu0 0
    %3551 = vmatprep.subr.bf16.mxu0 0
    %3552 = vmatpush1.bf16.msra.mxu0 0
    %3553 = vmatprep.mubr.bf16.mxu0 0
    %3554 = vmatmul.mubr.bf16.gmra.mrb[0].mxu0 %v3167
    %v3555 = vpop.f32.mrb[0].mxu0
    %v3556 = vadd.f32 %v3468, %v3555
    %v3557 = vpop.f32.mrb[0].mxu0
    %v3558 = vpop.f32.mrb[0].mxu0
    %v3559 = vpop.f32.mrb[0].mxu0
    %3560 = vdwg.mxu0
    %v3561 = vld [vmem:[%s11] sm:$0x1]
    %v3563 = vlaneseq
    %v3564 = vshrl.u32 %v3563, 7
    %v3565 = vsub.s32 0, %v3564
    %v3566 = vrot.slane %v3561, %v3565
    %v3568 = vadd.f32 %v3556, %v3566
    %3569 = vst [vmem:[%s12] sm:$0xff] %v3568
    // Predicated region
    $region70: #{rnn2_forward.1} parent=1 // pred_check
      _
    $region71: #{rnn2_forward.1} parent=1 // pred_check_branch
      %3571 = sbr.rel (0) target = $region73
    $region72: #{rnn2_forward.1} parent=1 // pred_region
      _
    $region73: #{rnn2_forward.1} parent=1 // pred_fallthru
      _
    // Predicated region
    $region74: #{rnn2_forward.1} parent=1 // pred_check
      _
    $region75: #{rnn2_forward.1} parent=1 // pred_check_branch
      %3573 = sbr.rel (0) target = $region77
    $region76: #{rnn2_forward.1} parent=1 // pred_region
      _
    $region77: #{rnn2_forward.1} parent=1 // pred_fallthru
      _
    %3574 = vsyncpa [#allocation4], 1
    %3575 = vsyncpa [#allocation6], 1
    %3576 = vsyncpa [#allocation9], 1

</llo_original>
